<compile_context>
chip_gen: v7x
topology: tpu7x:2x2x1
jax: 0.10.0
libtpu: 0.0.40
codegen_flags: <defaults>
</compile_context>

<pallas_src>
import functools

import numpy as np
import jax
import jax.numpy as jnp
from jax.experimental import pallas as pl
from jax.experimental.pallas import tpu as pltpu


# ----------------------------------------------------------------------------
# Constant-matrix builders (numpy; run once at trace time on tiny shapes).
# ----------------------------------------------------------------------------
def _shift_matrix(n, dy):
    """S (n, n): S[h, h + dy - 1] = 1; rows whose source falls outside stay 0."""
    s = np.zeros((n, n), np.float32)
    for h in range(n):
        src = h + dy - 1
        if 0 <= src < n:
            s[h, src] = 1.0
    return s


def _upsample_1d(n):
    """U (2n, n): out = U @ in == PyTorch bilinear x2 (align_corners=False)."""
    u = np.zeros((2 * n, n), np.float32)
    for h in range(n):
        u[2 * h, max(h - 1, 0)] += 0.25
        u[2 * h, h] += 0.75
        u[2 * h + 1, h] += 0.75
        u[2 * h + 1, min(h + 1, n - 1)] += 0.25
    return u


def _tap_select(w):
    """P (3, W, W): P[dx, win, wout] = 1  iff  win == wout + dx - 1."""
    p = np.zeros((3, w, w), np.float32)
    for dx in range(3):
        for wo in range(w):
            wi = wo + dx - 1
            if 0 <= wi < w:
                p[dx, wi, wo] = 1.0
    return p


# ----------------------------------------------------------------------------
# Fused kernel: conv1 -> up -> conv2 -> up -> conv3 -> up -> conv4, one image.
# ----------------------------------------------------------------------------
def _seg_head_kernel(x_ref,
                     l0, w0, b0, l1, w1, b1, l2, w2, b2, l3, w3, b3,
                     h0, h1, h2,
                     o_ref):
    """All non-activation refs hold constant matrices:

    l*: (3, H_i, H_prev)              f32  vertical tap shift (+ x2 row upsample)
    w*: (3, W_i*Cin_i, W_i*Cout_i)    bf16 horizontal taps + zero pad + BN scale
    b*: (1, W_i*Cout_i)               f32  folded BN bias, tiled over W
    h*: (W_i*Cout_i, 2*W_i*Cout_i)    f32  horizontal bilinear x2 upsample
    """
    layers = [(l0, w0, b0), (l1, w1, b1), (l2, w2, b2), (l3, w3, b3)]
    hups = [h0, h1, h2]

    t = x_ref[...]                                         # (H0, W0*C0) f32
    y = t
    for i, (l_ref, w_ref, b_ref) in enumerate(layers):
        acc = None
        for dy in range(3):
            # vertical tap (and upsample) as a small f32 left-matmul
            rows = jnp.dot(l_ref[dy], t, preferred_element_type=jnp.float32)
            # 3 horizontal taps + padding folded into one bf16 MXU matmul
            part = jnp.dot(rows.astype(jnp.bfloat16), w_ref[dy],
                           preferred_element_type=jnp.float32)
            acc = part if acc is None else acc + part
        z = acc + b_ref[...]                               # eval-mode BatchNorm
        y = z * jax.nn.sigmoid(z)                          # SiLU (f32, VPU/EUP)
        if i < len(hups):                                  # bilinear x2 (cols)
            t = jnp.dot(y, hups[i][...], preferred_element_type=jnp.float32)
    o_ref[...] = y.astype(o_ref.dtype)


# ----------------------------------------------------------------------------
# Wrapper.
# ----------------------------------------------------------------------------
def segmentation_head_forward(x_nchw, params):
    """params: list of 4 tuples (w_bf16 (3,3,Cin,Cout) with BN scale folded,
    bias_f32 (1, Cout)). Input/output are NCHW (PyTorch convention)."""
    n_layers = len(params)
    assert n_layers == 4
    x = jnp.transpose(x_nchw, (0, 2, 3, 1))                # NCHW -> NHWC (tiny)
    N, H, W, C0 = x.shape
    chans = [C0] + [w.shape[-1] for (w, _) in params]
    Hs = [H * 2 ** i for i in range(n_layers)]
    Ws = [W * 2 ** i for i in range(n_layers)]
    Hout, Wout, Cf = Hs[-1], Ws[-1], chans[-1]

    def full_spec(arr):                                    # whole-array block
        zeros = (0,) * arr.ndim
        return pl.BlockSpec(arr.shape, lambda n, z=zeros: z)

    flat_args = [x.reshape(N, H, W * C0)]                  # lane-packed (H, W*C)
    in_specs = [pl.BlockSpec((None, H, W * C0), lambda n: (n, 0, 0))]

    hup_args, hup_specs = [], []
    for i, (w, b) in enumerate(params):
        assert w.shape[:2] == (3, 3)
        cin, cout, Hi, Wi = chans[i], chans[i + 1], Hs[i], Ws[i]

        # Vertical: tap shift (and, for i>0, the x2 bilinear row-upsample of the
        # previous layer's output) folded into one small left-matrix per dy.
        if i == 0:
            l_mat = np.stack([_shift_matrix(Hi, dy) for dy in range(3)])
        else:
            uv = _upsample_1d(Hs[i - 1])                   # (Hi, Hs[i-1])
            l_mat = np.stack([_shift_matrix(Hi, dy) @ uv for dy in range(3)])
        l_mat = jnp.asarray(l_mat, jnp.float32)

        # Horizontal: 3 taps + zero padding folded into a block-tridiagonal
        # (W*Cin, W*Cout) bf16 matrix per dy (exact re-layout of the weights).
        p_sel = jnp.asarray(_tap_select(Wi))
        w_blk = jnp.einsum('xpq,dxio->dpiqo', p_sel, w.astype(jnp.float32))
        w_blk = w_blk.reshape(3, Wi * cin, Wi * cout).astype(jnp.bfloat16)

        bias = jnp.tile(b.reshape(1, cout).astype(jnp.float32), (1, Wi))

        for arr in (l_mat, w_blk, bias):
            flat_args.append(arr)
            in_specs.append(full_spec(arr))

        # Horizontal bilinear x2 upsample (after layers 1..3), channel-blocked.
        if i < n_layers - 1:
            uh = _upsample_1d(Wi)                          # (2Wi, Wi)
            hup = np.einsum('oi,cd->icod', uh, np.eye(cout, dtype=np.float32))
            hup = jnp.asarray(hup.reshape(Wi * cout, 2 * Wi * cout))
            hup_args.append(hup)
            hup_specs.append(full_spec(hup))

    flat_args += hup_args
    in_specs += hup_specs

    out = pl.pallas_call(
        _seg_head_kernel,
        out_shape=jax.ShapeDtypeStruct((N, Hout, Wout * Cf), jnp.float32),
        grid=(N,),
        in_specs=in_specs,
        out_specs=pl.BlockSpec((None, Hout, Wout * Cf), lambda n: (n, 0, 0)),
        compiler_params=pltpu.CompilerParams(
            dimension_semantics=("parallel",)),
    )(*flat_args)

    out = out.reshape(N, Hout, Wout, Cf)
    return jnp.transpose(out, (0, 3, 1, 2))                # NHWC -> NCHW


# ----------------------------------------------------------------------------
# Deterministic synthetic parameters. Eval-mode BatchNorm is folded exactly:
# scale goes into the conv weights, (beta - mean*scale) becomes the bias.
# ----------------------------------------------------------------------------
def init_params(key, in_channels, num_classes, eps=1e-5):
    chans = [in_channels, in_channels // 2, in_channels // 4,
             in_channels // 8, num_classes]
    params = []
    for i in range(4):
        cin, cout = chans[i], chans[i + 1]
        key, kw, kg, kb, km, kv = jax.random.split(key, 6)
        w = jax.random.normal(kw, (3, 3, cin, cout), jnp.float32) / jnp.sqrt(9.0 * cin)
        gamma = 1.0 + 0.1 * jax.random.normal(kg, (cout,), jnp.float32)
        beta = 0.1 * jax.random.normal(kb, (cout,), jnp.float32)
        mean = 0.1 * jax.random.normal(km, (cout,), jnp.float32)
        var = 0.5 + jax.random.uniform(kv, (cout,), jnp.float32)
        scale = gamma / jnp.sqrt(var + eps)
        bias = beta - mean * scale
        w_folded = (w * scale[None, None, None, :]).astype(jnp.bfloat16)
        params.append((w_folded, bias.reshape(1, cout).astype(jnp.float32)))
    return params


# ----------------------------------------------------------------------------
# Pure-JAX reference (exact module semantics, f32 activations) for a sanity
# check of the matrix-folded kernel.
# ----------------------------------------------------------------------------
def _bilinear_up2(x):  # NHWC, PyTorch bilinear x2, align_corners=False
    def up_axis(a, axis):
        n = a.shape[axis]
        idx = jnp.arange(n)
        lo = jnp.clip(idx - 1, 0, n - 1)
        hi = jnp.clip(idx + 1, 0, n - 1)
        a_lo = jnp.take(a, lo, axis=axis)
        a_hi = jnp.take(a, hi, axis=axis)
        even = 0.25 * a_lo + 0.75 * a
        odd = 0.75 * a + 0.25 * a_hi
        out = jnp.stack([even, odd], axis=axis + 1)
        new_shape = list(a.shape)
        new_shape[axis] = 2 * n
        return out.reshape(new_shape)

    return up_axis(up_axis(x, 1), 2)


def _reference_forward(x_nchw, params):
    x = jnp.transpose(x_nchw, (0, 2, 3, 1)).astype(jnp.float32)
    for i, (w, b) in enumerate(params):
        y = jax.lax.conv_general_dilated(
            x, w.astype(jnp.float32), window_strides=(1, 1),
            padding=((1, 1), (1, 1)),
            dimension_numbers=('NHWC', 'HWIO', 'NHWC'))
        y = y + b.reshape(1, 1, 1, -1)
        y = y * jax.nn.sigmoid(y)
        if i < len(params) - 1:
            y = _bilinear_up2(y)
        x = y
    return jnp.transpose(x, (0, 3, 1, 2))


if __name__ == "__main__":
    in_channels = 16
    num_classes = 2
    N, H, W = 2, 8, 8

    key = jax.random.PRNGKey(0)
    kx, kp = jax.random.split(key)
    x = jax.random.normal(kx, (N, in_channels, H, W), jnp.float32)  # NCHW
    params = init_params(kp, in_channels, num_classes)

    fwd = jax.jit(functools.partial(segmentation_head_forward, params=params))
    out = jax.block_until_ready(fwd(x))

    expected = (N, num_classes, 8 * H, 8 * W)  # three bilinear x2 upsamples
    assert out.shape == expected, (out.shape, expected)
    assert bool(jnp.all(jnp.isfinite(out)))

    ref = jax.block_until_ready(_reference_forward(x, params))
    err = float(jnp.max(jnp.abs(out - ref)))
    scale = float(jnp.max(jnp.abs(ref)))
    assert err <= 5e-2 * (scale + 1.0), (err, scale)  # bf16-conv tolerance

    print("KERNEL_OK")
</pallas_src>

<mosaic_0001>
module attributes {stable_mosaic.version = 11 : i64} {
  func.func @_seg_head_kernel(%arg0: i32, %arg1: memref<1x8x128xf32, #tpu.memory_space<vmem>>, %arg2: memref<3x8x8xf32, #tpu.memory_space<vmem>>, %arg3: memref<3x128x64xbf16, #tpu.memory_space<vmem>>, %arg4: memref<1x64xf32, #tpu.memory_space<vmem>>, %arg5: memref<3x16x8xf32, #tpu.memory_space<vmem>>, %arg6: memref<3x128x64xbf16, #tpu.memory_space<vmem>>, %arg7: memref<1x64xf32, #tpu.memory_space<vmem>>, %arg8: memref<3x32x16xf32, #tpu.memory_space<vmem>>, %arg9: memref<3x128x64xbf16, #tpu.memory_space<vmem>>, %arg10: memref<1x64xf32, #tpu.memory_space<vmem>>, %arg11: memref<3x64x32xf32, #tpu.memory_space<vmem>>, %arg12: memref<3x128x128xbf16, #tpu.memory_space<vmem>>, %arg13: memref<1x128xf32, #tpu.memory_space<vmem>>, %arg14: memref<64x128xf32, #tpu.memory_space<vmem>>, %arg15: memref<64x128xf32, #tpu.memory_space<vmem>>, %arg16: memref<64x128xf32, #tpu.memory_space<vmem>>, %arg17: memref<1x64x128xf32, #tpu.memory_space<vmem>>) attributes {dimension_semantics = [#tpu.dimension_semantics<parallel>], iteration_bounds = array<i64: 2>, scalar_prefetch = 0 : i64, scratch_operands = 0 : i64, tpu.core_type = #tpu.core_type<tc>, window_params = [{transform_indices = @transform_0, window_bounds = array<i64: 1, 8, 128>}, {pipeline_mode = #tpu.pipeline_mode<synchronous>, transform_indices = @transform_1, window_bounds = array<i64: 3, 8, 8>}, {pipeline_mode = #tpu.pipeline_mode<synchronous>, transform_indices = @transform_2, window_bounds = array<i64: 3, 128, 64>}, {pipeline_mode = #tpu.pipeline_mode<synchronous>, transform_indices = @transform_3, window_bounds = array<i64: 1, 64>}, {pipeline_mode = #tpu.pipeline_mode<synchronous>, transform_indices = @transform_4, window_bounds = array<i64: 3, 16, 8>}, {pipeline_mode = #tpu.pipeline_mode<synchronous>, transform_indices = @transform_5, window_bounds = array<i64: 3, 128, 64>}, {pipeline_mode = #tpu.pipeline_mode<synchronous>, transform_indices = @transform_6, window_bounds = array<i64: 1, 64>}, {pipeline_mode = #tpu.pipeline_mode<synchronous>, transform_indices = @transform_7, window_bounds = array<i64: 3, 32, 16>}, {pipeline_mode = #tpu.pipeline_mode<synchronous>, transform_indices = @transform_8, window_bounds = array<i64: 3, 128, 64>}, {pipeline_mode = #tpu.pipeline_mode<synchronous>, transform_indices = @transform_9, window_bounds = array<i64: 1, 64>}, {pipeline_mode = #tpu.pipeline_mode<synchronous>, transform_indices = @transform_10, window_bounds = array<i64: 3, 64, 32>}, {pipeline_mode = #tpu.pipeline_mode<synchronous>, transform_indices = @transform_11, window_bounds = array<i64: 3, 128, 128>}, {pipeline_mode = #tpu.pipeline_mode<synchronous>, transform_indices = @transform_12, window_bounds = array<i64: 1, 128>}, {pipeline_mode = #tpu.pipeline_mode<synchronous>, transform_indices = @transform_13, window_bounds = array<i64: 64, 128>}, {pipeline_mode = #tpu.pipeline_mode<synchronous>, transform_indices = @transform_14, window_bounds = array<i64: 64, 128>}, {pipeline_mode = #tpu.pipeline_mode<synchronous>, transform_indices = @transform_15, window_bounds = array<i64: 64, 128>}, {transform_indices = @transform_16, window_bounds = array<i64: 1, 64, 128>}]} {
    %c0 = arith.constant 0 : index
    %c0_0 = arith.constant 0 : index
    %c0_1 = arith.constant 0 : index
    %0 = vector.load %arg1[%c0, %c0_0, %c0_1] : memref<1x8x128xf32, #tpu.memory_space<vmem>>, vector<1x8x128xf32>
    %1 = vector.shape_cast %0 : vector<1x8x128xf32> to vector<8x128xf32>
    %c0_2 = arith.constant 0 : index
    %c0_3 = arith.constant 0 : index
    %c0_4 = arith.constant 0 : index
    %2 = vector.load %arg2[%c0_2, %c0_3, %c0_4] : memref<3x8x8xf32, #tpu.memory_space<vmem>>, vector<1x8x8xf32>
    %3 = vector.shape_cast %2 : vector<1x8x8xf32> to vector<8x8xf32>
    %cst = arith.constant dense<0.000000e+00> : vector<8x128xf32>
    %4 = tpu.matmul %3, %1, %cst {dimension_numbers = #tpu.dot_dimension_numbers<[1], [0], [0], [1], [0, 0, 1, 1], [], []>} : vector<8x8xf32>, vector<8x128xf32>, vector<8x128xf32> -> vector<8x128xf32>
    %5 = arith.truncf %4 : vector<8x128xf32> to vector<8x128xbf16>
    %c0_5 = arith.constant 0 : index
    %c0_6 = arith.constant 0 : index
    %c0_7 = arith.constant 0 : index
    %6 = vector.load %arg3[%c0_5, %c0_6, %c0_7] : memref<3x128x64xbf16, #tpu.memory_space<vmem>>, vector<1x128x64xbf16>
    %7 = vector.shape_cast %6 : vector<1x128x64xbf16> to vector<128x64xbf16>
    %cst_8 = arith.constant dense<0.000000e+00> : vector<8x64xf32>
    %8 = tpu.matmul %5, %7, %cst_8 {dimension_numbers = #tpu.dot_dimension_numbers<[1], [0], [0], [1], [0, 0, 1, 1], [], []>} : vector<8x128xbf16>, vector<128x64xbf16>, vector<8x64xf32> -> vector<8x64xf32>
    %c1 = arith.constant 1 : index
    %c0_9 = arith.constant 0 : index
    %c0_10 = arith.constant 0 : index
    %9 = vector.load %arg2[%c1, %c0_9, %c0_10] : memref<3x8x8xf32, #tpu.memory_space<vmem>>, vector<1x8x8xf32>
    %10 = vector.shape_cast %9 : vector<1x8x8xf32> to vector<8x8xf32>
    %cst_11 = arith.constant dense<0.000000e+00> : vector<8x128xf32>
    %11 = tpu.matmul %10, %1, %cst_11 {dimension_numbers = #tpu.dot_dimension_numbers<[1], [0], [0], [1], [0, 0, 1, 1], [], []>} : vector<8x8xf32>, vector<8x128xf32>, vector<8x128xf32> -> vector<8x128xf32>
    %12 = arith.truncf %11 : vector<8x128xf32> to vector<8x128xbf16>
    %c1_12 = arith.constant 1 : index
    %c0_13 = arith.constant 0 : index
    %c0_14 = arith.constant 0 : index
    %13 = vector.load %arg3[%c1_12, %c0_13, %c0_14] : memref<3x128x64xbf16, #tpu.memory_space<vmem>>, vector<1x128x64xbf16>
    %14 = vector.shape_cast %13 : vector<1x128x64xbf16> to vector<128x64xbf16>
    %cst_15 = arith.constant dense<0.000000e+00> : vector<8x64xf32>
    %15 = tpu.matmul %12, %14, %cst_15 {dimension_numbers = #tpu.dot_dimension_numbers<[1], [0], [0], [1], [0, 0, 1, 1], [], []>} : vector<8x128xbf16>, vector<128x64xbf16>, vector<8x64xf32> -> vector<8x64xf32>
    %16 = arith.addf %8, %15 : vector<8x64xf32>
    %c2 = arith.constant 2 : index
    %c0_16 = arith.constant 0 : index
    %c0_17 = arith.constant 0 : index
    %17 = vector.load %arg2[%c2, %c0_16, %c0_17] : memref<3x8x8xf32, #tpu.memory_space<vmem>>, vector<1x8x8xf32>
    %18 = vector.shape_cast %17 : vector<1x8x8xf32> to vector<8x8xf32>
    %cst_18 = arith.constant dense<0.000000e+00> : vector<8x128xf32>
    %19 = tpu.matmul %18, %1, %cst_18 {dimension_numbers = #tpu.dot_dimension_numbers<[1], [0], [0], [1], [0, 0, 1, 1], [], []>} : vector<8x8xf32>, vector<8x128xf32>, vector<8x128xf32> -> vector<8x128xf32>
    %20 = arith.truncf %19 : vector<8x128xf32> to vector<8x128xbf16>
    %c2_19 = arith.constant 2 : index
    %c0_20 = arith.constant 0 : index
    %c0_21 = arith.constant 0 : index
    %21 = vector.load %arg3[%c2_19, %c0_20, %c0_21] : memref<3x128x64xbf16, #tpu.memory_space<vmem>>, vector<1x128x64xbf16>
    %22 = vector.shape_cast %21 : vector<1x128x64xbf16> to vector<128x64xbf16>
    %cst_22 = arith.constant dense<0.000000e+00> : vector<8x64xf32>
    %23 = tpu.matmul %20, %22, %cst_22 {dimension_numbers = #tpu.dot_dimension_numbers<[1], [0], [0], [1], [0, 0, 1, 1], [], []>} : vector<8x128xbf16>, vector<128x64xbf16>, vector<8x64xf32> -> vector<8x64xf32>
    %24 = arith.addf %16, %23 : vector<8x64xf32>
    %c0_23 = arith.constant 0 : index
    %c0_24 = arith.constant 0 : index
    %25 = vector.load %arg4[%c0_23, %c0_24] : memref<1x64xf32, #tpu.memory_space<vmem>>, vector<1x64xf32>
    %26 = vector.broadcast %25 : vector<1x64xf32> to vector<8x64xf32>
    %27 = arith.addf %24, %26 : vector<8x64xf32>
    %28 = arith.negf %27 : vector<8x64xf32>
    %29 = math.exp %28 : vector<8x64xf32>
    %cst_25 = arith.constant 1.000000e+00 : f32
    %30 = vector.broadcast %cst_25 : f32 to vector<8x64xf32>
    %31 = arith.addf %30, %29 : vector<8x64xf32>
    %32 = arith.divf %30, %31 : vector<8x64xf32>
    %33 = arith.mulf %27, %32 : vector<8x64xf32>
    %c0_26 = arith.constant 0 : index
    %c0_27 = arith.constant 0 : index
    %34 = vector.load %arg14[%c0_26, %c0_27] : memref<64x128xf32, #tpu.memory_space<vmem>>, vector<64x128xf32>
    %cst_28 = arith.constant dense<0.000000e+00> : vector<8x128xf32>
    %35 = tpu.matmul %33, %34, %cst_28 {dimension_numbers = #tpu.dot_dimension_numbers<[1], [0], [0], [1], [0, 0, 1, 1], [], []>} : vector<8x64xf32>, vector<64x128xf32>, vector<8x128xf32> -> vector<8x128xf32>
    %c0_29 = arith.constant 0 : index
    %c0_30 = arith.constant 0 : index
    %c0_31 = arith.constant 0 : index
    %36 = vector.load %arg5[%c0_29, %c0_30, %c0_31] : memref<3x16x8xf32, #tpu.memory_space<vmem>>, vector<1x16x8xf32>
    %37 = vector.shape_cast %36 : vector<1x16x8xf32> to vector<16x8xf32>
    %cst_32 = arith.constant dense<0.000000e+00> : vector<16x128xf32>
    %38 = tpu.matmul %37, %35, %cst_32 {dimension_numbers = #tpu.dot_dimension_numbers<[1], [0], [0], [1], [0, 0, 1, 1], [], []>} : vector<16x8xf32>, vector<8x128xf32>, vector<16x128xf32> -> vector<16x128xf32>
    %39 = arith.truncf %38 : vector<16x128xf32> to vector<16x128xbf16>
    %c0_33 = arith.constant 0 : index
    %c0_34 = arith.constant 0 : index
    %c0_35 = arith.constant 0 : index
    %40 = vector.load %arg6[%c0_33, %c0_34, %c0_35] : memref<3x128x64xbf16, #tpu.memory_space<vmem>>, vector<1x128x64xbf16>
    %41 = vector.shape_cast %40 : vector<1x128x64xbf16> to vector<128x64xbf16>
    %cst_36 = arith.constant dense<0.000000e+00> : vector<16x64xf32>
    %42 = tpu.matmul %39, %41, %cst_36 {dimension_numbers = #tpu.dot_dimension_numbers<[1], [0], [0], [1], [0, 0, 1, 1], [], []>} : vector<16x128xbf16>, vector<128x64xbf16>, vector<16x64xf32> -> vector<16x64xf32>
    %c1_37 = arith.constant 1 : index
    %c0_38 = arith.constant 0 : index
    %c0_39 = arith.constant 0 : index
    %43 = vector.load %arg5[%c1_37, %c0_38, %c0_39] : memref<3x16x8xf32, #tpu.memory_space<vmem>>, vector<1x16x8xf32>
    %44 = vector.shape_cast %43 : vector<1x16x8xf32> to vector<16x8xf32>
    %cst_40 = arith.constant dense<0.000000e+00> : vector<16x128xf32>
    %45 = tpu.matmul %44, %35, %cst_40 {dimension_numbers = #tpu.dot_dimension_numbers<[1], [0], [0], [1], [0, 0, 1, 1], [], []>} : vector<16x8xf32>, vector<8x128xf32>, vector<16x128xf32> -> vector<16x128xf32>
    %46 = arith.truncf %45 : vector<16x128xf32> to vector<16x128xbf16>
    %c1_41 = arith.constant 1 : index
    %c0_42 = arith.constant 0 : index
    %c0_43 = arith.constant 0 : index
    %47 = vector.load %arg6[%c1_41, %c0_42, %c0_43] : memref<3x128x64xbf16, #tpu.memory_space<vmem>>, vector<1x128x64xbf16>
    %48 = vector.shape_cast %47 : vector<1x128x64xbf16> to vector<128x64xbf16>
    %cst_44 = arith.constant dense<0.000000e+00> : vector<16x64xf32>
    %49 = tpu.matmul %46, %48, %cst_44 {dimension_numbers = #tpu.dot_dimension_numbers<[1], [0], [0], [1], [0, 0, 1, 1], [], []>} : vector<16x128xbf16>, vector<128x64xbf16>, vector<16x64xf32> -> vector<16x64xf32>
    %50 = arith.addf %42, %49 : vector<16x64xf32>
    %c2_45 = arith.constant 2 : index
    %c0_46 = arith.constant 0 : index
    %c0_47 = arith.constant 0 : index
    %51 = vector.load %arg5[%c2_45, %c0_46, %c0_47] : memref<3x16x8xf32, #tpu.memory_space<vmem>>, vector<1x16x8xf32>
    %52 = vector.shape_cast %51 : vector<1x16x8xf32> to vector<16x8xf32>
    %cst_48 = arith.constant dense<0.000000e+00> : vector<16x128xf32>
    %53 = tpu.matmul %52, %35, %cst_48 {dimension_numbers = #tpu.dot_dimension_numbers<[1], [0], [0], [1], [0, 0, 1, 1], [], []>} : vector<16x8xf32>, vector<8x128xf32>, vector<16x128xf32> -> vector<16x128xf32>
    %54 = arith.truncf %53 : vector<16x128xf32> to vector<16x128xbf16>
    %c2_49 = arith.constant 2 : index
    %c0_50 = arith.constant 0 : index
    %c0_51 = arith.constant 0 : index
    %55 = vector.load %arg6[%c2_49, %c0_50, %c0_51] : memref<3x128x64xbf16, #tpu.memory_space<vmem>>, vector<1x128x64xbf16>
    %56 = vector.shape_cast %55 : vector<1x128x64xbf16> to vector<128x64xbf16>
    %cst_52 = arith.constant dense<0.000000e+00> : vector<16x64xf32>
    %57 = tpu.matmul %54, %56, %cst_52 {dimension_numbers = #tpu.dot_dimension_numbers<[1], [0], [0], [1], [0, 0, 1, 1], [], []>} : vector<16x128xbf16>, vector<128x64xbf16>, vector<16x64xf32> -> vector<16x64xf32>
    %58 = arith.addf %50, %57 : vector<16x64xf32>
    %c0_53 = arith.constant 0 : index
    %c0_54 = arith.constant 0 : index
    %59 = vector.load %arg7[%c0_53, %c0_54] : memref<1x64xf32, #tpu.memory_space<vmem>>, vector<1x64xf32>
    %60 = vector.broadcast %59 : vector<1x64xf32> to vector<16x64xf32>
    %61 = arith.addf %58, %60 : vector<16x64xf32>
    %62 = arith.negf %61 : vector<16x64xf32>
    %63 = math.exp %62 : vector<16x64xf32>
    %cst_55 = arith.constant 1.000000e+00 : f32
    %64 = vector.broadcast %cst_55 : f32 to vector<16x64xf32>
    %65 = arith.addf %64, %63 : vector<16x64xf32>
    %66 = arith.divf %64, %65 : vector<16x64xf32>
    %67 = arith.mulf %61, %66 : vector<16x64xf32>
    %c0_56 = arith.constant 0 : index
    %c0_57 = arith.constant 0 : index
    %68 = vector.load %arg15[%c0_56, %c0_57] : memref<64x128xf32, #tpu.memory_space<vmem>>, vector<64x128xf32>
    %cst_58 = arith.constant dense<0.000000e+00> : vector<16x128xf32>
    %69 = tpu.matmul %67, %68, %cst_58 {dimension_numbers = #tpu.dot_dimension_numbers<[1], [0], [0], [1], [0, 0, 1, 1], [], []>} : vector<16x64xf32>, vector<64x128xf32>, vector<16x128xf32> -> vector<16x128xf32>
    %c0_59 = arith.constant 0 : index
    %c0_60 = arith.constant 0 : index
    %c0_61 = arith.constant 0 : index
    %70 = vector.load %arg8[%c0_59, %c0_60, %c0_61] : memref<3x32x16xf32, #tpu.memory_space<vmem>>, vector<1x32x16xf32>
    %71 = vector.shape_cast %70 : vector<1x32x16xf32> to vector<32x16xf32>
    %cst_62 = arith.constant dense<0.000000e+00> : vector<32x128xf32>
    %72 = tpu.matmul %71, %69, %cst_62 {dimension_numbers = #tpu.dot_dimension_numbers<[1], [0], [0], [1], [0, 0, 1, 1], [], []>} : vector<32x16xf32>, vector<16x128xf32>, vector<32x128xf32> -> vector<32x128xf32>
    %73 = arith.truncf %72 : vector<32x128xf32> to vector<32x128xbf16>
    %c0_63 = arith.constant 0 : index
    %c0_64 = arith.constant 0 : index
    %c0_65 = arith.constant 0 : index
    %74 = vector.load %arg9[%c0_63, %c0_64, %c0_65] : memref<3x128x64xbf16, #tpu.memory_space<vmem>>, vector<1x128x64xbf16>
    %75 = vector.shape_cast %74 : vector<1x128x64xbf16> to vector<128x64xbf16>
    %cst_66 = arith.constant dense<0.000000e+00> : vector<32x64xf32>
    %76 = tpu.matmul %73, %75, %cst_66 {dimension_numbers = #tpu.dot_dimension_numbers<[1], [0], [0], [1], [0, 0, 1, 1], [], []>} : vector<32x128xbf16>, vector<128x64xbf16>, vector<32x64xf32> -> vector<32x64xf32>
    %c1_67 = arith.constant 1 : index
    %c0_68 = arith.constant 0 : index
    %c0_69 = arith.constant 0 : index
    %77 = vector.load %arg8[%c1_67, %c0_68, %c0_69] : memref<3x32x16xf32, #tpu.memory_space<vmem>>, vector<1x32x16xf32>
    %78 = vector.shape_cast %77 : vector<1x32x16xf32> to vector<32x16xf32>
    %cst_70 = arith.constant dense<0.000000e+00> : vector<32x128xf32>
    %79 = tpu.matmul %78, %69, %cst_70 {dimension_numbers = #tpu.dot_dimension_numbers<[1], [0], [0], [1], [0, 0, 1, 1], [], []>} : vector<32x16xf32>, vector<16x128xf32>, vector<32x128xf32> -> vector<32x128xf32>
    %80 = arith.truncf %79 : vector<32x128xf32> to vector<32x128xbf16>
    %c1_71 = arith.constant 1 : index
    %c0_72 = arith.constant 0 : index
    %c0_73 = arith.constant 0 : index
    %81 = vector.load %arg9[%c1_71, %c0_72, %c0_73] : memref<3x128x64xbf16, #tpu.memory_space<vmem>>, vector<1x128x64xbf16>
    %82 = vector.shape_cast %81 : vector<1x128x64xbf16> to vector<128x64xbf16>
    %cst_74 = arith.constant dense<0.000000e+00> : vector<32x64xf32>
    %83 = tpu.matmul %80, %82, %cst_74 {dimension_numbers = #tpu.dot_dimension_numbers<[1], [0], [0], [1], [0, 0, 1, 1], [], []>} : vector<32x128xbf16>, vector<128x64xbf16>, vector<32x64xf32> -> vector<32x64xf32>
    %84 = arith.addf %76, %83 : vector<32x64xf32>
    %c2_75 = arith.constant 2 : index
    %c0_76 = arith.constant 0 : index
    %c0_77 = arith.constant 0 : index
    %85 = vector.load %arg8[%c2_75, %c0_76, %c0_77] : memref<3x32x16xf32, #tpu.memory_space<vmem>>, vector<1x32x16xf32>
    %86 = vector.shape_cast %85 : vector<1x32x16xf32> to vector<32x16xf32>
    %cst_78 = arith.constant dense<0.000000e+00> : vector<32x128xf32>
    %87 = tpu.matmul %86, %69, %cst_78 {dimension_numbers = #tpu.dot_dimension_numbers<[1], [0], [0], [1], [0, 0, 1, 1], [], []>} : vector<32x16xf32>, vector<16x128xf32>, vector<32x128xf32> -> vector<32x128xf32>
    %88 = arith.truncf %87 : vector<32x128xf32> to vector<32x128xbf16>
    %c2_79 = arith.constant 2 : index
    %c0_80 = arith.constant 0 : index
    %c0_81 = arith.constant 0 : index
    %89 = vector.load %arg9[%c2_79, %c0_80, %c0_81] : memref<3x128x64xbf16, #tpu.memory_space<vmem>>, vector<1x128x64xbf16>
    %90 = vector.shape_cast %89 : vector<1x128x64xbf16> to vector<128x64xbf16>
    %cst_82 = arith.constant dense<0.000000e+00> : vector<32x64xf32>
    %91 = tpu.matmul %88, %90, %cst_82 {dimension_numbers = #tpu.dot_dimension_numbers<[1], [0], [0], [1], [0, 0, 1, 1], [], []>} : vector<32x128xbf16>, vector<128x64xbf16>, vector<32x64xf32> -> vector<32x64xf32>
    %92 = arith.addf %84, %91 : vector<32x64xf32>
    %c0_83 = arith.constant 0 : index
    %c0_84 = arith.constant 0 : index
    %93 = vector.load %arg10[%c0_83, %c0_84] : memref<1x64xf32, #tpu.memory_space<vmem>>, vector<1x64xf32>
    %94 = vector.broadcast %93 : vector<1x64xf32> to vector<32x64xf32>
    %95 = arith.addf %92, %94 : vector<32x64xf32>
    %96 = arith.negf %95 : vector<32x64xf32>
    %97 = math.exp %96 : vector<32x64xf32>
    %cst_85 = arith.constant 1.000000e+00 : f32
    %98 = vector.broadcast %cst_85 : f32 to vector<32x64xf32>
    %99 = arith.addf %98, %97 : vector<32x64xf32>
    %100 = arith.divf %98, %99 : vector<32x64xf32>
    %101 = arith.mulf %95, %100 : vector<32x64xf32>
    %c0_86 = arith.constant 0 : index
    %c0_87 = arith.constant 0 : index
    %102 = vector.load %arg16[%c0_86, %c0_87] : memref<64x128xf32, #tpu.memory_space<vmem>>, vector<64x128xf32>
    %cst_88 = arith.constant dense<0.000000e+00> : vector<32x128xf32>
    %103 = tpu.matmul %101, %102, %cst_88 {dimension_numbers = #tpu.dot_dimension_numbers<[1], [0], [0], [1], [0, 0, 1, 1], [], []>} : vector<32x64xf32>, vector<64x128xf32>, vector<32x128xf32> -> vector<32x128xf32>
    %c0_89 = arith.constant 0 : index
    %c0_90 = arith.constant 0 : index
    %c0_91 = arith.constant 0 : index
    %104 = vector.load %arg11[%c0_89, %c0_90, %c0_91] : memref<3x64x32xf32, #tpu.memory_space<vmem>>, vector<1x64x32xf32>
    %105 = vector.shape_cast %104 : vector<1x64x32xf32> to vector<64x32xf32>
    %cst_92 = arith.constant dense<0.000000e+00> : vector<64x128xf32>
    %106 = tpu.matmul %105, %103, %cst_92 {dimension_numbers = #tpu.dot_dimension_numbers<[1], [0], [0], [1], [0, 0, 1, 1], [], []>} : vector<64x32xf32>, vector<32x128xf32>, vector<64x128xf32> -> vector<64x128xf32>
    %107 = arith.truncf %106 : vector<64x128xf32> to vector<64x128xbf16>
    %c0_93 = arith.constant 0 : index
    %c0_94 = arith.constant 0 : index
    %c0_95 = arith.constant 0 : index
    %108 = vector.load %arg12[%c0_93, %c0_94, %c0_95] : memref<3x128x128xbf16, #tpu.memory_space<vmem>>, vector<1x128x128xbf16>
    %109 = vector.shape_cast %108 : vector<1x128x128xbf16> to vector<128x128xbf16>
    %cst_96 = arith.constant dense<0.000000e+00> : vector<64x128xf32>
    %110 = tpu.matmul %107, %109, %cst_96 {dimension_numbers = #tpu.dot_dimension_numbers<[1], [0], [0], [1], [0, 0, 1, 1], [], []>} : vector<64x128xbf16>, vector<128x128xbf16>, vector<64x128xf32> -> vector<64x128xf32>
    %c1_97 = arith.constant 1 : index
    %c0_98 = arith.constant 0 : index
    %c0_99 = arith.constant 0 : index
    %111 = vector.load %arg11[%c1_97, %c0_98, %c0_99] : memref<3x64x32xf32, #tpu.memory_space<vmem>>, vector<1x64x32xf32>
    %112 = vector.shape_cast %111 : vector<1x64x32xf32> to vector<64x32xf32>
    %cst_100 = arith.constant dense<0.000000e+00> : vector<64x128xf32>
    %113 = tpu.matmul %112, %103, %cst_100 {dimension_numbers = #tpu.dot_dimension_numbers<[1], [0], [0], [1], [0, 0, 1, 1], [], []>} : vector<64x32xf32>, vector<32x128xf32>, vector<64x128xf32> -> vector<64x128xf32>
    %114 = arith.truncf %113 : vector<64x128xf32> to vector<64x128xbf16>
    %c1_101 = arith.constant 1 : index
    %c0_102 = arith.constant 0 : index
    %c0_103 = arith.constant 0 : index
    %115 = vector.load %arg12[%c1_101, %c0_102, %c0_103] : memref<3x128x128xbf16, #tpu.memory_space<vmem>>, vector<1x128x128xbf16>
    %116 = vector.shape_cast %115 : vector<1x128x128xbf16> to vector<128x128xbf16>
    %cst_104 = arith.constant dense<0.000000e+00> : vector<64x128xf32>
    %117 = tpu.matmul %114, %116, %cst_104 {dimension_numbers = #tpu.dot_dimension_numbers<[1], [0], [0], [1], [0, 0, 1, 1], [], []>} : vector<64x128xbf16>, vector<128x128xbf16>, vector<64x128xf32> -> vector<64x128xf32>
    %118 = arith.addf %110, %117 : vector<64x128xf32>
    %c2_105 = arith.constant 2 : index
    %c0_106 = arith.constant 0 : index
    %c0_107 = arith.constant 0 : index
    %119 = vector.load %arg11[%c2_105, %c0_106, %c0_107] : memref<3x64x32xf32, #tpu.memory_space<vmem>>, vector<1x64x32xf32>
    %120 = vector.shape_cast %119 : vector<1x64x32xf32> to vector<64x32xf32>
    %cst_108 = arith.constant dense<0.000000e+00> : vector<64x128xf32>
    %121 = tpu.matmul %120, %103, %cst_108 {dimension_numbers = #tpu.dot_dimension_numbers<[1], [0], [0], [1], [0, 0, 1, 1], [], []>} : vector<64x32xf32>, vector<32x128xf32>, vector<64x128xf32> -> vector<64x128xf32>
    %122 = arith.truncf %121 : vector<64x128xf32> to vector<64x128xbf16>
    %c2_109 = arith.constant 2 : index
    %c0_110 = arith.constant 0 : index
    %c0_111 = arith.constant 0 : index
    %123 = vector.load %arg12[%c2_109, %c0_110, %c0_111] : memref<3x128x128xbf16, #tpu.memory_space<vmem>>, vector<1x128x128xbf16>
    %124 = vector.shape_cast %123 : vector<1x128x128xbf16> to vector<128x128xbf16>
    %cst_112 = arith.constant dense<0.000000e+00> : vector<64x128xf32>
    %125 = tpu.matmul %122, %124, %cst_112 {dimension_numbers = #tpu.dot_dimension_numbers<[1], [0], [0], [1], [0, 0, 1, 1], [], []>} : vector<64x128xbf16>, vector<128x128xbf16>, vector<64x128xf32> -> vector<64x128xf32>
    %126 = arith.addf %118, %125 : vector<64x128xf32>
    %c0_113 = arith.constant 0 : index
    %c0_114 = arith.constant 0 : index
    %127 = vector.load %arg13[%c0_113, %c0_114] : memref<1x128xf32, #tpu.memory_space<vmem>>, vector<1x128xf32>
    %128 = vector.broadcast %127 : vector<1x128xf32> to vector<64x128xf32>
    %129 = arith.addf %126, %128 : vector<64x128xf32>
    %130 = arith.negf %129 : vector<64x128xf32>
    %131 = math.exp %130 : vector<64x128xf32>
    %cst_115 = arith.constant 1.000000e+00 : f32
    %132 = vector.broadcast %cst_115 : f32 to vector<64x128xf32>
    %133 = arith.addf %132, %131 : vector<64x128xf32>
    %134 = arith.divf %132, %133 : vector<64x128xf32>
    %135 = arith.mulf %129, %134 : vector<64x128xf32>
    %c0_116 = arith.constant 0 : index
    %c0_117 = arith.constant 0 : index
    %c0_118 = arith.constant 0 : index
    %136 = vector.load %arg17[%c0_116, %c0_117, %c0_118] : memref<1x64x128xf32, #tpu.memory_space<vmem>>, vector<1x64x128xf32>
    %137 = vector.shape_cast %136 : vector<1x64x128xf32> to vector<64x128xf32>
    %138 = vector.shape_cast %135 : vector<64x128xf32> to vector<1x64x128xf32>
    tpu.vector_store %arg17[%c0_116, %c0_117, %c0_118], %138 {strides = array<i32>} : memref<1x64x128xf32, #tpu.memory_space<vmem>>, vector<1x64x128xf32>,
    return
  }
  func.func @transform_0(%arg0: i32) -> (i32, i32, i32) {
    %c0_i32 = arith.constant 0 : i32
    %c0_i32_0 = arith.constant 0 : i32
    %c0_i32_1 = arith.constant 0 : i32
    return %arg0, %c0_i32, %c0_i32_0 : i32, i32, i32
  }
  func.func @transform_1(%arg0: i32) -> (i32, i32, i32) {
    %c0_i32 = arith.constant 0 : i32
    %c0_i32_0 = arith.constant 0 : i32
    %c0_i32_1 = arith.constant 0 : i32
    %c0_i32_2 = arith.constant 0 : i32
    return %c0_i32, %c0_i32_0, %c0_i32_1 : i32, i32, i32
  }
  func.func @transform_2(%arg0: i32) -> (i32, i32, i32) {
    %c0_i32 = arith.constant 0 : i32
    %c0_i32_0 = arith.constant 0 : i32
    %c0_i32_1 = arith.constant 0 : i32
    %c0_i32_2 = arith.constant 0 : i32
    return %c0_i32, %c0_i32_0, %c0_i32_1 : i32, i32, i32
  }
  func.func @transform_3(%arg0: i32) -> (i32, i32) {
    %c0_i32 = arith.constant 0 : i32
    %c0_i32_0 = arith.constant 0 : i32
    %c0_i32_1 = arith.constant 0 : i32
    return %c0_i32, %c0_i32_0 : i32, i32
  }
  func.func @transform_4(%arg0: i32) -> (i32, i32, i32) {
    %c0_i32 = arith.constant 0 : i32
    %c0_i32_0 = arith.constant 0 : i32
    %c0_i32_1 = arith.constant 0 : i32
    %c0_i32_2 = arith.constant 0 : i32
    return %c0_i32, %c0_i32_0, %c0_i32_1 : i32, i32, i32
  }
  func.func @transform_5(%arg0: i32) -> (i32, i32, i32) {
    %c0_i32 = arith.constant 0 : i32
    %c0_i32_0 = arith.constant 0 : i32
    %c0_i32_1 = arith.constant 0 : i32
    %c0_i32_2 = arith.constant 0 : i32
    return %c0_i32, %c0_i32_0, %c0_i32_1 : i32, i32, i32
  }
  func.func @transform_6(%arg0: i32) -> (i32, i32) {
    %c0_i32 = arith.constant 0 : i32
    %c0_i32_0 = arith.constant 0 : i32
    %c0_i32_1 = arith.constant 0 : i32
    return %c0_i32, %c0_i32_0 : i32, i32
  }
  func.func @transform_7(%arg0: i32) -> (i32, i32, i32) {
    %c0_i32 = arith.constant 0 : i32
    %c0_i32_0 = arith.constant 0 : i32
    %c0_i32_1 = arith.constant 0 : i32
    %c0_i32_2 = arith.constant 0 : i32
    return %c0_i32, %c0_i32_0, %c0_i32_1 : i32, i32, i32
  }
  func.func @transform_8(%arg0: i32) -> (i32, i32, i32) {
    %c0_i32 = arith.constant 0 : i32
    %c0_i32_0 = arith.constant 0 : i32
    %c0_i32_1 = arith.constant 0 : i32
    %c0_i32_2 = arith.constant 0 : i32
    return %c0_i32, %c0_i32_0, %c0_i32_1 : i32, i32, i32
  }
  func.func @transform_9(%arg0: i32) -> (i32, i32) {
    %c0_i32 = arith.constant 0 : i32
    %c0_i32_0 = arith.constant 0 : i32
    %c0_i32_1 = arith.constant 0 : i32
    return %c0_i32, %c0_i32_0 : i32, i32
  }
  func.func @transform_10(%arg0: i32) -> (i32, i32, i32) {
    %c0_i32 = arith.constant 0 : i32
    %c0_i32_0 = arith.constant 0 : i32
    %c0_i32_1 = arith.constant 0 : i32
    %c0_i32_2 = arith.constant 0 : i32
    return %c0_i32, %c0_i32_0, %c0_i32_1 : i32, i32, i32
  }
  func.func @transform_11(%arg0: i32) -> (i32, i32, i32) {
    %c0_i32 = arith.constant 0 : i32
    %c0_i32_0 = arith.constant 0 : i32
    %c0_i32_1 = arith.constant 0 : i32
    %c0_i32_2 = arith.constant 0 : i32
    return %c0_i32, %c0_i32_0, %c0_i32_1 : i32, i32, i32
  }
  func.func @transform_12(%arg0: i32) -> (i32, i32) {
    %c0_i32 = arith.constant 0 : i32
    %c0_i32_0 = arith.constant 0 : i32
    %c0_i32_1 = arith.constant 0 : i32
    return %c0_i32, %c0_i32_0 : i32, i32
  }
  func.func @transform_13(%arg0: i32) -> (i32, i32) {
    %c0_i32 = arith.constant 0 : i32
    %c0_i32_0 = arith.constant 0 : i32
    %c0_i32_1 = arith.constant 0 : i32
    return %c0_i32, %c0_i32_0 : i32, i32
  }
  func.func @transform_14(%arg0: i32) -> (i32, i32) {
    %c0_i32 = arith.constant 0 : i32
    %c0_i32_0 = arith.constant 0 : i32
    %c0_i32_1 = arith.constant 0 : i32
    return %c0_i32, %c0_i32_0 : i32, i32
  }
  func.func @transform_15(%arg0: i32) -> (i32, i32) {
    %c0_i32 = arith.constant 0 : i32
    %c0_i32_0 = arith.constant 0 : i32
    %c0_i32_1 = arith.constant 0 : i32
    return %c0_i32, %c0_i32_0 : i32, i32
  }
  func.func @transform_16(%arg0: i32) -> (i32, i32, i32) {
    %c0_i32 = arith.constant 0 : i32
    %c0_i32_0 = arith.constant 0 : i32
    %c0_i32_1 = arith.constant 0 : i32
    return %arg0, %c0_i32, %c0_i32_0 : i32, i32, i32
  }
}

</mosaic_0001>

<llo_original>
// kernel: segmentation_head_forward.1
$region0: #{segmentation_head_forward.1}
  #allocation0 [shape = 'u32[]', space=smem, size = 0x4, offset = 0x4, fixed_abs, tag = 'smem constant byte address 0x4 - core index']
  #allocation1 [shape = 'u32[144,128]{1,0:T(1,128)}', space=vmem, size = 0x12000, scoped, tag = 'internal scratch']
  %s0 = inlined_call_operand.vmem [shape: f32[2,8,128], index: 0, kind: input, shape index: {}]
  %s1 = inlined_call_operand.vmem [shape: f32[3,8,8], index: 1, kind: input, shape index: {}]
  %s2 = inlined_call_operand.hbm [shape: bf16[3,128,64], index: 2, kind: input, shape index: {}]
  %s3 = inlined_call_operand.vmem [shape: f32[1,64], index: 3, kind: input, shape index: {}]
  %s4 = inlined_call_operand.hbm [shape: f32[3,16,8], index: 4, kind: input, shape index: {}]
  %s5 = inlined_call_operand.hbm [shape: bf16[3,128,64], index: 5, kind: input, shape index: {}]
  %s6 = inlined_call_operand.vmem [shape: f32[1,64], index: 6, kind: input, shape index: {}]
  %s7 = inlined_call_operand.hbm [shape: f32[3,32,16], index: 7, kind: input, shape index: {}]
  %s8 = inlined_call_operand.vmem [shape: bf16[3,128,64], index: 8, kind: input, shape index: {}]
  %s9 = inlined_call_operand.vmem [shape: f32[1,64], index: 9, kind: input, shape index: {}]
  %s10 = inlined_call_operand.hbm [shape: f32[3,64,32], index: 10, kind: input, shape index: {}]
  %s11 = inlined_call_operand.vmem [shape: bf16[3,128,128], index: 11, kind: input, shape index: {}]
  %s12 = inlined_call_operand.vmem [shape: f32[1,128], index: 12, kind: input, shape index: {}]
  %s13 = inlined_call_operand.hbm [shape: f32[64,128], index: 13, kind: input, shape index: {}]
  %s14 = inlined_call_operand.hbm [shape: f32[64,128], index: 14, kind: input, shape index: {}]
  %s15 = inlined_call_operand.hbm [shape: f32[64,128], index: 15, kind: input, shape index: {}]
  %s16 = inlined_call_operand.vmem [shape: f32[2,64,128], index: 16, kind: output, shape index: {}]
  %s17 = sld [smem:[#allocation0]]
  $region129: #{segmentation_head_forward.1} parent=0
    _
  %s19 = ssub.s32 1, %s17
  %s20 = scalar_select 0, %s19, %s17
  $region1: #{segmentation_head_forward.1} parent=0
    #allocation2 [shape = 'u8[98304]{0}', space=vmem, size = 0x18000, scoped, tag = 'input window, operand 2, single buffered']
    #allocation3 [shape = 's32[2]{0}', space=sflag, size = 0x8, scoped, tag = 'scoped memory for segmentation_head_forward.1']
    #allocation4 [shape = 'u8[24576]{0}', space=vmem, size = 0x6000, scoped, tag = 'input window, operand 4, single buffered']
    #allocation5 [shape = 's32[1]{0}', space=sflag, size = 0x4, scoped, tag = 'scoped memory for segmentation_head_forward.1']
    #allocation6 [shape = 'u8[98304]{0}', space=vmem, size = 0x18000, scoped, tag = 'input window, operand 5, single buffered']
    #allocation7 [shape = 'u8[49152]{0}', space=vmem, size = 0xc000, scoped, tag = 'input window, operand 7, single buffered']
    #allocation8 [shape = 's32[1]{0}', space=sflag, size = 0x4, scoped, tag = 'scoped memory for segmentation_head_forward.1']
    #allocation9 [shape = 'u8[98304]{0}', space=vmem, size = 0x18000, scoped, tag = 'input window, operand 10, single buffered']
    #allocation10 [shape = 'u8[32768]{0}', space=vmem, size = 0x8000, scoped, tag = 'input window, operand 13, single buffered']
    #allocation11 [shape = 's32[1]{0}', space=sflag, size = 0x4, scoped, tag = 'scoped memory for segmentation_head_forward.1']
    #allocation12 [shape = 'u8[32768]{0}', space=vmem, size = 0x8000, scoped, tag = 'input window, operand 14, single buffered']
    #allocation13 [shape = 'u8[32768]{0}', space=vmem, size = 0x8000, scoped, tag = 'input window, operand 15, single buffered']
    #allocation14 [shape = 's32[1]{0}', space=sflag, size = 0x4, scoped, tag = 'scoped memory for segmentation_head_forward.1']
    %21 = vsyncpa [#allocation3], 0
    %22 = vsyncpa [#allocation5], 0
    %23 = vsyncpa [#allocation8], 0
    %24 = vsyncpa [#allocation11], 0
    %25 = vsyncpa [#allocation14], 0
    loop: start=0, step=1, limit=4
    $region2: #{segmentation_head_forward.1} parent=1 // loop_pre_header
      _
    $region3: #{segmentation_head_forward.1} parent=1 // loop_header
      %s27 = sphi 0, %s31
      %p28 = scmp.ge.s32.totalorder %s27, 4
      %s37 = sphi 0, %s39
      %s40 = sphi 0, %s37
      %s41 = sphi 0, %s40
      %s57 = sphi 0, %s41
      %s61 = sphi 0, %s61
      %s63 = sphi 0, %s61
      %s64 = sphi 0, %s63
      %s78 = sphi 0, %s64
      %s82 = sphi 0, %s82
      %s84 = sphi 0, %s82
      %s85 = sphi 0, %s84
      %s99 = sphi 0, %s85
      %s103 = sphi 0, %s103
      %s105 = sphi 0, %s103
      %s106 = sphi 0, %s105
      %s120 = sphi 0, %s106
      %s124 = sphi 0, %s124
      %s126 = sphi 0, %s124
      %s127 = sphi 0, %s126
      %s141 = sphi 0, %s127
      %s145 = sphi 0, %s145
      %s147 = sphi 0, %s145
      %s148 = sphi 0, %s147
      %s162 = sphi 0, %s148
      %s166 = sphi 0, %s166
      %s168 = sphi 0, %s166
      %s169 = sphi 0, %s168
      %s183 = sphi 0, %s169
      %s187 = sphi 0, %s187
      %s189 = sphi 0, %s187
      %s190 = sphi 0, %s189
      %s204 = sphi 0, %s190
      %s208 = sphi 0, %s208
      %s210 = sphi 0, %s208
      %s211 = sphi 0, %s210
      %s225 = sphi 0, %s211
      %s229 = sphi 0, %s229
      %s231 = sphi 0, %s229
      %s232 = sphi 0, %s231
      %s246 = sphi 0, %s232
      %s250 = sphi 0, %s250
      %s252 = sphi 0, %s250
      %s253 = sphi 0, %s252
      %s267 = sphi 0, %s253
      %s271 = sphi 0, %s271
      %s273 = sphi 0, %s271
      %s274 = sphi 0, %s273
      %s288 = sphi 0, %s274
      %s292 = sphi 0, %s292
      %s294 = sphi 0, %s292
      %s295 = sphi 0, %s294
      %s309 = sphi 0, %s295
      %s313 = sphi 0, %s313
      %s315 = sphi 0, %s313
      %s316 = sphi 0, %s315
      %s330 = sphi 0, %s316
      %s334 = sphi 0, %s334
      %s336 = sphi 0, %s334
      %s337 = sphi 0, %s336
      %s351 = sphi 0, %s337
      %s355 = sphi 0, %s355
      %s357 = sphi 0, %s355
      %s358 = sphi 0, %s357
      %s372 = sphi 0, %s358
      %s378 = sphi 0, %s380
      %s381 = sphi 0, %s378
      %s382 = sphi 0, %s381
      %s398 = sphi 0, %s382
    $region4: #{segmentation_head_forward.1} parent=1 // loop_header_branch
      %30 = sbr.rel (%p28) target = $region8
    $region5: #{segmentation_head_forward.1} parent=1 // loop_body
      %s32 = ssub.s32 %s27, 1
      %s33 = ssub.s32 %s27, 2
      %s34 = sadd.s32 %s27, 1
      %s35 = ssub.s32 %s27, %s34
      %p36 = scmp.eq.s32.totalorder %s35, 0
      %s38 = sadd.s32 %s37, 1
      %s39 = scalar_select %p36, %s37, %s38
      %p42 = pneg %p36
      %p43 = scmp.eq.s32.totalorder %s27, 1
      %p44 = por %p42, %p43
      %p45 = scmp.ne.s32.totalorder %s37, %s40
      %p46 = scmp.eq.s32.totalorder %s27, 0
      %p47 = por %p45, %p46
      %p48 = scmp.ne.s32.totalorder %s37, %s40
      %p49 = scmp.eq.s32.totalorder %s32, 1
      %p50 = por %p48, %p49
      %p51 = scmp.ne.s32.totalorder %s40, %s41
      %p52 = scmp.eq.s32.totalorder %s32, 0
      %p53 = por %p51, %p52
      %p54 = scmp.ne.s32.totalorder %s40, %s41
      %p55 = scmp.eq.s32.totalorder %s33, 1
      %p56 = por %p54, %p55
      %p58 = scmp.ne.s32.totalorder %s41, %s57
      %p59 = scmp.eq.s32.totalorder %s33, 0
      %p60 = por %p58, %p59
      %s62 = sadd.s32 %s61, 1
      %p65 = scmp.eq.s32.totalorder %s27, 1
      %p66 = scmp.ne.s32.totalorder %s61, %s63
      %p67 = scmp.eq.s32.totalorder %s27, 0
      %p68 = por %p66, %p67
      %p69 = scmp.ne.s32.totalorder %s61, %s63
      %p70 = scmp.eq.s32.totalorder %s32, 1
      %p71 = por %p69, %p70
      %p72 = scmp.ne.s32.totalorder %s63, %s64
      %p73 = scmp.eq.s32.totalorder %s32, 0
      %p74 = por %p72, %p73
      %p75 = scmp.ne.s32.totalorder %s63, %s64
      %p76 = scmp.eq.s32.totalorder %s33, 1
      %p77 = por %p75, %p76
      %p79 = scmp.ne.s32.totalorder %s64, %s78
      %p80 = scmp.eq.s32.totalorder %s33, 0
      %p81 = por %p79, %p80
      %s83 = sadd.s32 %s82, 1
      %p86 = scmp.eq.s32.totalorder %s27, 1
      %p87 = scmp.ne.s32.totalorder %s82, %s84
      %p88 = scmp.eq.s32.totalorder %s27, 0
      %p89 = por %p87, %p88
      %p90 = scmp.ne.s32.totalorder %s82, %s84
      %p91 = scmp.eq.s32.totalorder %s32, 1
      %p92 = por %p90, %p91
      %p93 = scmp.ne.s32.totalorder %s84, %s85
      %p94 = scmp.eq.s32.totalorder %s32, 0
      %p95 = por %p93, %p94
      %p96 = scmp.ne.s32.totalorder %s84, %s85
      %p97 = scmp.eq.s32.totalorder %s33, 1
      %p98 = por %p96, %p97
      %p100 = scmp.ne.s32.totalorder %s85, %s99
      %p101 = scmp.eq.s32.totalorder %s33, 0
      %p102 = por %p100, %p101
      %s104 = sadd.s32 %s103, 1
      %p107 = scmp.eq.s32.totalorder %s27, 1
      %p108 = scmp.ne.s32.totalorder %s103, %s105
      %p109 = scmp.eq.s32.totalorder %s27, 0
      %p110 = por %p108, %p109
      %p111 = scmp.ne.s32.totalorder %s103, %s105
      %p112 = scmp.eq.s32.totalorder %s32, 1
      %p113 = por %p111, %p112
      %p114 = scmp.ne.s32.totalorder %s105, %s106
      %p115 = scmp.eq.s32.totalorder %s32, 0
      %p116 = por %p114, %p115
      %p117 = scmp.ne.s32.totalorder %s105, %s106
      %p118 = scmp.eq.s32.totalorder %s33, 1
      %p119 = por %p117, %p118
      %p121 = scmp.ne.s32.totalorder %s106, %s120
      %p122 = scmp.eq.s32.totalorder %s33, 0
      %p123 = por %p121, %p122
      %s125 = sadd.s32 %s124, 1
      %p128 = scmp.eq.s32.totalorder %s27, 1
      %p129 = scmp.ne.s32.totalorder %s124, %s126
      %p130 = scmp.eq.s32.totalorder %s27, 0
      %p131 = por %p129, %p130
      %p132 = scmp.ne.s32.totalorder %s124, %s126
      %p133 = scmp.eq.s32.totalorder %s32, 1
      %p134 = por %p132, %p133
      %p135 = scmp.ne.s32.totalorder %s126, %s127
      %p136 = scmp.eq.s32.totalorder %s32, 0
      %p137 = por %p135, %p136
      %p138 = scmp.ne.s32.totalorder %s126, %s127
      %p139 = scmp.eq.s32.totalorder %s33, 1
      %p140 = por %p138, %p139
      %p142 = scmp.ne.s32.totalorder %s127, %s141
      %p143 = scmp.eq.s32.totalorder %s33, 0
      %p144 = por %p142, %p143
      %s146 = sadd.s32 %s145, 1
      %p149 = scmp.eq.s32.totalorder %s27, 1
      %p150 = scmp.ne.s32.totalorder %s145, %s147
      %p151 = scmp.eq.s32.totalorder %s27, 0
      %p152 = por %p150, %p151
      %p153 = scmp.ne.s32.totalorder %s145, %s147
      %p154 = scmp.eq.s32.totalorder %s32, 1
      %p155 = por %p153, %p154
      %p156 = scmp.ne.s32.totalorder %s147, %s148
      %p157 = scmp.eq.s32.totalorder %s32, 0
      %p158 = por %p156, %p157
      %p159 = scmp.ne.s32.totalorder %s147, %s148
      %p160 = scmp.eq.s32.totalorder %s33, 1
      %p161 = por %p159, %p160
      %p163 = scmp.ne.s32.totalorder %s148, %s162
      %p164 = scmp.eq.s32.totalorder %s33, 0
      %p165 = por %p163, %p164
      %s167 = sadd.s32 %s166, 1
      %p170 = scmp.eq.s32.totalorder %s27, 1
      %p171 = scmp.ne.s32.totalorder %s166, %s168
      %p172 = scmp.eq.s32.totalorder %s27, 0
      %p173 = por %p171, %p172
      %p174 = scmp.ne.s32.totalorder %s166, %s168
      %p175 = scmp.eq.s32.totalorder %s32, 1
      %p176 = por %p174, %p175
      %p177 = scmp.ne.s32.totalorder %s168, %s169
      %p178 = scmp.eq.s32.totalorder %s32, 0
      %p179 = por %p177, %p178
      %p180 = scmp.ne.s32.totalorder %s168, %s169
      %p181 = scmp.eq.s32.totalorder %s33, 1
      %p182 = por %p180, %p181
      %p184 = scmp.ne.s32.totalorder %s169, %s183
      %p185 = scmp.eq.s32.totalorder %s33, 0
      %p186 = por %p184, %p185
      %s188 = sadd.s32 %s187, 1
      %p191 = scmp.eq.s32.totalorder %s27, 1
      %p192 = scmp.ne.s32.totalorder %s187, %s189
      %p193 = scmp.eq.s32.totalorder %s27, 0
      %p194 = por %p192, %p193
      %p195 = scmp.ne.s32.totalorder %s187, %s189
      %p196 = scmp.eq.s32.totalorder %s32, 1
      %p197 = por %p195, %p196
      %p198 = scmp.ne.s32.totalorder %s189, %s190
      %p199 = scmp.eq.s32.totalorder %s32, 0
      %p200 = por %p198, %p199
      %p201 = scmp.ne.s32.totalorder %s189, %s190
      %p202 = scmp.eq.s32.totalorder %s33, 1
      %p203 = por %p201, %p202
      %p205 = scmp.ne.s32.totalorder %s190, %s204
      %p206 = scmp.eq.s32.totalorder %s33, 0
      %p207 = por %p205, %p206
      %s209 = sadd.s32 %s208, 1
      %p212 = scmp.eq.s32.totalorder %s27, 1
      %p213 = scmp.ne.s32.totalorder %s208, %s210
      %p214 = scmp.eq.s32.totalorder %s27, 0
      %p215 = por %p213, %p214
      %p216 = scmp.ne.s32.totalorder %s208, %s210
      %p217 = scmp.eq.s32.totalorder %s32, 1
      %p218 = por %p216, %p217
      %p219 = scmp.ne.s32.totalorder %s210, %s211
      %p220 = scmp.eq.s32.totalorder %s32, 0
      %p221 = por %p219, %p220
      %p222 = scmp.ne.s32.totalorder %s210, %s211
      %p223 = scmp.eq.s32.totalorder %s33, 1
      %p224 = por %p222, %p223
      %p226 = scmp.ne.s32.totalorder %s211, %s225
      %p227 = scmp.eq.s32.totalorder %s33, 0
      %p228 = por %p226, %p227
      %s230 = sadd.s32 %s229, 1
      %p233 = scmp.eq.s32.totalorder %s27, 1
      %p234 = scmp.ne.s32.totalorder %s229, %s231
      %p235 = scmp.eq.s32.totalorder %s27, 0
      %p236 = por %p234, %p235
      %p237 = scmp.ne.s32.totalorder %s229, %s231
      %p238 = scmp.eq.s32.totalorder %s32, 1
      %p239 = por %p237, %p238
      %p240 = scmp.ne.s32.totalorder %s231, %s232
      %p241 = scmp.eq.s32.totalorder %s32, 0
      %p242 = por %p240, %p241
      %p243 = scmp.ne.s32.totalorder %s231, %s232
      %p244 = scmp.eq.s32.totalorder %s33, 1
      %p245 = por %p243, %p244
      %p247 = scmp.ne.s32.totalorder %s232, %s246
      %p248 = scmp.eq.s32.totalorder %s33, 0
      %p249 = por %p247, %p248
      %s251 = sadd.s32 %s250, 1
      %p254 = scmp.eq.s32.totalorder %s27, 1
      %p255 = scmp.ne.s32.totalorder %s250, %s252
      %p256 = scmp.eq.s32.totalorder %s27, 0
      %p257 = por %p255, %p256
      %p258 = scmp.ne.s32.totalorder %s250, %s252
      %p259 = scmp.eq.s32.totalorder %s32, 1
      %p260 = por %p258, %p259
      %p261 = scmp.ne.s32.totalorder %s252, %s253
      %p262 = scmp.eq.s32.totalorder %s32, 0
      %p263 = por %p261, %p262
      %p264 = scmp.ne.s32.totalorder %s252, %s253
      %p265 = scmp.eq.s32.totalorder %s33, 1
      %p266 = por %p264, %p265
      %p268 = scmp.ne.s32.totalorder %s253, %s267
      %p269 = scmp.eq.s32.totalorder %s33, 0
      %p270 = por %p268, %p269
      %s272 = sadd.s32 %s271, 1
      %p275 = scmp.eq.s32.totalorder %s27, 1
      %p276 = scmp.ne.s32.totalorder %s271, %s273
      %p277 = scmp.eq.s32.totalorder %s27, 0
      %p278 = por %p276, %p277
      %p279 = scmp.ne.s32.totalorder %s271, %s273
      %p280 = scmp.eq.s32.totalorder %s32, 1
      %p281 = por %p279, %p280
      %p282 = scmp.ne.s32.totalorder %s273, %s274
      %p283 = scmp.eq.s32.totalorder %s32, 0
      %p284 = por %p282, %p283
      %p285 = scmp.ne.s32.totalorder %s273, %s274
      %p286 = scmp.eq.s32.totalorder %s33, 1
      %p287 = por %p285, %p286
      %p289 = scmp.ne.s32.totalorder %s274, %s288
      %p290 = scmp.eq.s32.totalorder %s33, 0
      %p291 = por %p289, %p290
      %s293 = sadd.s32 %s292, 1
      %p296 = scmp.eq.s32.totalorder %s27, 1
      %p297 = scmp.ne.s32.totalorder %s292, %s294
      %p298 = scmp.eq.s32.totalorder %s27, 0
      %p299 = por %p297, %p298
      %p300 = scmp.ne.s32.totalorder %s292, %s294
      %p301 = scmp.eq.s32.totalorder %s32, 1
      %p302 = por %p300, %p301
      %p303 = scmp.ne.s32.totalorder %s294, %s295
      %p304 = scmp.eq.s32.totalorder %s32, 0
      %p305 = por %p303, %p304
      %p306 = scmp.ne.s32.totalorder %s294, %s295
      %p307 = scmp.eq.s32.totalorder %s33, 1
      %p308 = por %p306, %p307
      %p310 = scmp.ne.s32.totalorder %s295, %s309
      %p311 = scmp.eq.s32.totalorder %s33, 0
      %p312 = por %p310, %p311
      %s314 = sadd.s32 %s313, 1
      %p317 = scmp.eq.s32.totalorder %s27, 1
      %p318 = scmp.ne.s32.totalorder %s313, %s315
      %p319 = scmp.eq.s32.totalorder %s27, 0
      %p320 = por %p318, %p319
      %p321 = scmp.ne.s32.totalorder %s313, %s315
      %p322 = scmp.eq.s32.totalorder %s32, 1
      %p323 = por %p321, %p322
      %p324 = scmp.ne.s32.totalorder %s315, %s316
      %p325 = scmp.eq.s32.totalorder %s32, 0
      %p326 = por %p324, %p325
      %p327 = scmp.ne.s32.totalorder %s315, %s316
      %p328 = scmp.eq.s32.totalorder %s33, 1
      %p329 = por %p327, %p328
      %p331 = scmp.ne.s32.totalorder %s316, %s330
      %p332 = scmp.eq.s32.totalorder %s33, 0
      %p333 = por %p331, %p332
      %s335 = sadd.s32 %s334, 1
      %p338 = scmp.eq.s32.totalorder %s27, 1
      %p339 = scmp.ne.s32.totalorder %s334, %s336
      %p340 = scmp.eq.s32.totalorder %s27, 0
      %p341 = por %p339, %p340
      %p342 = scmp.ne.s32.totalorder %s334, %s336
      %p343 = scmp.eq.s32.totalorder %s32, 1
      %p344 = por %p342, %p343
      %p345 = scmp.ne.s32.totalorder %s336, %s337
      %p346 = scmp.eq.s32.totalorder %s32, 0
      %p347 = por %p345, %p346
      %p348 = scmp.ne.s32.totalorder %s336, %s337
      %p349 = scmp.eq.s32.totalorder %s33, 1
      %p350 = por %p348, %p349
      %p352 = scmp.ne.s32.totalorder %s337, %s351
      %p353 = scmp.eq.s32.totalorder %s33, 0
      %p354 = por %p352, %p353
      %s356 = sadd.s32 %s355, 1
      %p359 = scmp.eq.s32.totalorder %s27, 1
      %p360 = scmp.ne.s32.totalorder %s355, %s357
      %p361 = scmp.eq.s32.totalorder %s27, 0
      %p362 = por %p360, %p361
      %p363 = scmp.ne.s32.totalorder %s355, %s357
      %p364 = scmp.eq.s32.totalorder %s32, 1
      %p365 = por %p363, %p364
      %p366 = scmp.ne.s32.totalorder %s357, %s358
      %p367 = scmp.eq.s32.totalorder %s32, 0
      %p368 = por %p366, %p367
      %p369 = scmp.ne.s32.totalorder %s357, %s358
      %p370 = scmp.eq.s32.totalorder %s33, 1
      %p371 = por %p369, %p370
      %p373 = scmp.ne.s32.totalorder %s358, %s372
      %p374 = scmp.eq.s32.totalorder %s33, 0
      %p375 = por %p373, %p374
      %s376 = ssub.s32 %s27, %s34
      %p377 = scmp.eq.s32.totalorder %s376, 0
      %s379 = sadd.s32 %s378, 1
      %s380 = scalar_select %p377, %s378, %s379
      %p383 = pneg %p377
      %p384 = scmp.eq.s32.totalorder %s27, 1
      %p385 = por %p383, %p384
      %p386 = scmp.ne.s32.totalorder %s378, %s381
      %p387 = scmp.eq.s32.totalorder %s27, 0
      %p388 = por %p386, %p387
      %p389 = scmp.ne.s32.totalorder %s378, %s381
      %p390 = scmp.eq.s32.totalorder %s32, 1
      %p391 = por %p389, %p390
      %p392 = scmp.ne.s32.totalorder %s381, %s382
      %p393 = scmp.eq.s32.totalorder %s32, 0
      %p394 = por %p392, %p393
      %p395 = scmp.ne.s32.totalorder %s381, %s382
      %p396 = scmp.eq.s32.totalorder %s33, 1
      %p397 = por %p395, %p396
      %p399 = scmp.ne.s32.totalorder %s382, %s398
      %p400 = scmp.eq.s32.totalorder %s33, 0
      %p401 = por %p399, %p400
      %p402 = scmp.le.s32.totalorder 1, %s27
      %p403 = scmp.lt.s32.totalorder %s27, 3
      %p404 = pnand %p402, %p403
      %p405 = pneg %p404
      // Predicated region
      $region9: #{segmentation_head_forward.1} parent=5 // pred_check
        _
      $region10: #{segmentation_head_forward.1} parent=5 // pred_check_branch
        %407 = sbr.rel (%p404) target = $region12
      $region11: #{segmentation_head_forward.1} parent=5 // pred_region
        %s408 = ssub.s32 %s27, 1
        // Predicated region
        $region13: #{segmentation_head_forward.1} parent=11 // pred_check
          %p409 = pneg %p74
        $region14: #{segmentation_head_forward.1} parent=11 // pred_check_branch
          %411 = sbr.rel (%p409) target = $region16
        $region15: #{segmentation_head_forward.1} parent=11 // pred_region
          _
        $region16: #{segmentation_head_forward.1} parent=11 // pred_fallthru
          _
        // Predicated region
        $region17: #{segmentation_head_forward.1} parent=11 // pred_check
          %p412 = pneg %p95
        $region18: #{segmentation_head_forward.1} parent=11 // pred_check_branch
          %414 = sbr.rel (%p412) target = $region20
        $region19: #{segmentation_head_forward.1} parent=11 // pred_region
          %s416 = ssub.s32 3072, 3072
          %417 = vsyncadd [#allocation3], %s416
          %s418 = sshll.u32 [#allocation2], 4
          %s419 = int_to_ptr.vmem [resolvable:$true] %s418
          %424 = dma.hbm_to_vmem [thread:$0]  %s2, 3072, %s419, [#allocation3], 64, 64, 4
        $region20: #{segmentation_head_forward.1} parent=11 // pred_fallthru
          _
        // Predicated region
        $region21: #{segmentation_head_forward.1} parent=11 // pred_check
          %p425 = pneg %p116
        $region22: #{segmentation_head_forward.1} parent=11 // pred_check_branch
          %427 = sbr.rel (%p425) target = $region24
        $region23: #{segmentation_head_forward.1} parent=11 // pred_region
          _
        $region24: #{segmentation_head_forward.1} parent=11 // pred_fallthru
          _
        // Predicated region
        $region25: #{segmentation_head_forward.1} parent=11 // pred_check
          %p428 = pneg %p137
        $region26: #{segmentation_head_forward.1} parent=11 // pred_check_branch
          %430 = sbr.rel (%p428) target = $region28
        $region27: #{segmentation_head_forward.1} parent=11 // pred_region
          %s432 = ssub.s32 768, 768
          %433 = vsyncadd [#allocation5], %s432
          %s434 = sshll.u32 [#allocation4], 4
          %s435 = int_to_ptr.vmem [resolvable:$true] %s434
          %440 = dma.hbm_to_vmem [thread:$0]  %s4, 768, %s435, [#allocation5], 128, 128, 8
        $region28: #{segmentation_head_forward.1} parent=11 // pred_fallthru
          _
        // Predicated region
        $region29: #{segmentation_head_forward.1} parent=11 // pred_check
          %p441 = pneg %p158
        $region30: #{segmentation_head_forward.1} parent=11 // pred_check_branch
          %443 = sbr.rel (%p441) target = $region32
        $region31: #{segmentation_head_forward.1} parent=11 // pred_region
          %s445 = ssub.s32 3072, 3072
          %446 = vsyncadd [#allocation5], %s445
          %s447 = sshll.u32 [#allocation6], 4
          %s448 = int_to_ptr.vmem [resolvable:$true] %s447
          %453 = dma.hbm_to_vmem [thread:$0]  %s5, 3072, %s448, [#allocation5], 64, 64, 4
        $region32: #{segmentation_head_forward.1} parent=11 // pred_fallthru
          _
        // Predicated region
        $region33: #{segmentation_head_forward.1} parent=11 // pred_check
          %p454 = pneg %p179
        $region34: #{segmentation_head_forward.1} parent=11 // pred_check_branch
          %456 = sbr.rel (%p454) target = $region36
        $region35: #{segmentation_head_forward.1} parent=11 // pred_region
          _
        $region36: #{segmentation_head_forward.1} parent=11 // pred_fallthru
          _
        // Predicated region
        $region37: #{segmentation_head_forward.1} parent=11 // pred_check
          %p457 = pneg %p200
        $region38: #{segmentation_head_forward.1} parent=11 // pred_check_branch
          %459 = sbr.rel (%p457) target = $region40
        $region39: #{segmentation_head_forward.1} parent=11 // pred_region
          %s461 = ssub.s32 1536, 1536
          %462 = vsyncadd [#allocation8], %s461
          %s463 = sshll.u32 [#allocation7], 4
          %s464 = int_to_ptr.vmem [resolvable:$true] %s463
          %469 = dma.hbm_to_vmem [thread:$0]  %s7, 1536, %s464, [#allocation8], 128, 128, 8
        $region40: #{segmentation_head_forward.1} parent=11 // pred_fallthru
          _
        // Predicated region
        $region41: #{segmentation_head_forward.1} parent=11 // pred_check
          %p470 = pneg %p221
        $region42: #{segmentation_head_forward.1} parent=11 // pred_check_branch
          %472 = sbr.rel (%p470) target = $region44
        $region43: #{segmentation_head_forward.1} parent=11 // pred_region
          _
        $region44: #{segmentation_head_forward.1} parent=11 // pred_fallthru
          _
        // Predicated region
        $region45: #{segmentation_head_forward.1} parent=11 // pred_check
          %p473 = pneg %p242
        $region46: #{segmentation_head_forward.1} parent=11 // pred_check_branch
          %475 = sbr.rel (%p473) target = $region48
        $region47: #{segmentation_head_forward.1} parent=11 // pred_region
          _
        $region48: #{segmentation_head_forward.1} parent=11 // pred_fallthru
          _
        // Predicated region
        $region49: #{segmentation_head_forward.1} parent=11 // pred_check
          %p476 = pneg %p263
        $region50: #{segmentation_head_forward.1} parent=11 // pred_check_branch
          %478 = sbr.rel (%p476) target = $region52
        $region51: #{segmentation_head_forward.1} parent=11 // pred_region
          %s480 = ssub.s32 3072, 3072
          %481 = vsyncadd [#allocation8], %s480
          %s482 = sshll.u32 [#allocation9], 4
          %s483 = int_to_ptr.vmem [resolvable:$true] %s482
          %488 = dma.hbm_to_vmem [thread:$0]  %s10, 3072, %s483, [#allocation8], 128, 128, 8
        $region52: #{segmentation_head_forward.1} parent=11 // pred_fallthru
          _
        // Predicated region
        $region53: #{segmentation_head_forward.1} parent=11 // pred_check
          %p489 = pneg %p284
        $region54: #{segmentation_head_forward.1} parent=11 // pred_check_branch
          %491 = sbr.rel (%p489) target = $region56
        $region55: #{segmentation_head_forward.1} parent=11 // pred_region
          _
        $region56: #{segmentation_head_forward.1} parent=11 // pred_fallthru
          _
        // Predicated region
        $region57: #{segmentation_head_forward.1} parent=11 // pred_check
          %p492 = pneg %p305
        $region58: #{segmentation_head_forward.1} parent=11 // pred_check_branch
          %494 = sbr.rel (%p492) target = $region60
        $region59: #{segmentation_head_forward.1} parent=11 // pred_region
          _
        $region60: #{segmentation_head_forward.1} parent=11 // pred_fallthru
          _
        // Predicated region
        $region61: #{segmentation_head_forward.1} parent=11 // pred_check
          %p495 = pneg %p326
        $region62: #{segmentation_head_forward.1} parent=11 // pred_check_branch
          %497 = sbr.rel (%p495) target = $region64
        $region63: #{segmentation_head_forward.1} parent=11 // pred_region
          %s499 = ssub.s32 1024, 1024
          %500 = vsyncadd [#allocation11], %s499
          %s501 = sshll.u32 [#allocation10], 4
          %s502 = int_to_ptr.vmem [resolvable:$true] %s501
          %507 = dma.hbm_to_vmem [thread:$0]  %s13, 1024, %s502, [#allocation11], 128, 128, 8
        $region64: #{segmentation_head_forward.1} parent=11 // pred_fallthru
          _
        // Predicated region
        $region65: #{segmentation_head_forward.1} parent=11 // pred_check
          %p508 = pneg %p347
        $region66: #{segmentation_head_forward.1} parent=11 // pred_check_branch
          %510 = sbr.rel (%p508) target = $region68
        $region67: #{segmentation_head_forward.1} parent=11 // pred_region
          %s512 = ssub.s32 1024, 1024
          %513 = vsyncadd [#allocation11], %s512
          %s514 = sshll.u32 [#allocation12], 4
          %s515 = int_to_ptr.vmem [resolvable:$true] %s514
          %520 = dma.hbm_to_vmem [thread:$0]  %s14, 1024, %s515, [#allocation11], 128, 128, 8
        $region68: #{segmentation_head_forward.1} parent=11 // pred_fallthru
          _
        // Predicated region
        $region69: #{segmentation_head_forward.1} parent=11 // pred_check
          %p521 = pneg %p368
        $region70: #{segmentation_head_forward.1} parent=11 // pred_check_branch
          %523 = sbr.rel (%p521) target = $region72
        $region71: #{segmentation_head_forward.1} parent=11 // pred_region
          %s525 = ssub.s32 1024, 1024
          %526 = vsyncadd [#allocation14], %s525
          %s527 = sshll.u32 [#allocation13], 4
          %s528 = int_to_ptr.vmem [resolvable:$true] %s527
          %533 = dma.hbm_to_vmem [thread:$0]  %s15, 1024, %s528, [#allocation14], 128, 128, 8
        $region72: #{segmentation_head_forward.1} parent=11 // pred_fallthru
          _
      $region12: #{segmentation_head_forward.1} parent=5 // pred_fallthru
        _
      %p534 = scmp.lt.s32.totalorder %s27, 2
      // Predicated region
      $region73: #{segmentation_head_forward.1} parent=5 // pred_check
        %p535 = pneg %p534
      $region74: #{segmentation_head_forward.1} parent=5 // pred_check_branch
        %537 = sbr.rel (%p535) target = $region76
      $region75: #{segmentation_head_forward.1} parent=5 // pred_region
        // Predicated region
        $region77: #{segmentation_head_forward.1} parent=75 // pred_check
          %p538 = pneg %p47
        $region78: #{segmentation_head_forward.1} parent=75 // pred_check_branch
          %540 = sbr.rel (%p538) target = $region80
        $region79: #{segmentation_head_forward.1} parent=75 // pred_region
          %p541 = scmp.lt.s32.totalorder %s27, 1
          %s542 = scalar_select %p541, %s27, 1
          %s543 = smul.addr %s542, 8
          %s544 = scalar_lea.vmem %s0, %s543
        $region80: #{segmentation_head_forward.1} parent=75 // pred_fallthru
          _
      $region76: #{segmentation_head_forward.1} parent=5 // pred_fallthru
        _
      %p545 = scmp.le.s32.totalorder 1, %s27
      %p546 = scmp.lt.s32.totalorder %s27, 3
      %p547 = pnand %p545, %p546
      %p548 = pneg %p547
      // Predicated region
      $region81: #{segmentation_head_forward.1} parent=5 // pred_check
        _
      $region82: #{segmentation_head_forward.1} parent=5 // pred_check_branch
        %550 = sbr.rel (%p547) target = $region84
      $region83: #{segmentation_head_forward.1} parent=5 // pred_region
        %s551 = ssub.s32 %s27, 1
        // Predicated region
        $region85: #{segmentation_head_forward.1} parent=83 // pred_check
          %p552 = pneg %p95
        $region86: #{segmentation_head_forward.1} parent=83 // pred_check_branch
          %554 = sbr.rel (%p552) target = $region88
        $region87: #{segmentation_head_forward.1} parent=83 // pred_region
          %555 = dma.done [#allocation3], 3072
        $region88: #{segmentation_head_forward.1} parent=83 // pred_fallthru
          _
        // Predicated region
        $region89: #{segmentation_head_forward.1} parent=83 // pred_check
          %p556 = pneg %p137
        $region90: #{segmentation_head_forward.1} parent=83 // pred_check_branch
          %558 = sbr.rel (%p556) target = $region92
        $region91: #{segmentation_head_forward.1} parent=83 // pred_region
          %559 = dma.done [#allocation5], 768
        $region92: #{segmentation_head_forward.1} parent=83 // pred_fallthru
          _
        // Predicated region
        $region93: #{segmentation_head_forward.1} parent=83 // pred_check
          %p560 = pneg %p158
        $region94: #{segmentation_head_forward.1} parent=83 // pred_check_branch
          %562 = sbr.rel (%p560) target = $region96
        $region95: #{segmentation_head_forward.1} parent=83 // pred_region
          %563 = dma.done [#allocation5], 3072
        $region96: #{segmentation_head_forward.1} parent=83 // pred_fallthru
          _
        // Predicated region
        $region97: #{segmentation_head_forward.1} parent=83 // pred_check
          %p564 = pneg %p200
        $region98: #{segmentation_head_forward.1} parent=83 // pred_check_branch
          %566 = sbr.rel (%p564) target = $region100
        $region99: #{segmentation_head_forward.1} parent=83 // pred_region
          %567 = dma.done [#allocation8], 1536
        $region100: #{segmentation_head_forward.1} parent=83 // pred_fallthru
          _
        // Predicated region
        $region101: #{segmentation_head_forward.1} parent=83 // pred_check
          %p568 = pneg %p263
        $region102: #{segmentation_head_forward.1} parent=83 // pred_check_branch
          %570 = sbr.rel (%p568) target = $region104
        $region103: #{segmentation_head_forward.1} parent=83 // pred_region
          %571 = dma.done [#allocation8], 3072
        $region104: #{segmentation_head_forward.1} parent=83 // pred_fallthru
          _
        // Predicated region
        $region105: #{segmentation_head_forward.1} parent=83 // pred_check
          %p572 = pneg %p326
        $region106: #{segmentation_head_forward.1} parent=83 // pred_check_branch
          %574 = sbr.rel (%p572) target = $region108
        $region107: #{segmentation_head_forward.1} parent=83 // pred_region
          %575 = dma.done [#allocation11], 1024
        $region108: #{segmentation_head_forward.1} parent=83 // pred_fallthru
          _
        // Predicated region
        $region109: #{segmentation_head_forward.1} parent=83 // pred_check
          %p576 = pneg %p347
        $region110: #{segmentation_head_forward.1} parent=83 // pred_check_branch
          %578 = sbr.rel (%p576) target = $region112
        $region111: #{segmentation_head_forward.1} parent=83 // pred_region
          %579 = dma.done [#allocation11], 1024
        $region112: #{segmentation_head_forward.1} parent=83 // pred_fallthru
          _
        // Predicated region
        $region113: #{segmentation_head_forward.1} parent=83 // pred_check
          %p580 = pneg %p368
        $region114: #{segmentation_head_forward.1} parent=83 // pred_check_branch
          %582 = sbr.rel (%p580) target = $region116
        $region115: #{segmentation_head_forward.1} parent=83 // pred_region
          %583 = dma.done [#allocation14], 1024
        $region116: #{segmentation_head_forward.1} parent=83 // pred_fallthru
          _
        %p584 = scmp.lt.s32.totalorder %s32, 1
        %s585 = scalar_select %p584, %s32, 1
        %s586 = smul.addr %s585, 8
        %s587 = scalar_lea.vmem %s0, %s586
        %p588 = pneg %p53
        %p589 = pneg %p50
        %p590 = pneg %p74
        %p591 = pneg %p71
        %p592 = pneg %p95
        %p593 = pneg %p92
        %p594 = pneg %p116
        %p595 = pneg %p113
        %p596 = pneg %p137
        %p597 = pneg %p134
        %p598 = pneg %p158
        %p599 = pneg %p155
        %p600 = pneg %p179
        %p601 = pneg %p176
        %p602 = pneg %p200
        %p603 = pneg %p197
        %p604 = pneg %p221
        %p605 = pneg %p218
        %p606 = pneg %p242
        %p607 = pneg %p239
        %p608 = pneg %p263
        %p609 = pneg %p260
        %p610 = pneg %p284
        %p611 = pneg %p281
        %p612 = pneg %p305
        %p613 = pneg %p302
        %p614 = pneg %p326
        %p615 = pneg %p323
        %p616 = pneg %p347
        %p617 = pneg %p344
        %p618 = pneg %p368
        %p619 = pneg %p365
        %p620 = pneg %p394
        %p621 = pneg %p391
        %p622 = scmp.lt.s32.totalorder %s32, 1
        %s623 = scalar_select %p622, %s32, 1
        %s624 = smul.addr %s623, 8
        %s625 = smul.addr %s624, 8
        %s626 = scalar_lea.vmem %s16, %s625
        %p627 = scmp.lt.s32.totalorder %s32, 1
        %s628 = scalar_select %p627, %s32, 1
        %s629 = smul.addr %s628, 8
        %s630 = scalar_lea.vmem %s0, %s629
        %p631 = scmp.lt.s32.totalorder %s32, 1
        %s632 = scalar_select %p631, %s32, 1
        %s633 = smul.addr %s632, 8
        %s634 = smul.addr %s633, 8
        %s635 = scalar_lea.vmem %s16, %s634
        %v637 = vld [vmem:[%s630] sm:$0xff]
        %v638 = vld [vmem:[%s1] sm:$0xff]
        %vm639 = vcmask 64512
        %v641 = vsel %vm639, %v638, 0
        %643 = vmatprep.subr.mxu0 0.0
        %644 = vmatpush1.msra.mxu0 %v637
        %645 = vmatprep.subr.mxu0 0.0
        %646 = vmatpush1.msra.mxu0 0.0
        %647 = vmatprep.subr.mxu0 0.0
        %648 = vmatpush1.msra.mxu0 0.0
        %649 = vmatprep.subr.mxu0 0.0
        %650 = vmatpush1.msra.mxu0 0.0
        %651 = vmatprep.subr.mxu0 0.0
        %652 = vmatpush1.msra.mxu0 0.0
        %653 = vmatprep.subr.mxu0 0.0
        %654 = vmatpush1.msra.mxu0 0.0
        %655 = vmatprep.subr.mxu0 0.0
        %656 = vmatpush1.msra.mxu0 0.0
        %657 = vmatprep.subr.mxu0 0.0
        %658 = vmatpush1.msra.mxu0 0.0
        %659 = vmatprep.subr.mxu0 0.0
        %660 = vmatpush1.msra.mxu0 0.0
        %661 = vmatprep.subr.mxu0 0.0
        %662 = vmatpush1.msra.mxu0 0.0
        %663 = vmatprep.subr.mxu0 0.0
        %664 = vmatpush1.msra.mxu0 0.0
        %665 = vmatprep.subr.mxu0 0.0
        %666 = vmatpush1.msra.mxu0 0.0
        %667 = vmatprep.subr.mxu0 0.0
        %668 = vmatpush1.msra.mxu0 0.0
        %669 = vmatprep.subr.mxu0 0.0
        %670 = vmatpush1.msra.mxu0 0.0
        %671 = vmatprep.subr.mxu0 0.0
        %672 = vmatpush1.msra.mxu0 0.0
        %673 = vmatprep.subr.mxu0 0.0
        %674 = vmatpush1.msra.mxu0 0.0
        %675 = vmatprep.subr.mxu0 0.0
        %676 = vmatpush1.msra.mxu0 0.0
        %677 = vmatprep.subr.mxu0 0.0
        %678 = vmatpush1.msra.mxu0 0.0
        %679 = vmatprep.subr.mxu0 0.0
        %680 = vmatpush1.msra.mxu0 0.0
        %681 = vmatprep.subr.mxu0 0.0
        %682 = vmatpush1.msra.mxu0 0.0
        %683 = vmatprep.subr.mxu0 0.0
        %684 = vmatpush1.msra.mxu0 0.0
        %685 = vmatprep.subr.mxu0 0.0
        %686 = vmatpush1.msra.mxu0 0.0
        %687 = vmatprep.subr.mxu0 0.0
        %688 = vmatpush1.msra.mxu0 0.0
        %689 = vmatprep.subr.mxu0 0.0
        %690 = vmatpush1.msra.mxu0 0.0
        %691 = vmatprep.subr.mxu0 0.0
        %692 = vmatpush1.msra.mxu0 0.0
        %693 = vmatprep.subr.mxu0 0.0
        %694 = vmatpush1.msra.mxu0 0.0
        %695 = vmatprep.subr.mxu0 0.0
        %696 = vmatpush1.msra.mxu0 0.0
        %697 = vmatprep.subr.mxu0 0.0
        %698 = vmatpush1.msra.mxu0 0.0
        %699 = vmatprep.subr.mxu0 0.0
        %700 = vmatpush1.msra.mxu0 0.0
        %701 = vmatprep.subr.mxu0 0.0
        %702 = vmatpush1.msra.mxu0 0.0
        %703 = vmatprep.subr.mxu0 0.0
        %704 = vmatpush1.msra.mxu0 0.0
        %705 = vmatprep.subr.mxu0 0.0
        %706 = vmatpush1.msra.mxu0 0.0
        %707 = vmatprep.mubr.f32.mxu0 0.0
        %708 = vmatmul.mubr.f32.gmra.mrb[0].mxu0 %v641
        %v709 = vpop.f32.mrb[0].mxu0
        %v710 = vadd.f32 0.0, %v709
        %v711 = vpop.f32.mrb[0].mxu0
        %712 = vdwg.mxu0
        %v713 = vpack.c.bf16 %v710, %v710
        %v714 = vld [vmem:[#allocation2] sm:$0xf]
        %v715 = vld [vmem:[#allocation2 + $0x4] sm:$0xf]
        %v716 = vld [vmem:[#allocation2 + $0x8] sm:$0xf]
        %v717 = vld [vmem:[#allocation2 + $0xc] sm:$0xf]
        %v718 = vld [vmem:[#allocation2 + $0x10] sm:$0xf]
        %v719 = vld [vmem:[#allocation2 + $0x14] sm:$0xf]
        %v720 = vld [vmem:[#allocation2 + $0x18] sm:$0xf]
        %v721 = vld [vmem:[#allocation2 + $0x1c] sm:$0xf]
        %v722 = vld [vmem:[#allocation2 + $0x20] sm:$0xf]
        %v723 = vld [vmem:[#allocation2 + $0x24] sm:$0xf]
        %v724 = vld [vmem:[#allocation2 + $0x28] sm:$0xf]
        %v725 = vld [vmem:[#allocation2 + $0x2c] sm:$0xf]
        %v726 = vld [vmem:[#allocation2 + $0x30] sm:$0xf]
        %v727 = vld [vmem:[#allocation2 + $0x34] sm:$0xf]
        %v728 = vld [vmem:[#allocation2 + $0x38] sm:$0xf]
        %v729 = vld [vmem:[#allocation2 + $0x3c] sm:$0xf]
        %s730 = scalar_lea.vmem %s1, 8
        %v731 = vld [vmem:[%s730] sm:$0xff]
        %v733 = vsel %vm639, %v731, 0
        %735 = vmatprep.subr.mxu0 0.0
        %736 = vmatpush1.msra.mxu0 %v637
        %737 = vmatprep.subr.mxu0 0.0
        %738 = vmatpush1.msra.mxu0 0.0
        %739 = vmatprep.subr.mxu0 0.0
        %740 = vmatpush1.msra.mxu0 0.0
        %741 = vmatprep.subr.mxu0 0.0
        %742 = vmatpush1.msra.mxu0 0.0
        %743 = vmatprep.subr.mxu0 0.0
        %744 = vmatpush1.msra.mxu0 0.0
        %745 = vmatprep.subr.mxu0 0.0
        %746 = vmatpush1.msra.mxu0 0.0
        %747 = vmatprep.subr.mxu0 0.0
        %748 = vmatpush1.msra.mxu0 0.0
        %749 = vmatprep.subr.mxu0 0.0
        %750 = vmatpush1.msra.mxu0 0.0
        %751 = vmatprep.subr.mxu0 0.0
        %752 = vmatpush1.msra.mxu0 0.0
        %753 = vmatprep.subr.mxu0 0.0
        %754 = vmatpush1.msra.mxu0 0.0
        %755 = vmatprep.subr.mxu0 0.0
        %756 = vmatpush1.msra.mxu0 0.0
        %757 = vmatprep.subr.mxu0 0.0
        %758 = vmatpush1.msra.mxu0 0.0
        %759 = vmatprep.subr.mxu0 0.0
        %760 = vmatpush1.msra.mxu0 0.0
        %761 = vmatprep.subr.mxu0 0.0
        %762 = vmatpush1.msra.mxu0 0.0
        %763 = vmatprep.subr.mxu0 0.0
        %764 = vmatpush1.msra.mxu0 0.0
        %765 = vmatprep.subr.mxu0 0.0
        %766 = vmatpush1.msra.mxu0 0.0
        %767 = vmatprep.subr.mxu0 0.0
        %768 = vmatpush1.msra.mxu0 0.0
        %769 = vmatprep.subr.mxu0 0.0
        %770 = vmatpush1.msra.mxu0 0.0
        %771 = vmatprep.subr.mxu0 0.0
        %772 = vmatpush1.msra.mxu0 0.0
        %773 = vmatprep.subr.mxu0 0.0
        %774 = vmatpush1.msra.mxu0 0.0
        %775 = vmatprep.subr.mxu0 0.0
        %776 = vmatpush1.msra.mxu0 0.0
        %777 = vmatprep.subr.mxu0 0.0
        %778 = vmatpush1.msra.mxu0 0.0
        %779 = vmatprep.subr.mxu0 0.0
        %780 = vmatpush1.msra.mxu0 0.0
        %781 = vmatprep.subr.mxu0 0.0
        %782 = vmatpush1.msra.mxu0 0.0
        %783 = vmatprep.subr.mxu0 0.0
        %784 = vmatpush1.msra.mxu0 0.0
        %785 = vmatprep.subr.mxu0 0.0
        %786 = vmatpush1.msra.mxu0 0.0
        %787 = vmatprep.subr.mxu0 0.0
        %788 = vmatpush1.msra.mxu0 0.0
        %789 = vmatprep.subr.mxu0 0.0
        %790 = vmatpush1.msra.mxu0 0.0
        %791 = vmatprep.subr.mxu0 0.0
        %792 = vmatpush1.msra.mxu0 0.0
        %793 = vmatprep.subr.mxu0 0.0
        %794 = vmatpush1.msra.mxu0 0.0
        %795 = vmatprep.subr.mxu0 0.0
        %796 = vmatpush1.msra.mxu0 0.0
        %797 = vmatprep.subr.mxu0 0.0
        %798 = vmatpush1.msra.mxu0 0.0
        %799 = vmatprep.mubr.f32.mxu0 0.0
        %800 = vmatmul.mubr.f32.gmra.mrb[0].mxu0 %v733
        %v801 = vpop.f32.mrb[0].mxu0
        %v802 = vadd.f32 0.0, %v801
        %v803 = vpop.f32.mrb[0].mxu0
        %804 = vdwg.mxu0
        %v805 = vpack.c.bf16 %v802, %v802
        %s806 = scalar_lea.vmem [#allocation2], 64
        %v807 = vld [vmem:[%s806] sm:$0xf]
        %v808 = vld [vmem:[%s806 + $0x4] sm:$0xf]
        %v809 = vld [vmem:[%s806 + $0x8] sm:$0xf]
        %v810 = vld [vmem:[%s806 + $0xc] sm:$0xf]
        %v811 = vld [vmem:[%s806 + $0x10] sm:$0xf]
        %v812 = vld [vmem:[%s806 + $0x14] sm:$0xf]
        %v813 = vld [vmem:[%s806 + $0x18] sm:$0xf]
        %v814 = vld [vmem:[%s806 + $0x1c] sm:$0xf]
        %v815 = vld [vmem:[%s806 + $0x20] sm:$0xf]
        %v816 = vld [vmem:[%s806 + $0x24] sm:$0xf]
        %v817 = vld [vmem:[%s806 + $0x28] sm:$0xf]
        %v818 = vld [vmem:[%s806 + $0x2c] sm:$0xf]
        %v819 = vld [vmem:[%s806 + $0x30] sm:$0xf]
        %v820 = vld [vmem:[%s806 + $0x34] sm:$0xf]
        %v821 = vld [vmem:[%s806 + $0x38] sm:$0xf]
        %v822 = vld [vmem:[%s806 + $0x3c] sm:$0xf]
        %v839 = vunpack.c.l.b16 %v807
        %v840 = vunpack.c.l.b16 %v808
        %v841 = vunpack.c.l.b16 %v809
        %v842 = vunpack.c.l.b16 %v810
        %v843 = vunpack.c.l.b16 %v811
        %v844 = vunpack.c.l.b16 %v812
        %v845 = vunpack.c.l.b16 %v813
        %v846 = vunpack.c.l.b16 %v814
        %v847 = vunpack.c.l.b16 %v815
        %v848 = vunpack.c.l.b16 %v816
        %v849 = vunpack.c.l.b16 %v817
        %v850 = vunpack.c.l.b16 %v818
        %v851 = vunpack.c.l.b16 %v819
        %v852 = vunpack.c.l.b16 %v820
        %v853 = vunpack.c.l.b16 %v821
        %v854 = vunpack.c.l.b16 %v822
        %v855 = vpack.c.b16 %v840, %v839
        %v856 = vpack.c.b16 %v842, %v841
        %v857 = vpack.c.b16 %v844, %v843
        %v858 = vpack.c.b16 %v846, %v845
        %v859 = vpack.c.b16 %v848, %v847
        %v860 = vpack.c.b16 %v850, %v849
        %v861 = vpack.c.b16 %v852, %v851
        %v862 = vpack.c.b16 %v854, %v853
        %871 = vmatprep.subr.bf16.mxu0 0
        %872 = vmatpush1.bf16.msra.mxu0 %v855
        %873 = vmatprep.subr.bf16.mxu0 0
        %874 = vmatpush1.bf16.msra.mxu0 %v856
        %875 = vmatprep.subr.bf16.mxu0 0
        %876 = vmatpush1.bf16.msra.mxu0 %v857
        %877 = vmatprep.subr.bf16.mxu0 0
        %878 = vmatpush1.bf16.msra.mxu0 %v858
        %879 = vmatprep.subr.bf16.mxu0 0
        %880 = vmatpush1.bf16.msra.mxu0 %v859
        %881 = vmatprep.subr.bf16.mxu0 0
        %882 = vmatpush1.bf16.msra.mxu0 %v860
        %883 = vmatprep.subr.bf16.mxu0 0
        %884 = vmatpush1.bf16.msra.mxu0 %v861
        %885 = vmatprep.subr.bf16.mxu0 0
        %886 = vmatpush1.bf16.msra.mxu0 %v862
        %887 = vmatprep.subr.bf16.mxu0 0
        %888 = vmatpush1.bf16.msra.mxu0 0
        %889 = vmatprep.subr.bf16.mxu0 0
        %890 = vmatpush1.bf16.msra.mxu0 0
        %891 = vmatprep.subr.bf16.mxu0 0
        %892 = vmatpush1.bf16.msra.mxu0 0
        %893 = vmatprep.subr.bf16.mxu0 0
        %894 = vmatpush1.bf16.msra.mxu0 0
        %895 = vmatprep.subr.bf16.mxu0 0
        %896 = vmatpush1.bf16.msra.mxu0 0
        %897 = vmatprep.subr.bf16.mxu0 0
        %898 = vmatpush1.bf16.msra.mxu0 0
        %899 = vmatprep.subr.bf16.mxu0 0
        %900 = vmatpush1.bf16.msra.mxu0 0
        %901 = vmatprep.subr.bf16.mxu0 0
        %902 = vmatpush1.bf16.msra.mxu0 0
        %903 = vmatprep.mubr.bf16.mxu0 0
        %904 = vmatmul.mubr.bf16.gmra.mrb[0].mxu0 %v805
        %v905 = vpop.f32.mrb[0].mxu0
        %v906 = vadd.f32 0.0, %v905
        %v907 = vpop.f32.mrb[0].mxu0
        %v908 = vpop.f32.mrb[0].mxu0
        %v909 = vpop.f32.mrb[0].mxu0
        %910 = vdwg.mxu0
        %v927 = vunpack.c.l.b16 %v714
        %v928 = vunpack.c.l.b16 %v715
        %v929 = vunpack.c.l.b16 %v716
        %v930 = vunpack.c.l.b16 %v717
        %v931 = vunpack.c.l.b16 %v718
        %v932 = vunpack.c.l.b16 %v719
        %v933 = vunpack.c.l.b16 %v720
        %v934 = vunpack.c.l.b16 %v721
        %v935 = vunpack.c.l.b16 %v722
        %v936 = vunpack.c.l.b16 %v723
        %v937 = vunpack.c.l.b16 %v724
        %v938 = vunpack.c.l.b16 %v725
        %v939 = vunpack.c.l.b16 %v726
        %v940 = vunpack.c.l.b16 %v727
        %v941 = vunpack.c.l.b16 %v728
        %v942 = vunpack.c.l.b16 %v729
        %v943 = vpack.c.b16 %v928, %v927
        %v944 = vpack.c.b16 %v930, %v929
        %v945 = vpack.c.b16 %v932, %v931
        %v946 = vpack.c.b16 %v934, %v933
        %v947 = vpack.c.b16 %v936, %v935
        %v948 = vpack.c.b16 %v938, %v937
        %v949 = vpack.c.b16 %v940, %v939
        %v950 = vpack.c.b16 %v942, %v941
        %959 = vmatprep.subr.bf16.mxu0 0
        %960 = vmatpush1.bf16.msra.mxu0 %v943
        %961 = vmatprep.subr.bf16.mxu0 0
        %962 = vmatpush1.bf16.msra.mxu0 %v944
        %963 = vmatprep.subr.bf16.mxu0 0
        %964 = vmatpush1.bf16.msra.mxu0 %v945
        %965 = vmatprep.subr.bf16.mxu0 0
        %966 = vmatpush1.bf16.msra.mxu0 %v946
        %967 = vmatprep.subr.bf16.mxu0 0
        %968 = vmatpush1.bf16.msra.mxu0 %v947
        %969 = vmatprep.subr.bf16.mxu0 0
        %970 = vmatpush1.bf16.msra.mxu0 %v948
        %971 = vmatprep.subr.bf16.mxu0 0
        %972 = vmatpush1.bf16.msra.mxu0 %v949
        %973 = vmatprep.subr.bf16.mxu0 0
        %974 = vmatpush1.bf16.msra.mxu0 %v950
        %975 = vmatprep.subr.bf16.mxu0 0
        %976 = vmatpush1.bf16.msra.mxu0 0
        %977 = vmatprep.subr.bf16.mxu0 0
        %978 = vmatpush1.bf16.msra.mxu0 0
        %979 = vmatprep.subr.bf16.mxu0 0
        %980 = vmatpush1.bf16.msra.mxu0 0
        %981 = vmatprep.subr.bf16.mxu0 0
        %982 = vmatpush1.bf16.msra.mxu0 0
        %983 = vmatprep.subr.bf16.mxu0 0
        %984 = vmatpush1.bf16.msra.mxu0 0
        %985 = vmatprep.subr.bf16.mxu0 0
        %986 = vmatpush1.bf16.msra.mxu0 0
        %987 = vmatprep.subr.bf16.mxu0 0
        %988 = vmatpush1.bf16.msra.mxu0 0
        %989 = vmatprep.subr.bf16.mxu0 0
        %990 = vmatpush1.bf16.msra.mxu0 0
        %991 = vmatprep.mubr.bf16.mxu0 0
        %992 = vmatmul.mubr.bf16.gmra.mrb[0].mxu0 %v713
        %v993 = vpop.f32.mrb[0].mxu0
        %v994 = vadd.f32 %v906, %v993
        %v995 = vpop.f32.mrb[0].mxu0
        %v996 = vpop.f32.mrb[0].mxu0
        %v997 = vpop.f32.mrb[0].mxu0
        %998 = vdwg.mxu0
        %s999 = scalar_lea.vmem %s1, 16
        %v1000 = vld [vmem:[%s999] sm:$0xff]
        %v1002 = vsel %vm639, %v1000, 0
        %1004 = vmatprep.subr.mxu0 0.0
        %1005 = vmatpush1.msra.mxu0 %v637
        %1006 = vmatprep.subr.mxu0 0.0
        %1007 = vmatpush1.msra.mxu0 0.0
        %1008 = vmatprep.subr.mxu0 0.0
        %1009 = vmatpush1.msra.mxu0 0.0
        %1010 = vmatprep.subr.mxu0 0.0
        %1011 = vmatpush1.msra.mxu0 0.0
        %1012 = vmatprep.subr.mxu0 0.0
        %1013 = vmatpush1.msra.mxu0 0.0
        %1014 = vmatprep.subr.mxu0 0.0
        %1015 = vmatpush1.msra.mxu0 0.0
        %1016 = vmatprep.subr.mxu0 0.0
        %1017 = vmatpush1.msra.mxu0 0.0
        %1018 = vmatprep.subr.mxu0 0.0
        %1019 = vmatpush1.msra.mxu0 0.0
        %1020 = vmatprep.subr.mxu0 0.0
        %1021 = vmatpush1.msra.mxu0 0.0
        %1022 = vmatprep.subr.mxu0 0.0
        %1023 = vmatpush1.msra.mxu0 0.0
        %1024 = vmatprep.subr.mxu0 0.0
        %1025 = vmatpush1.msra.mxu0 0.0
        %1026 = vmatprep.subr.mxu0 0.0
        %1027 = vmatpush1.msra.mxu0 0.0
        %1028 = vmatprep.subr.mxu0 0.0
        %1029 = vmatpush1.msra.mxu0 0.0
        %1030 = vmatprep.subr.mxu0 0.0
        %1031 = vmatpush1.msra.mxu0 0.0
        %1032 = vmatprep.subr.mxu0 0.0
        %1033 = vmatpush1.msra.mxu0 0.0
        %1034 = vmatprep.subr.mxu0 0.0
        %1035 = vmatpush1.msra.mxu0 0.0
        %1036 = vmatprep.subr.mxu0 0.0
        %1037 = vmatpush1.msra.mxu0 0.0
        %1038 = vmatprep.subr.mxu0 0.0
        %1039 = vmatpush1.msra.mxu0 0.0
        %1040 = vmatprep.subr.mxu0 0.0
        %1041 = vmatpush1.msra.mxu0 0.0
        %1042 = vmatprep.subr.mxu0 0.0
        %1043 = vmatpush1.msra.mxu0 0.0
        %1044 = vmatprep.subr.mxu0 0.0
        %1045 = vmatpush1.msra.mxu0 0.0
        %1046 = vmatprep.subr.mxu0 0.0
        %1047 = vmatpush1.msra.mxu0 0.0
        %1048 = vmatprep.subr.mxu0 0.0
        %1049 = vmatpush1.msra.mxu0 0.0
        %1050 = vmatprep.subr.mxu0 0.0
        %1051 = vmatpush1.msra.mxu0 0.0
        %1052 = vmatprep.subr.mxu0 0.0
        %1053 = vmatpush1.msra.mxu0 0.0
        %1054 = vmatprep.subr.mxu0 0.0
        %1055 = vmatpush1.msra.mxu0 0.0
        %1056 = vmatprep.subr.mxu0 0.0
        %1057 = vmatpush1.msra.mxu0 0.0
        %1058 = vmatprep.subr.mxu0 0.0
        %1059 = vmatpush1.msra.mxu0 0.0
        %1060 = vmatprep.subr.mxu0 0.0
        %1061 = vmatpush1.msra.mxu0 0.0
        %1062 = vmatprep.subr.mxu0 0.0
        %1063 = vmatpush1.msra.mxu0 0.0
        %1064 = vmatprep.subr.mxu0 0.0
        %1065 = vmatpush1.msra.mxu0 0.0
        %1066 = vmatprep.subr.mxu0 0.0
        %1067 = vmatpush1.msra.mxu0 0.0
        %1068 = vmatprep.mubr.f32.mxu0 0.0
        %1069 = vmatmul.mubr.f32.gmra.mrb[0].mxu0 %v1002
        %v1070 = vpop.f32.mrb[0].mxu0
        %v1071 = vadd.f32 0.0, %v1070
        %v1072 = vpop.f32.mrb[0].mxu0
        %1073 = vdwg.mxu0
        %v1074 = vpack.c.bf16 %v1071, %v1071
        %s1075 = scalar_lea.vmem [#allocation2], 128
        %v1076 = vld [vmem:[%s1075] sm:$0xf]
        %v1077 = vld [vmem:[%s1075 + $0x4] sm:$0xf]
        %v1078 = vld [vmem:[%s1075 + $0x8] sm:$0xf]
        %v1079 = vld [vmem:[%s1075 + $0xc] sm:$0xf]
        %v1080 = vld [vmem:[%s1075 + $0x10] sm:$0xf]
        %v1081 = vld [vmem:[%s1075 + $0x14] sm:$0xf]
        %v1082 = vld [vmem:[%s1075 + $0x18] sm:$0xf]
        %v1083 = vld [vmem:[%s1075 + $0x1c] sm:$0xf]
        %v1084 = vld [vmem:[%s1075 + $0x20] sm:$0xf]
        %v1085 = vld [vmem:[%s1075 + $0x24] sm:$0xf]
        %v1086 = vld [vmem:[%s1075 + $0x28] sm:$0xf]
        %v1087 = vld [vmem:[%s1075 + $0x2c] sm:$0xf]
        %v1088 = vld [vmem:[%s1075 + $0x30] sm:$0xf]
        %v1089 = vld [vmem:[%s1075 + $0x34] sm:$0xf]
        %v1090 = vld [vmem:[%s1075 + $0x38] sm:$0xf]
        %v1091 = vld [vmem:[%s1075 + $0x3c] sm:$0xf]
        %v1108 = vunpack.c.l.b16 %v1076
        %v1109 = vunpack.c.l.b16 %v1077
        %v1110 = vunpack.c.l.b16 %v1078
        %v1111 = vunpack.c.l.b16 %v1079
        %v1112 = vunpack.c.l.b16 %v1080
        %v1113 = vunpack.c.l.b16 %v1081
        %v1114 = vunpack.c.l.b16 %v1082
        %v1115 = vunpack.c.l.b16 %v1083
        %v1116 = vunpack.c.l.b16 %v1084
        %v1117 = vunpack.c.l.b16 %v1085
        %v1118 = vunpack.c.l.b16 %v1086
        %v1119 = vunpack.c.l.b16 %v1087
        %v1120 = vunpack.c.l.b16 %v1088
        %v1121 = vunpack.c.l.b16 %v1089
        %v1122 = vunpack.c.l.b16 %v1090
        %v1123 = vunpack.c.l.b16 %v1091
        %v1124 = vpack.c.b16 %v1109, %v1108
        %v1125 = vpack.c.b16 %v1111, %v1110
        %v1126 = vpack.c.b16 %v1113, %v1112
        %v1127 = vpack.c.b16 %v1115, %v1114
        %v1128 = vpack.c.b16 %v1117, %v1116
        %v1129 = vpack.c.b16 %v1119, %v1118
        %v1130 = vpack.c.b16 %v1121, %v1120
        %v1131 = vpack.c.b16 %v1123, %v1122
        %1140 = vmatprep.subr.bf16.mxu0 0
        %1141 = vmatpush1.bf16.msra.mxu0 %v1124
        %1142 = vmatprep.subr.bf16.mxu0 0
        %1143 = vmatpush1.bf16.msra.mxu0 %v1125
        %1144 = vmatprep.subr.bf16.mxu0 0
        %1145 = vmatpush1.bf16.msra.mxu0 %v1126
        %1146 = vmatprep.subr.bf16.mxu0 0
        %1147 = vmatpush1.bf16.msra.mxu0 %v1127
        %1148 = vmatprep.subr.bf16.mxu0 0
        %1149 = vmatpush1.bf16.msra.mxu0 %v1128
        %1150 = vmatprep.subr.bf16.mxu0 0
        %1151 = vmatpush1.bf16.msra.mxu0 %v1129
        %1152 = vmatprep.subr.bf16.mxu0 0
        %1153 = vmatpush1.bf16.msra.mxu0 %v1130
        %1154 = vmatprep.subr.bf16.mxu0 0
        %1155 = vmatpush1.bf16.msra.mxu0 %v1131
        %1156 = vmatprep.subr.bf16.mxu0 0
        %1157 = vmatpush1.bf16.msra.mxu0 0
        %1158 = vmatprep.subr.bf16.mxu0 0
        %1159 = vmatpush1.bf16.msra.mxu0 0
        %1160 = vmatprep.subr.bf16.mxu0 0
        %1161 = vmatpush1.bf16.msra.mxu0 0
        %1162 = vmatprep.subr.bf16.mxu0 0
        %1163 = vmatpush1.bf16.msra.mxu0 0
        %1164 = vmatprep.subr.bf16.mxu0 0
        %1165 = vmatpush1.bf16.msra.mxu0 0
        %1166 = vmatprep.subr.bf16.mxu0 0
        %1167 = vmatpush1.bf16.msra.mxu0 0
        %1168 = vmatprep.subr.bf16.mxu0 0
        %1169 = vmatpush1.bf16.msra.mxu0 0
        %1170 = vmatprep.subr.bf16.mxu0 0
        %1171 = vmatpush1.bf16.msra.mxu0 0
        %1172 = vmatprep.mubr.bf16.mxu0 0
        %1173 = vmatmul.mubr.bf16.gmra.mrb[0].mxu0 %v1074
        %v1174 = vpop.f32.mrb[0].mxu0
        %v1175 = vadd.f32 0.0, %v1174
        %v1176 = vpop.f32.mrb[0].mxu0
        %v1177 = vpop.f32.mrb[0].mxu0
        %v1178 = vpop.f32.mrb[0].mxu0
        %1179 = vdwg.mxu0
        %v1180 = vadd.f32 %v994, %v1175
        %v1181 = vld [vmem:[%s3] sm:$0x1]
        %v1183 = vlaneseq
        %v1184 = vshrl.u32 %v1183, 7
        %v1185 = vsub.s32 0, %v1184
        %v1186 = vrot.slane %v1181, %v1185
        %v1188 = vadd.f32 %v1180, %v1186
        %v1189 = vxor.u32 %v1188, 2147483648
        %v1190 = vmul.f32 %v1189, 1.442695
        %v1191 = vpow.pop %v1190
        %v1192 = vadd.f32 %v1191, 1.0
        %v1193 = vrcp.pop %v1192
        %v1194 = vmul.f32 1.0, %v1193
        %v1195 = vmul.f32 %v1188, %v1194
        %v1196 = vld [vmem:[#allocation10] sm:$0xff]
        %v1197 = vld [vmem:[#allocation10 + $0x8] sm:$0xff]
        %v1198 = vld [vmem:[#allocation10 + $0x10] sm:$0xff]
        %v1199 = vld [vmem:[#allocation10 + $0x18] sm:$0xff]
        %v1200 = vld [vmem:[#allocation10 + $0x20] sm:$0xff]
        %v1201 = vld [vmem:[#allocation10 + $0x28] sm:$0xff]
        %v1202 = vld [vmem:[#allocation10 + $0x30] sm:$0xff]
        %v1203 = vld [vmem:[#allocation10 + $0x38] sm:$0xff]
        %vm1204 = vcmask 523264
        %v1206 = vsel %vm1204, %v1195, 0
        %1208 = vmatprep.subr.mxu0 0.0
        %1209 = vmatpush1.msra.mxu0 %v1196
        %1210 = vmatprep.subr.mxu0 0.0
        %1211 = vmatpush1.msra.mxu0 %v1197
        %1212 = vmatprep.subr.mxu0 0.0
        %1213 = vmatpush1.msra.mxu0 %v1198
        %1214 = vmatprep.subr.mxu0 0.0
        %1215 = vmatpush1.msra.mxu0 %v1199
        %1216 = vmatprep.subr.mxu0 0.0
        %1217 = vmatpush1.msra.mxu0 %v1200
        %1218 = vmatprep.subr.mxu0 0.0
        %1219 = vmatpush1.msra.mxu0 %v1201
        %1220 = vmatprep.subr.mxu0 0.0
        %1221 = vmatpush1.msra.mxu0 %v1202
        %1222 = vmatprep.subr.mxu0 0.0
        %1223 = vmatpush1.msra.mxu0 %v1203
        %1224 = vmatprep.subr.mxu0 0.0
        %1225 = vmatpush1.msra.mxu0 0.0
        %1226 = vmatprep.subr.mxu0 0.0
        %1227 = vmatpush1.msra.mxu0 0.0
        %1228 = vmatprep.subr.mxu0 0.0
        %1229 = vmatpush1.msra.mxu0 0.0
        %1230 = vmatprep.subr.mxu0 0.0
        %1231 = vmatpush1.msra.mxu0 0.0
        %1232 = vmatprep.subr.mxu0 0.0
        %1233 = vmatpush1.msra.mxu0 0.0
        %1234 = vmatprep.subr.mxu0 0.0
        %1235 = vmatpush1.msra.mxu0 0.0
        %1236 = vmatprep.subr.mxu0 0.0
        %1237 = vmatpush1.msra.mxu0 0.0
        %1238 = vmatprep.subr.mxu0 0.0
        %1239 = vmatpush1.msra.mxu0 0.0
        %1240 = vmatprep.subr.mxu0 0.0
        %1241 = vmatpush1.msra.mxu0 0.0
        %1242 = vmatprep.subr.mxu0 0.0
        %1243 = vmatpush1.msra.mxu0 0.0
        %1244 = vmatprep.subr.mxu0 0.0
        %1245 = vmatpush1.msra.mxu0 0.0
        %1246 = vmatprep.subr.mxu0 0.0
        %1247 = vmatpush1.msra.mxu0 0.0
        %1248 = vmatprep.subr.mxu0 0.0
        %1249 = vmatpush1.msra.mxu0 0.0
        %1250 = vmatprep.subr.mxu0 0.0
        %1251 = vmatpush1.msra.mxu0 0.0
        %1252 = vmatprep.subr.mxu0 0.0
        %1253 = vmatpush1.msra.mxu0 0.0
        %1254 = vmatprep.subr.mxu0 0.0
        %1255 = vmatpush1.msra.mxu0 0.0
        %1256 = vmatprep.subr.mxu0 0.0
        %1257 = vmatpush1.msra.mxu0 0.0
        %1258 = vmatprep.subr.mxu0 0.0
        %1259 = vmatpush1.msra.mxu0 0.0
        %1260 = vmatprep.subr.mxu0 0.0
        %1261 = vmatpush1.msra.mxu0 0.0
        %1262 = vmatprep.subr.mxu0 0.0
        %1263 = vmatpush1.msra.mxu0 0.0
        %1264 = vmatprep.subr.mxu0 0.0
        %1265 = vmatpush1.msra.mxu0 0.0
        %1266 = vmatprep.subr.mxu0 0.0
        %1267 = vmatpush1.msra.mxu0 0.0
        %1268 = vmatprep.subr.mxu0 0.0
        %1269 = vmatpush1.msra.mxu0 0.0
        %1270 = vmatprep.subr.mxu0 0.0
        %1271 = vmatpush1.msra.mxu0 0.0
        %1272 = vmatprep.mubr.f32.mxu0 0.0
        %1273 = vmatmul.mubr.f32.gmra.mrb[0].mxu0 %v1206
        %v1274 = vpop.f32.mrb[0].mxu0
        %v1275 = vadd.f32 0.0, %v1274
        %v1276 = vpop.f32.mrb[0].mxu0
        %1277 = vdwg.mxu0
        %v1278 = vld [vmem:[#allocation4] sm:$0xff]
        %v1279 = vld [vmem:[#allocation4 + $0x8] sm:$0xff]
        %v1281 = vsel %vm639, %v1278, 0
        %v1284 = vsel %vm639, %v1279, 0
        %1286 = vmatprep.subr.mxu0 0.0
        %1287 = vmatpush1.msra.mxu0 %v1275
        %1288 = vmatprep.subr.mxu0 0.0
        %1289 = vmatpush1.msra.mxu0 0.0
        %1290 = vmatprep.subr.mxu0 0.0
        %1291 = vmatpush1.msra.mxu0 0.0
        %1292 = vmatprep.subr.mxu0 0.0
        %1293 = vmatpush1.msra.mxu0 0.0
        %1294 = vmatprep.subr.mxu0 0.0
        %1295 = vmatpush1.msra.mxu0 0.0
        %1296 = vmatprep.subr.mxu0 0.0
        %1297 = vmatpush1.msra.mxu0 0.0
        %1298 = vmatprep.subr.mxu0 0.0
        %1299 = vmatpush1.msra.mxu0 0.0
        %1300 = vmatprep.subr.mxu0 0.0
        %1301 = vmatpush1.msra.mxu0 0.0
        %1302 = vmatprep.subr.mxu0 0.0
        %1303 = vmatpush1.msra.mxu0 0.0
        %1304 = vmatprep.subr.mxu0 0.0
        %1305 = vmatpush1.msra.mxu0 0.0
        %1306 = vmatprep.subr.mxu0 0.0
        %1307 = vmatpush1.msra.mxu0 0.0
        %1308 = vmatprep.subr.mxu0 0.0
        %1309 = vmatpush1.msra.mxu0 0.0
        %1310 = vmatprep.subr.mxu0 0.0
        %1311 = vmatpush1.msra.mxu0 0.0
        %1312 = vmatprep.subr.mxu0 0.0
        %1313 = vmatpush1.msra.mxu0 0.0
        %1314 = vmatprep.subr.mxu0 0.0
        %1315 = vmatpush1.msra.mxu0 0.0
        %1316 = vmatprep.subr.mxu0 0.0
        %1317 = vmatpush1.msra.mxu0 0.0
        %1318 = vmatprep.subr.mxu0 0.0
        %1319 = vmatpush1.msra.mxu0 0.0
        %1320 = vmatprep.subr.mxu0 0.0
        %1321 = vmatpush1.msra.mxu0 0.0
        %1322 = vmatprep.subr.mxu0 0.0
        %1323 = vmatpush1.msra.mxu0 0.0
        %1324 = vmatprep.subr.mxu0 0.0
        %1325 = vmatpush1.msra.mxu0 0.0
        %1326 = vmatprep.subr.mxu0 0.0
        %1327 = vmatpush1.msra.mxu0 0.0
        %1328 = vmatprep.subr.mxu0 0.0
        %1329 = vmatpush1.msra.mxu0 0.0
        %1330 = vmatprep.subr.mxu0 0.0
        %1331 = vmatpush1.msra.mxu0 0.0
        %1332 = vmatprep.subr.mxu0 0.0
        %1333 = vmatpush1.msra.mxu0 0.0
        %1334 = vmatprep.subr.mxu0 0.0
        %1335 = vmatpush1.msra.mxu0 0.0
        %1336 = vmatprep.subr.mxu0 0.0
        %1337 = vmatpush1.msra.mxu0 0.0
        %1338 = vmatprep.subr.mxu0 0.0
        %1339 = vmatpush1.msra.mxu0 0.0
        %1340 = vmatprep.subr.mxu0 0.0
        %1341 = vmatpush1.msra.mxu0 0.0
        %1342 = vmatprep.subr.mxu0 0.0
        %1343 = vmatpush1.msra.mxu0 0.0
        %1344 = vmatprep.subr.mxu0 0.0
        %1345 = vmatpush1.msra.mxu0 0.0
        %1346 = vmatprep.subr.mxu0 0.0
        %1347 = vmatpush1.msra.mxu0 0.0
        %1348 = vmatprep.subr.mxu0 0.0
        %1349 = vmatpush1.msra.mxu0 0.0
        %1350 = vmatprep.mubr.f32.mxu0 0.0
        %1351 = vmatmul.mubr.f32.gmra.mrb[0].mxu0 %v1281
        %v1352 = vpop.f32.mrb[0].mxu0
        %v1353 = vadd.f32 0.0, %v1352
        %v1354 = vpop.f32.mrb[0].mxu0
        %1355 = vmatprep.mubr.f32.mxu0 0.0
        %1356 = vmatmul.mubr.f32.gmra.mrb[0].mxu0 %v1284
        %v1357 = vpop.f32.mrb[0].mxu0
        %v1358 = vadd.f32 0.0, %v1357
        %v1359 = vpop.f32.mrb[0].mxu0
        %1360 = vdwg.mxu0
        %v1361 = vpack.c.bf16 %v1358, %v1353
        %v1362 = vld [vmem:[#allocation6] sm:$0xf]
        %v1363 = vld [vmem:[#allocation6 + $0x4] sm:$0xf]
        %v1364 = vld [vmem:[#allocation6 + $0x8] sm:$0xf]
        %v1365 = vld [vmem:[#allocation6 + $0xc] sm:$0xf]
        %v1366 = vld [vmem:[#allocation6 + $0x10] sm:$0xf]
        %v1367 = vld [vmem:[#allocation6 + $0x14] sm:$0xf]
        %v1368 = vld [vmem:[#allocation6 + $0x18] sm:$0xf]
        %v1369 = vld [vmem:[#allocation6 + $0x1c] sm:$0xf]
        %v1370 = vld [vmem:[#allocation6 + $0x20] sm:$0xf]
        %v1371 = vld [vmem:[#allocation6 + $0x24] sm:$0xf]
        %v1372 = vld [vmem:[#allocation6 + $0x28] sm:$0xf]
        %v1373 = vld [vmem:[#allocation6 + $0x2c] sm:$0xf]
        %v1374 = vld [vmem:[#allocation6 + $0x30] sm:$0xf]
        %v1375 = vld [vmem:[#allocation6 + $0x34] sm:$0xf]
        %v1376 = vld [vmem:[#allocation6 + $0x38] sm:$0xf]
        %v1377 = vld [vmem:[#allocation6 + $0x3c] sm:$0xf]
        %s1378 = scalar_lea.vmem [#allocation4], 16
        %v1379 = vld [vmem:[%s1378] sm:$0xff]
        %v1380 = vld [vmem:[%s1378 + $0x8] sm:$0xff]
        %v1382 = vsel %vm639, %v1379, 0
        %v1385 = vsel %vm639, %v1380, 0
        %1387 = vmatprep.subr.mxu0 0.0
        %1388 = vmatpush1.msra.mxu0 %v1275
        %1389 = vmatprep.subr.mxu0 0.0
        %1390 = vmatpush1.msra.mxu0 0.0
        %1391 = vmatprep.subr.mxu0 0.0
        %1392 = vmatpush1.msra.mxu0 0.0
        %1393 = vmatprep.subr.mxu0 0.0
        %1394 = vmatpush1.msra.mxu0 0.0
        %1395 = vmatprep.subr.mxu0 0.0
        %1396 = vmatpush1.msra.mxu0 0.0
        %1397 = vmatprep.subr.mxu0 0.0
        %1398 = vmatpush1.msra.mxu0 0.0
        %1399 = vmatprep.subr.mxu0 0.0
        %1400 = vmatpush1.msra.mxu0 0.0
        %1401 = vmatprep.subr.mxu0 0.0
        %1402 = vmatpush1.msra.mxu0 0.0
        %1403 = vmatprep.subr.mxu0 0.0
        %1404 = vmatpush1.msra.mxu0 0.0
        %1405 = vmatprep.subr.mxu0 0.0
        %1406 = vmatpush1.msra.mxu0 0.0
        %1407 = vmatprep.subr.mxu0 0.0
        %1408 = vmatpush1.msra.mxu0 0.0
        %1409 = vmatprep.subr.mxu0 0.0
        %1410 = vmatpush1.msra.mxu0 0.0
        %1411 = vmatprep.subr.mxu0 0.0
        %1412 = vmatpush1.msra.mxu0 0.0
        %1413 = vmatprep.subr.mxu0 0.0
        %1414 = vmatpush1.msra.mxu0 0.0
        %1415 = vmatprep.subr.mxu0 0.0
        %1416 = vmatpush1.msra.mxu0 0.0
        %1417 = vmatprep.subr.mxu0 0.0
        %1418 = vmatpush1.msra.mxu0 0.0
        %1419 = vmatprep.subr.mxu0 0.0
        %1420 = vmatpush1.msra.mxu0 0.0
        %1421 = vmatprep.subr.mxu0 0.0
        %1422 = vmatpush1.msra.mxu0 0.0
        %1423 = vmatprep.subr.mxu0 0.0
        %1424 = vmatpush1.msra.mxu0 0.0
        %1425 = vmatprep.subr.mxu0 0.0
        %1426 = vmatpush1.msra.mxu0 0.0
        %1427 = vmatprep.subr.mxu0 0.0
        %1428 = vmatpush1.msra.mxu0 0.0
        %1429 = vmatprep.subr.mxu0 0.0
        %1430 = vmatpush1.msra.mxu0 0.0
        %1431 = vmatprep.subr.mxu0 0.0
        %1432 = vmatpush1.msra.mxu0 0.0
        %1433 = vmatprep.subr.mxu0 0.0
        %1434 = vmatpush1.msra.mxu0 0.0
        %1435 = vmatprep.subr.mxu0 0.0
        %1436 = vmatpush1.msra.mxu0 0.0
        %1437 = vmatprep.subr.mxu0 0.0
        %1438 = vmatpush1.msra.mxu0 0.0
        %1439 = vmatprep.subr.mxu0 0.0
        %1440 = vmatpush1.msra.mxu0 0.0
        %1441 = vmatprep.subr.mxu0 0.0
        %1442 = vmatpush1.msra.mxu0 0.0
        %1443 = vmatprep.subr.mxu0 0.0
        %1444 = vmatpush1.msra.mxu0 0.0
        %1445 = vmatprep.subr.mxu0 0.0
        %1446 = vmatpush1.msra.mxu0 0.0
        %1447 = vmatprep.subr.mxu0 0.0
        %1448 = vmatpush1.msra.mxu0 0.0
        %1449 = vmatprep.subr.mxu0 0.0
        %1450 = vmatpush1.msra.mxu0 0.0
        %1451 = vmatprep.mubr.f32.mxu0 0.0
        %1452 = vmatmul.mubr.f32.gmra.mrb[0].mxu0 %v1382
        %v1453 = vpop.f32.mrb[0].mxu0
        %v1454 = vadd.f32 0.0, %v1453
        %v1455 = vpop.f32.mrb[0].mxu0
        %1456 = vmatprep.mubr.f32.mxu0 0.0
        %1457 = vmatmul.mubr.f32.gmra.mrb[0].mxu0 %v1385
        %v1458 = vpop.f32.mrb[0].mxu0
        %v1459 = vadd.f32 0.0, %v1458
        %v1460 = vpop.f32.mrb[0].mxu0
        %1461 = vdwg.mxu0
        %v1462 = vpack.c.bf16 %v1459, %v1454
        %s1463 = scalar_lea.vmem [#allocation6], 64
        %v1464 = vld [vmem:[%s1463] sm:$0xf]
        %v1465 = vld [vmem:[%s1463 + $0x4] sm:$0xf]
        %v1466 = vld [vmem:[%s1463 + $0x8] sm:$0xf]
        %v1467 = vld [vmem:[%s1463 + $0xc] sm:$0xf]
        %v1468 = vld [vmem:[%s1463 + $0x10] sm:$0xf]
        %v1469 = vld [vmem:[%s1463 + $0x14] sm:$0xf]
        %v1470 = vld [vmem:[%s1463 + $0x18] sm:$0xf]
        %v1471 = vld [vmem:[%s1463 + $0x1c] sm:$0xf]
        %v1472 = vld [vmem:[%s1463 + $0x20] sm:$0xf]
        %v1473 = vld [vmem:[%s1463 + $0x24] sm:$0xf]
        %v1474 = vld [vmem:[%s1463 + $0x28] sm:$0xf]
        %v1475 = vld [vmem:[%s1463 + $0x2c] sm:$0xf]
        %v1476 = vld [vmem:[%s1463 + $0x30] sm:$0xf]
        %v1477 = vld [vmem:[%s1463 + $0x34] sm:$0xf]
        %v1478 = vld [vmem:[%s1463 + $0x38] sm:$0xf]
        %v1479 = vld [vmem:[%s1463 + $0x3c] sm:$0xf]
        %v1496 = vunpack.c.l.b16 %v1464
        %v1497 = vunpack.c.l.b16 %v1465
        %v1498 = vunpack.c.l.b16 %v1466
        %v1499 = vunpack.c.l.b16 %v1467
        %v1500 = vunpack.c.l.b16 %v1468
        %v1501 = vunpack.c.l.b16 %v1469
        %v1502 = vunpack.c.l.b16 %v1470
        %v1503 = vunpack.c.l.b16 %v1471
        %v1504 = vunpack.c.l.b16 %v1472
        %v1505 = vunpack.c.l.b16 %v1473
        %v1506 = vunpack.c.l.b16 %v1474
        %v1507 = vunpack.c.l.b16 %v1475
        %v1508 = vunpack.c.l.b16 %v1476
        %v1509 = vunpack.c.l.b16 %v1477
        %v1510 = vunpack.c.l.b16 %v1478
        %v1511 = vunpack.c.l.b16 %v1479
        %v1512 = vpack.c.b16 %v1497, %v1496
        %v1513 = vpack.c.b16 %v1499, %v1498
        %v1514 = vpack.c.b16 %v1501, %v1500
        %v1515 = vpack.c.b16 %v1503, %v1502
        %v1516 = vpack.c.b16 %v1505, %v1504
        %v1517 = vpack.c.b16 %v1507, %v1506
        %v1518 = vpack.c.b16 %v1509, %v1508
        %v1519 = vpack.c.b16 %v1511, %v1510
        %1528 = vmatprep.subr.bf16.mxu0 0
        %1529 = vmatpush1.bf16.msra.mxu0 %v1512
        %1530 = vmatprep.subr.bf16.mxu0 0
        %1531 = vmatpush1.bf16.msra.mxu0 %v1513
        %1532 = vmatprep.subr.bf16.mxu0 0
        %1533 = vmatpush1.bf16.msra.mxu0 %v1514
        %1534 = vmatprep.subr.bf16.mxu0 0
        %1535 = vmatpush1.bf16.msra.mxu0 %v1515
        %1536 = vmatprep.subr.bf16.mxu0 0
        %1537 = vmatpush1.bf16.msra.mxu0 %v1516
        %1538 = vmatprep.subr.bf16.mxu0 0
        %1539 = vmatpush1.bf16.msra.mxu0 %v1517
        %1540 = vmatprep.subr.bf16.mxu0 0
        %1541 = vmatpush1.bf16.msra.mxu0 %v1518
        %1542 = vmatprep.subr.bf16.mxu0 0
        %1543 = vmatpush1.bf16.msra.mxu0 %v1519
        %1544 = vmatprep.subr.bf16.mxu0 0
        %1545 = vmatpush1.bf16.msra.mxu0 0
        %1546 = vmatprep.subr.bf16.mxu0 0
        %1547 = vmatpush1.bf16.msra.mxu0 0
        %1548 = vmatprep.subr.bf16.mxu0 0
        %1549 = vmatpush1.bf16.msra.mxu0 0
        %1550 = vmatprep.subr.bf16.mxu0 0
        %1551 = vmatpush1.bf16.msra.mxu0 0
        %1552 = vmatprep.subr.bf16.mxu0 0
        %1553 = vmatpush1.bf16.msra.mxu0 0
        %1554 = vmatprep.subr.bf16.mxu0 0
        %1555 = vmatpush1.bf16.msra.mxu0 0
        %1556 = vmatprep.subr.bf16.mxu0 0
        %1557 = vmatpush1.bf16.msra.mxu0 0
        %1558 = vmatprep.subr.bf16.mxu0 0
        %1559 = vmatpush1.bf16.msra.mxu0 0
        %1560 = vmatprep.mubr.bf16.mxu0 0
        %1561 = vmatmul.mubr.bf16.gmra.mrb[0].mxu0 %v1462
        %v1562 = vpop.f32.mrb[0].mxu0
        %v1563 = vadd.f32 0.0, %v1562
        %v1564 = vpop.f32.mrb[0].mxu0
        %v1565 = vpop.f32.mrb[0].mxu0
        %v1566 = vadd.f32 0.0, %v1565
        %v1567 = vpop.f32.mrb[0].mxu0
        %1568 = vdwg.mxu0
        %v1585 = vunpack.c.l.b16 %v1362
        %v1586 = vunpack.c.l.b16 %v1363
        %v1587 = vunpack.c.l.b16 %v1364
        %v1588 = vunpack.c.l.b16 %v1365
        %v1589 = vunpack.c.l.b16 %v1366
        %v1590 = vunpack.c.l.b16 %v1367
        %v1591 = vunpack.c.l.b16 %v1368
        %v1592 = vunpack.c.l.b16 %v1369
        %v1593 = vunpack.c.l.b16 %v1370
        %v1594 = vunpack.c.l.b16 %v1371
        %v1595 = vunpack.c.l.b16 %v1372
        %v1596 = vunpack.c.l.b16 %v1373
        %v1597 = vunpack.c.l.b16 %v1374
        %v1598 = vunpack.c.l.b16 %v1375
        %v1599 = vunpack.c.l.b16 %v1376
        %v1600 = vunpack.c.l.b16 %v1377
        %v1601 = vpack.c.b16 %v1586, %v1585
        %v1602 = vpack.c.b16 %v1588, %v1587
        %v1603 = vpack.c.b16 %v1590, %v1589
        %v1604 = vpack.c.b16 %v1592, %v1591
        %v1605 = vpack.c.b16 %v1594, %v1593
        %v1606 = vpack.c.b16 %v1596, %v1595
        %v1607 = vpack.c.b16 %v1598, %v1597
        %v1608 = vpack.c.b16 %v1600, %v1599
        %1617 = vmatprep.subr.bf16.mxu0 0
        %1618 = vmatpush1.bf16.msra.mxu0 %v1601
        %1619 = vmatprep.subr.bf16.mxu0 0
        %1620 = vmatpush1.bf16.msra.mxu0 %v1602
        %1621 = vmatprep.subr.bf16.mxu0 0
        %1622 = vmatpush1.bf16.msra.mxu0 %v1603
        %1623 = vmatprep.subr.bf16.mxu0 0
        %1624 = vmatpush1.bf16.msra.mxu0 %v1604
        %1625 = vmatprep.subr.bf16.mxu0 0
        %1626 = vmatpush1.bf16.msra.mxu0 %v1605
        %1627 = vmatprep.subr.bf16.mxu0 0
        %1628 = vmatpush1.bf16.msra.mxu0 %v1606
        %1629 = vmatprep.subr.bf16.mxu0 0
        %1630 = vmatpush1.bf16.msra.mxu0 %v1607
        %1631 = vmatprep.subr.bf16.mxu0 0
        %1632 = vmatpush1.bf16.msra.mxu0 %v1608
        %1633 = vmatprep.subr.bf16.mxu0 0
        %1634 = vmatpush1.bf16.msra.mxu0 0
        %1635 = vmatprep.subr.bf16.mxu0 0
        %1636 = vmatpush1.bf16.msra.mxu0 0
        %1637 = vmatprep.subr.bf16.mxu0 0
        %1638 = vmatpush1.bf16.msra.mxu0 0
        %1639 = vmatprep.subr.bf16.mxu0 0
        %1640 = vmatpush1.bf16.msra.mxu0 0
        %1641 = vmatprep.subr.bf16.mxu0 0
        %1642 = vmatpush1.bf16.msra.mxu0 0
        %1643 = vmatprep.subr.bf16.mxu0 0
        %1644 = vmatpush1.bf16.msra.mxu0 0
        %1645 = vmatprep.subr.bf16.mxu0 0
        %1646 = vmatpush1.bf16.msra.mxu0 0
        %1647 = vmatprep.subr.bf16.mxu0 0
        %1648 = vmatpush1.bf16.msra.mxu0 0
        %1649 = vmatprep.mubr.bf16.mxu0 0
        %1650 = vmatmul.mubr.bf16.gmra.mrb[0].mxu0 %v1361
        %v1651 = vpop.f32.mrb[0].mxu0
        %v1652 = vadd.f32 %v1563, %v1651
        %v1653 = vpop.f32.mrb[0].mxu0
        %v1654 = vpop.f32.mrb[0].mxu0
        %v1655 = vadd.f32 %v1566, %v1654
        %v1656 = vpop.f32.mrb[0].mxu0
        %1657 = vdwg.mxu0
        %s1658 = scalar_lea.vmem [#allocation4], 32
        %v1659 = vld [vmem:[%s1658] sm:$0xff]
        %v1660 = vld [vmem:[%s1658 + $0x8] sm:$0xff]
        %v1662 = vsel %vm639, %v1659, 0
        %v1665 = vsel %vm639, %v1660, 0
        %1667 = vmatprep.subr.mxu0 0.0
        %1668 = vmatpush1.msra.mxu0 %v1275
        %1669 = vmatprep.subr.mxu0 0.0
        %1670 = vmatpush1.msra.mxu0 0.0
        %1671 = vmatprep.subr.mxu0 0.0
        %1672 = vmatpush1.msra.mxu0 0.0
        %1673 = vmatprep.subr.mxu0 0.0
        %1674 = vmatpush1.msra.mxu0 0.0
        %1675 = vmatprep.subr.mxu0 0.0
        %1676 = vmatpush1.msra.mxu0 0.0
        %1677 = vmatprep.subr.mxu0 0.0
        %1678 = vmatpush1.msra.mxu0 0.0
        %1679 = vmatprep.subr.mxu0 0.0
        %1680 = vmatpush1.msra.mxu0 0.0
        %1681 = vmatprep.subr.mxu0 0.0
        %1682 = vmatpush1.msra.mxu0 0.0
        %1683 = vmatprep.subr.mxu0 0.0
        %1684 = vmatpush1.msra.mxu0 0.0
        %1685 = vmatprep.subr.mxu0 0.0
        %1686 = vmatpush1.msra.mxu0 0.0
        %1687 = vmatprep.subr.mxu0 0.0
        %1688 = vmatpush1.msra.mxu0 0.0
        %1689 = vmatprep.subr.mxu0 0.0
        %1690 = vmatpush1.msra.mxu0 0.0
        %1691 = vmatprep.subr.mxu0 0.0
        %1692 = vmatpush1.msra.mxu0 0.0
        %1693 = vmatprep.subr.mxu0 0.0
        %1694 = vmatpush1.msra.mxu0 0.0
        %1695 = vmatprep.subr.mxu0 0.0
        %1696 = vmatpush1.msra.mxu0 0.0
        %1697 = vmatprep.subr.mxu0 0.0
        %1698 = vmatpush1.msra.mxu0 0.0
        %1699 = vmatprep.subr.mxu0 0.0
        %1700 = vmatpush1.msra.mxu0 0.0
        %1701 = vmatprep.subr.mxu0 0.0
        %1702 = vmatpush1.msra.mxu0 0.0
        %1703 = vmatprep.subr.mxu0 0.0
        %1704 = vmatpush1.msra.mxu0 0.0
        %1705 = vmatprep.subr.mxu0 0.0
        %1706 = vmatpush1.msra.mxu0 0.0
        %1707 = vmatprep.subr.mxu0 0.0
        %1708 = vmatpush1.msra.mxu0 0.0
        %1709 = vmatprep.subr.mxu0 0.0
        %1710 = vmatpush1.msra.mxu0 0.0
        %1711 = vmatprep.subr.mxu0 0.0
        %1712 = vmatpush1.msra.mxu0 0.0
        %1713 = vmatprep.subr.mxu0 0.0
        %1714 = vmatpush1.msra.mxu0 0.0
        %1715 = vmatprep.subr.mxu0 0.0
        %1716 = vmatpush1.msra.mxu0 0.0
        %1717 = vmatprep.subr.mxu0 0.0
        %1718 = vmatpush1.msra.mxu0 0.0
        %1719 = vmatprep.subr.mxu0 0.0
        %1720 = vmatpush1.msra.mxu0 0.0
        %1721 = vmatprep.subr.mxu0 0.0
        %1722 = vmatpush1.msra.mxu0 0.0
        %1723 = vmatprep.subr.mxu0 0.0
        %1724 = vmatpush1.msra.mxu0 0.0
        %1725 = vmatprep.subr.mxu0 0.0
        %1726 = vmatpush1.msra.mxu0 0.0
        %1727 = vmatprep.subr.mxu0 0.0
        %1728 = vmatpush1.msra.mxu0 0.0
        %1729 = vmatprep.subr.mxu0 0.0
        %1730 = vmatpush1.msra.mxu0 0.0
        %1731 = vmatprep.mubr.f32.mxu0 0.0
        %1732 = vmatmul.mubr.f32.gmra.mrb[0].mxu0 %v1662
        %v1733 = vpop.f32.mrb[0].mxu0
        %v1734 = vadd.f32 0.0, %v1733
        %v1735 = vpop.f32.mrb[0].mxu0
        %1736 = vmatprep.mubr.f32.mxu0 0.0
        %1737 = vmatmul.mubr.f32.gmra.mrb[0].mxu0 %v1665
        %v1738 = vpop.f32.mrb[0].mxu0
        %v1739 = vadd.f32 0.0, %v1738
        %v1740 = vpop.f32.mrb[0].mxu0
        %1741 = vdwg.mxu0
        %v1742 = vpack.c.bf16 %v1739, %v1734
        %s1743 = scalar_lea.vmem [#allocation6], 128
        %v1744 = vld [vmem:[%s1743] sm:$0xf]
        %v1745 = vld [vmem:[%s1743 + $0x4] sm:$0xf]
        %v1746 = vld [vmem:[%s1743 + $0x8] sm:$0xf]
        %v1747 = vld [vmem:[%s1743 + $0xc] sm:$0xf]
        %v1748 = vld [vmem:[%s1743 + $0x10] sm:$0xf]
        %v1749 = vld [vmem:[%s1743 + $0x14] sm:$0xf]
        %v1750 = vld [vmem:[%s1743 + $0x18] sm:$0xf]
        %v1751 = vld [vmem:[%s1743 + $0x1c] sm:$0xf]
        %v1752 = vld [vmem:[%s1743 + $0x20] sm:$0xf]
        %v1753 = vld [vmem:[%s1743 + $0x24] sm:$0xf]
        %v1754 = vld [vmem:[%s1743 + $0x28] sm:$0xf]
        %v1755 = vld [vmem:[%s1743 + $0x2c] sm:$0xf]
        %v1756 = vld [vmem:[%s1743 + $0x30] sm:$0xf]
        %v1757 = vld [vmem:[%s1743 + $0x34] sm:$0xf]
        %v1758 = vld [vmem:[%s1743 + $0x38] sm:$0xf]
        %v1759 = vld [vmem:[%s1743 + $0x3c] sm:$0xf]
        %v1776 = vunpack.c.l.b16 %v1744
        %v1777 = vunpack.c.l.b16 %v1745
        %v1778 = vunpack.c.l.b16 %v1746
        %v1779 = vunpack.c.l.b16 %v1747
        %v1780 = vunpack.c.l.b16 %v1748
        %v1781 = vunpack.c.l.b16 %v1749
        %v1782 = vunpack.c.l.b16 %v1750
        %v1783 = vunpack.c.l.b16 %v1751
        %v1784 = vunpack.c.l.b16 %v1752
        %v1785 = vunpack.c.l.b16 %v1753
        %v1786 = vunpack.c.l.b16 %v1754
        %v1787 = vunpack.c.l.b16 %v1755
        %v1788 = vunpack.c.l.b16 %v1756
        %v1789 = vunpack.c.l.b16 %v1757
        %v1790 = vunpack.c.l.b16 %v1758
        %v1791 = vunpack.c.l.b16 %v1759
        %v1792 = vpack.c.b16 %v1777, %v1776
        %v1793 = vpack.c.b16 %v1779, %v1778
        %v1794 = vpack.c.b16 %v1781, %v1780
        %v1795 = vpack.c.b16 %v1783, %v1782
        %v1796 = vpack.c.b16 %v1785, %v1784
        %v1797 = vpack.c.b16 %v1787, %v1786
        %v1798 = vpack.c.b16 %v1789, %v1788
        %v1799 = vpack.c.b16 %v1791, %v1790
        %1808 = vmatprep.subr.bf16.mxu0 0
        %1809 = vmatpush1.bf16.msra.mxu0 %v1792
        %1810 = vmatprep.subr.bf16.mxu0 0
        %1811 = vmatpush1.bf16.msra.mxu0 %v1793
        %1812 = vmatprep.subr.bf16.mxu0 0
        %1813 = vmatpush1.bf16.msra.mxu0 %v1794
        %1814 = vmatprep.subr.bf16.mxu0 0
        %1815 = vmatpush1.bf16.msra.mxu0 %v1795
        %1816 = vmatprep.subr.bf16.mxu0 0
        %1817 = vmatpush1.bf16.msra.mxu0 %v1796
        %1818 = vmatprep.subr.bf16.mxu0 0
        %1819 = vmatpush1.bf16.msra.mxu0 %v1797
        %1820 = vmatprep.subr.bf16.mxu0 0
        %1821 = vmatpush1.bf16.msra.mxu0 %v1798
        %1822 = vmatprep.subr.bf16.mxu0 0
        %1823 = vmatpush1.bf16.msra.mxu0 %v1799
        %1824 = vmatprep.subr.bf16.mxu0 0
        %1825 = vmatpush1.bf16.msra.mxu0 0
        %1826 = vmatprep.subr.bf16.mxu0 0
        %1827 = vmatpush1.bf16.msra.mxu0 0
        %1828 = vmatprep.subr.bf16.mxu0 0
        %1829 = vmatpush1.bf16.msra.mxu0 0
        %1830 = vmatprep.subr.bf16.mxu0 0
        %1831 = vmatpush1.bf16.msra.mxu0 0
        %1832 = vmatprep.subr.bf16.mxu0 0
        %1833 = vmatpush1.bf16.msra.mxu0 0
        %1834 = vmatprep.subr.bf16.mxu0 0
        %1835 = vmatpush1.bf16.msra.mxu0 0
        %1836 = vmatprep.subr.bf16.mxu0 0
        %1837 = vmatpush1.bf16.msra.mxu0 0
        %1838 = vmatprep.subr.bf16.mxu0 0
        %1839 = vmatpush1.bf16.msra.mxu0 0
        %1840 = vmatprep.mubr.bf16.mxu0 0
        %1841 = vmatmul.mubr.bf16.gmra.mrb[0].mxu0 %v1742
        %v1842 = vpop.f32.mrb[0].mxu0
        %v1843 = vadd.f32 0.0, %v1842
        %v1844 = vpop.f32.mrb[0].mxu0
        %v1845 = vpop.f32.mrb[0].mxu0
        %v1846 = vadd.f32 0.0, %v1845
        %v1847 = vpop.f32.mrb[0].mxu0
        %1848 = vdwg.mxu0
        %v1849 = vadd.f32 %v1652, %v1843
        %v1850 = vadd.f32 %v1655, %v1846
        %v1851 = vld [vmem:[%s6] sm:$0x1]
        %v1853 = vlaneseq
        %v1854 = vshrl.u32 %v1853, 7
        %v1855 = vsub.s32 0, %v1854
        %v1856 = vrot.slane %v1851, %v1855
        %v1858 = vadd.f32 %v1849, %v1856
        %v1859 = vadd.f32 %v1850, %v1856
        %v1860 = vxor.u32 %v1858, 2147483648
        %v1861 = vxor.u32 %v1859, 2147483648
        %v1862 = vmul.f32 %v1860, 1.442695
        %v1863 = vpow.pop %v1862
        %v1864 = vmul.f32 %v1861, 1.442695
        %v1865 = vpow.pop %v1864
        %v1866 = vadd.f32 %v1863, 1.0
        %v1867 = vadd.f32 %v1865, 1.0
        %v1868 = vrcp.pop %v1866
        %v1869 = vmul.f32 1.0, %v1868
        %v1870 = vrcp.pop %v1867
        %v1871 = vmul.f32 1.0, %v1870
        %v1872 = vmul.f32 %v1858, %v1869
        %v1873 = vmul.f32 %v1859, %v1871
        %v1874 = vld [vmem:[#allocation12] sm:$0xff]
        %v1875 = vld [vmem:[#allocation12 + $0x8] sm:$0xff]
        %v1876 = vld [vmem:[#allocation12 + $0x10] sm:$0xff]
        %v1877 = vld [vmem:[#allocation12 + $0x18] sm:$0xff]
        %v1878 = vld [vmem:[#allocation12 + $0x20] sm:$0xff]
        %v1879 = vld [vmem:[#allocation12 + $0x28] sm:$0xff]
        %v1880 = vld [vmem:[#allocation12 + $0x30] sm:$0xff]
        %v1881 = vld [vmem:[#allocation12 + $0x38] sm:$0xff]
        %v1883 = vsel %vm1204, %v1872, 0
        %v1886 = vsel %vm1204, %v1873, 0
        %1888 = vmatprep.subr.mxu0 0.0
        %1889 = vmatpush1.msra.mxu0 %v1874
        %1890 = vmatprep.subr.mxu0 0.0
        %1891 = vmatpush1.msra.mxu0 %v1875
        %1892 = vmatprep.subr.mxu0 0.0
        %1893 = vmatpush1.msra.mxu0 %v1876
        %1894 = vmatprep.subr.mxu0 0.0
        %1895 = vmatpush1.msra.mxu0 %v1877
        %1896 = vmatprep.subr.mxu0 0.0
        %1897 = vmatpush1.msra.mxu0 %v1878
        %1898 = vmatprep.subr.mxu0 0.0
        %1899 = vmatpush1.msra.mxu0 %v1879
        %1900 = vmatprep.subr.mxu0 0.0
        %1901 = vmatpush1.msra.mxu0 %v1880
        %1902 = vmatprep.subr.mxu0 0.0
        %1903 = vmatpush1.msra.mxu0 %v1881
        %1904 = vmatprep.subr.mxu0 0.0
        %1905 = vmatpush1.msra.mxu0 0.0
        %1906 = vmatprep.subr.mxu0 0.0
        %1907 = vmatpush1.msra.mxu0 0.0
        %1908 = vmatprep.subr.mxu0 0.0
        %1909 = vmatpush1.msra.mxu0 0.0
        %1910 = vmatprep.subr.mxu0 0.0
        %1911 = vmatpush1.msra.mxu0 0.0
        %1912 = vmatprep.subr.mxu0 0.0
        %1913 = vmatpush1.msra.mxu0 0.0
        %1914 = vmatprep.subr.mxu0 0.0
        %1915 = vmatpush1.msra.mxu0 0.0
        %1916 = vmatprep.subr.mxu0 0.0
        %1917 = vmatpush1.msra.mxu0 0.0
        %1918 = vmatprep.subr.mxu0 0.0
        %1919 = vmatpush1.msra.mxu0 0.0
        %1920 = vmatprep.subr.mxu0 0.0
        %1921 = vmatpush1.msra.mxu0 0.0
        %1922 = vmatprep.subr.mxu0 0.0
        %1923 = vmatpush1.msra.mxu0 0.0
        %1924 = vmatprep.subr.mxu0 0.0
        %1925 = vmatpush1.msra.mxu0 0.0
        %1926 = vmatprep.subr.mxu0 0.0
        %1927 = vmatpush1.msra.mxu0 0.0
        %1928 = vmatprep.subr.mxu0 0.0
        %1929 = vmatpush1.msra.mxu0 0.0
        %1930 = vmatprep.subr.mxu0 0.0
        %1931 = vmatpush1.msra.mxu0 0.0
        %1932 = vmatprep.subr.mxu0 0.0
        %1933 = vmatpush1.msra.mxu0 0.0
        %1934 = vmatprep.subr.mxu0 0.0
        %1935 = vmatpush1.msra.mxu0 0.0
        %1936 = vmatprep.subr.mxu0 0.0
        %1937 = vmatpush1.msra.mxu0 0.0
        %1938 = vmatprep.subr.mxu0 0.0
        %1939 = vmatpush1.msra.mxu0 0.0
        %1940 = vmatprep.subr.mxu0 0.0
        %1941 = vmatpush1.msra.mxu0 0.0
        %1942 = vmatprep.subr.mxu0 0.0
        %1943 = vmatpush1.msra.mxu0 0.0
        %1944 = vmatprep.subr.mxu0 0.0
        %1945 = vmatpush1.msra.mxu0 0.0
        %1946 = vmatprep.subr.mxu0 0.0
        %1947 = vmatpush1.msra.mxu0 0.0
        %1948 = vmatprep.subr.mxu0 0.0
        %1949 = vmatpush1.msra.mxu0 0.0
        %1950 = vmatprep.subr.mxu0 0.0
        %1951 = vmatpush1.msra.mxu0 0.0
        %1952 = vmatprep.mubr.f32.mxu0 0.0
        %1953 = vmatmul.mubr.f32.gmra.mrb[0].mxu0 %v1883
        %v1954 = vpop.f32.mrb[0].mxu0
        %v1955 = vadd.f32 0.0, %v1954
        %v1956 = vpop.f32.mrb[0].mxu0
        %1957 = vmatprep.mubr.f32.mxu0 0.0
        %1958 = vmatmul.mubr.f32.gmra.mrb[0].mxu0 %v1886
        %v1959 = vpop.f32.mrb[0].mxu0
        %v1960 = vadd.f32 0.0, %v1959
        %v1961 = vpop.f32.mrb[0].mxu0
        %1962 = vdwg.mxu0
        %v1963 = vld [vmem:[#allocation7] sm:$0xff]
        %v1964 = vld [vmem:[#allocation7 + $0x8] sm:$0xff]
        %v1965 = vld [vmem:[#allocation7 + $0x10] sm:$0xff]
        %v1966 = vld [vmem:[#allocation7 + $0x18] sm:$0xff]
        %vm1967 = vcmask 130048
        %v1969 = vsel %vm1967, %v1963, 0
        %v1972 = vsel %vm1967, %v1964, 0
        %v1975 = vsel %vm1967, %v1965, 0
        %v1978 = vsel %vm1967, %v1966, 0
        %1980 = vmatprep.subr.mxu0 0.0
        %1981 = vmatpush1.msra.mxu0 %v1955
        %1982 = vmatprep.subr.mxu0 0.0
        %1983 = vmatpush1.msra.mxu0 %v1960
        %1984 = vmatprep.subr.mxu0 0.0
        %1985 = vmatpush1.msra.mxu0 0.0
        %1986 = vmatprep.subr.mxu0 0.0
        %1987 = vmatpush1.msra.mxu0 0.0
        %1988 = vmatprep.subr.mxu0 0.0
        %1989 = vmatpush1.msra.mxu0 0.0
        %1990 = vmatprep.subr.mxu0 0.0
        %1991 = vmatpush1.msra.mxu0 0.0
        %1992 = vmatprep.subr.mxu0 0.0
        %1993 = vmatpush1.msra.mxu0 0.0
        %1994 = vmatprep.subr.mxu0 0.0
        %1995 = vmatpush1.msra.mxu0 0.0
        %1996 = vmatprep.subr.mxu0 0.0
        %1997 = vmatpush1.msra.mxu0 0.0
        %1998 = vmatprep.subr.mxu0 0.0
        %1999 = vmatpush1.msra.mxu0 0.0
        %2000 = vmatprep.subr.mxu0 0.0
        %2001 = vmatpush1.msra.mxu0 0.0
        %2002 = vmatprep.subr.mxu0 0.0
        %2003 = vmatpush1.msra.mxu0 0.0
        %2004 = vmatprep.subr.mxu0 0.0
        %2005 = vmatpush1.msra.mxu0 0.0
        %2006 = vmatprep.subr.mxu0 0.0
        %2007 = vmatpush1.msra.mxu0 0.0
        %2008 = vmatprep.subr.mxu0 0.0
        %2009 = vmatpush1.msra.mxu0 0.0
        %2010 = vmatprep.subr.mxu0 0.0
        %2011 = vmatpush1.msra.mxu0 0.0
        %2012 = vmatprep.subr.mxu0 0.0
        %2013 = vmatpush1.msra.mxu0 0.0
        %2014 = vmatprep.subr.mxu0 0.0
        %2015 = vmatpush1.msra.mxu0 0.0
        %2016 = vmatprep.subr.mxu0 0.0
        %2017 = vmatpush1.msra.mxu0 0.0
        %2018 = vmatprep.subr.mxu0 0.0
        %2019 = vmatpush1.msra.mxu0 0.0
        %2020 = vmatprep.subr.mxu0 0.0
        %2021 = vmatpush1.msra.mxu0 0.0
        %2022 = vmatprep.subr.mxu0 0.0
        %2023 = vmatpush1.msra.mxu0 0.0
        %2024 = vmatprep.subr.mxu0 0.0
        %2025 = vmatpush1.msra.mxu0 0.0
        %2026 = vmatprep.subr.mxu0 0.0
        %2027 = vmatpush1.msra.mxu0 0.0
        %2028 = vmatprep.subr.mxu0 0.0
        %2029 = vmatpush1.msra.mxu0 0.0
        %2030 = vmatprep.subr.mxu0 0.0
        %2031 = vmatpush1.msra.mxu0 0.0
        %2032 = vmatprep.subr.mxu0 0.0
        %2033 = vmatpush1.msra.mxu0 0.0
        %2034 = vmatprep.subr.mxu0 0.0
        %2035 = vmatpush1.msra.mxu0 0.0
        %2036 = vmatprep.subr.mxu0 0.0
        %2037 = vmatpush1.msra.mxu0 0.0
        %2038 = vmatprep.subr.mxu0 0.0
        %2039 = vmatpush1.msra.mxu0 0.0
        %2040 = vmatprep.subr.mxu0 0.0
        %2041 = vmatpush1.msra.mxu0 0.0
        %2042 = vmatprep.subr.mxu0 0.0
        %2043 = vmatpush1.msra.mxu0 0.0
        %2044 = vmatprep.mubr.f32.mxu0 0.0
        %2045 = vmatmul.mubr.f32.gmra.mrb[0].mxu0 %v1969
        %v2046 = vpop.f32.mrb[0].mxu0
        %v2047 = vadd.f32 0.0, %v2046
        %v2048 = vpop.f32.mrb[0].mxu0
        %2049 = vmatprep.mubr.f32.mxu0 0.0
        %2050 = vmatmul.mubr.f32.gmra.mrb[0].mxu0 %v1972
        %v2051 = vpop.f32.mrb[0].mxu0
        %v2052 = vadd.f32 0.0, %v2051
        %v2053 = vpop.f32.mrb[0].mxu0
        %2054 = vmatprep.mubr.f32.mxu0 0.0
        %2055 = vmatmul.mubr.f32.gmra.mrb[0].mxu0 %v1975
        %v2056 = vpop.f32.mrb[0].mxu0
        %v2057 = vadd.f32 0.0, %v2056
        %v2058 = vpop.f32.mrb[0].mxu0
        %2059 = vmatprep.mubr.f32.mxu0 0.0
        %2060 = vmatmul.mubr.f32.gmra.mrb[0].mxu0 %v1978
        %v2061 = vpop.f32.mrb[0].mxu0
        %v2062 = vadd.f32 0.0, %v2061
        %v2063 = vpop.f32.mrb[0].mxu0
        %2064 = vdwg.mxu0
        %v2065 = vpack.c.bf16 %v2052, %v2047
        %v2066 = vpack.c.bf16 %v2062, %v2057
        %v2067 = vld [vmem:[%s8] sm:$0xf]
        %v2068 = vld [vmem:[%s8 + $0x4] sm:$0xf]
        %v2069 = vld [vmem:[%s8 + $0x8] sm:$0xf]
        %v2070 = vld [vmem:[%s8 + $0xc] sm:$0xf]
        %v2071 = vld [vmem:[%s8 + $0x10] sm:$0xf]
        %v2072 = vld [vmem:[%s8 + $0x14] sm:$0xf]
        %v2073 = vld [vmem:[%s8 + $0x18] sm:$0xf]
        %v2074 = vld [vmem:[%s8 + $0x1c] sm:$0xf]
        %v2075 = vld [vmem:[%s8 + $0x20] sm:$0xf]
        %v2076 = vld [vmem:[%s8 + $0x24] sm:$0xf]
        %v2077 = vld [vmem:[%s8 + $0x28] sm:$0xf]
        %v2078 = vld [vmem:[%s8 + $0x2c] sm:$0xf]
        %v2079 = vld [vmem:[%s8 + $0x30] sm:$0xf]
        %v2080 = vld [vmem:[%s8 + $0x34] sm:$0xf]
        %v2081 = vld [vmem:[%s8 + $0x38] sm:$0xf]
        %v2082 = vld [vmem:[%s8 + $0x3c] sm:$0xf]
        %s2083 = scalar_lea.vmem [#allocation7], 32
        %v2084 = vld [vmem:[%s2083] sm:$0xff]
        %v2085 = vld [vmem:[%s2083 + $0x8] sm:$0xff]
        %v2086 = vld [vmem:[%s2083 + $0x10] sm:$0xff]
        %v2087 = vld [vmem:[%s2083 + $0x18] sm:$0xff]
        %v2089 = vsel %vm1967, %v2084, 0
        %v2092 = vsel %vm1967, %v2085, 0
        %v2095 = vsel %vm1967, %v2086, 0
        %v2098 = vsel %vm1967, %v2087, 0
        %2100 = vmatprep.subr.mxu0 0.0
        %2101 = vmatpush1.msra.mxu0 %v1955
        %2102 = vmatprep.subr.mxu0 0.0
        %2103 = vmatpush1.msra.mxu0 %v1960
        %2104 = vmatprep.subr.mxu0 0.0
        %2105 = vmatpush1.msra.mxu0 0.0
        %2106 = vmatprep.subr.mxu0 0.0
        %2107 = vmatpush1.msra.mxu0 0.0
        %2108 = vmatprep.subr.mxu0 0.0
        %2109 = vmatpush1.msra.mxu0 0.0
        %2110 = vmatprep.subr.mxu0 0.0
        %2111 = vmatpush1.msra.mxu0 0.0
        %2112 = vmatprep.subr.mxu0 0.0
        %2113 = vmatpush1.msra.mxu0 0.0
        %2114 = vmatprep.subr.mxu0 0.0
        %2115 = vmatpush1.msra.mxu0 0.0
        %2116 = vmatprep.subr.mxu0 0.0
        %2117 = vmatpush1.msra.mxu0 0.0
        %2118 = vmatprep.subr.mxu0 0.0
        %2119 = vmatpush1.msra.mxu0 0.0
        %2120 = vmatprep.subr.mxu0 0.0
        %2121 = vmatpush1.msra.mxu0 0.0
        %2122 = vmatprep.subr.mxu0 0.0
        %2123 = vmatpush1.msra.mxu0 0.0
        %2124 = vmatprep.subr.mxu0 0.0
        %2125 = vmatpush1.msra.mxu0 0.0
        %2126 = vmatprep.subr.mxu0 0.0
        %2127 = vmatpush1.msra.mxu0 0.0
        %2128 = vmatprep.subr.mxu0 0.0
        %2129 = vmatpush1.msra.mxu0 0.0
        %2130 = vmatprep.subr.mxu0 0.0
        %2131 = vmatpush1.msra.mxu0 0.0
        %2132 = vmatprep.subr.mxu0 0.0
        %2133 = vmatpush1.msra.mxu0 0.0
        %2134 = vmatprep.subr.mxu0 0.0
        %2135 = vmatpush1.msra.mxu0 0.0
        %2136 = vmatprep.subr.mxu0 0.0
        %2137 = vmatpush1.msra.mxu0 0.0
        %2138 = vmatprep.subr.mxu0 0.0
        %2139 = vmatpush1.msra.mxu0 0.0
        %2140 = vmatprep.subr.mxu0 0.0
        %2141 = vmatpush1.msra.mxu0 0.0
        %2142 = vmatprep.subr.mxu0 0.0
        %2143 = vmatpush1.msra.mxu0 0.0
        %2144 = vmatprep.subr.mxu0 0.0
        %2145 = vmatpush1.msra.mxu0 0.0
        %2146 = vmatprep.subr.mxu0 0.0
        %2147 = vmatpush1.msra.mxu0 0.0
        %2148 = vmatprep.subr.mxu0 0.0
        %2149 = vmatpush1.msra.mxu0 0.0
        %2150 = vmatprep.subr.mxu0 0.0
        %2151 = vmatpush1.msra.mxu0 0.0
        %2152 = vmatprep.subr.mxu0 0.0
        %2153 = vmatpush1.msra.mxu0 0.0
        %2154 = vmatprep.subr.mxu0 0.0
        %2155 = vmatpush1.msra.mxu0 0.0
        %2156 = vmatprep.subr.mxu0 0.0
        %2157 = vmatpush1.msra.mxu0 0.0
        %2158 = vmatprep.subr.mxu0 0.0
        %2159 = vmatpush1.msra.mxu0 0.0
        %2160 = vmatprep.subr.mxu0 0.0
        %2161 = vmatpush1.msra.mxu0 0.0
        %2162 = vmatprep.subr.mxu0 0.0
        %2163 = vmatpush1.msra.mxu0 0.0
        %2164 = vmatprep.mubr.f32.mxu0 0.0
        %2165 = vmatmul.mubr.f32.gmra.mrb[0].mxu0 %v2089
        %v2166 = vpop.f32.mrb[0].mxu0
        %v2167 = vadd.f32 0.0, %v2166
        %v2168 = vpop.f32.mrb[0].mxu0
        %2169 = vmatprep.mubr.f32.mxu0 0.0
        %2170 = vmatmul.mubr.f32.gmra.mrb[0].mxu0 %v2092
        %v2171 = vpop.f32.mrb[0].mxu0
        %v2172 = vadd.f32 0.0, %v2171
        %v2173 = vpop.f32.mrb[0].mxu0
        %2174 = vmatprep.mubr.f32.mxu0 0.0
        %2175 = vmatmul.mubr.f32.gmra.mrb[0].mxu0 %v2095
        %v2176 = vpop.f32.mrb[0].mxu0
        %v2177 = vadd.f32 0.0, %v2176
        %v2178 = vpop.f32.mrb[0].mxu0
        %2179 = vmatprep.mubr.f32.mxu0 0.0
        %2180 = vmatmul.mubr.f32.gmra.mrb[0].mxu0 %v2098
        %v2181 = vpop.f32.mrb[0].mxu0
        %v2182 = vadd.f32 0.0, %v2181
        %v2183 = vpop.f32.mrb[0].mxu0
        %2184 = vdwg.mxu0
        %v2185 = vpack.c.bf16 %v2172, %v2167
        %v2186 = vpack.c.bf16 %v2182, %v2177
        %s2187 = scalar_lea.vmem %s8, 64
        %v2188 = vld [vmem:[%s2187] sm:$0xf]
        %v2189 = vld [vmem:[%s2187 + $0x4] sm:$0xf]
        %v2190 = vld [vmem:[%s2187 + $0x8] sm:$0xf]
        %v2191 = vld [vmem:[%s2187 + $0xc] sm:$0xf]
        %v2192 = vld [vmem:[%s2187 + $0x10] sm:$0xf]
        %v2193 = vld [vmem:[%s2187 + $0x14] sm:$0xf]
        %v2194 = vld [vmem:[%s2187 + $0x18] sm:$0xf]
        %v2195 = vld [vmem:[%s2187 + $0x1c] sm:$0xf]
        %v2196 = vld [vmem:[%s2187 + $0x20] sm:$0xf]
        %v2197 = vld [vmem:[%s2187 + $0x24] sm:$0xf]
        %v2198 = vld [vmem:[%s2187 + $0x28] sm:$0xf]
        %v2199 = vld [vmem:[%s2187 + $0x2c] sm:$0xf]
        %v2200 = vld [vmem:[%s2187 + $0x30] sm:$0xf]
        %v2201 = vld [vmem:[%s2187 + $0x34] sm:$0xf]
        %v2202 = vld [vmem:[%s2187 + $0x38] sm:$0xf]
        %v2203 = vld [vmem:[%s2187 + $0x3c] sm:$0xf]
        %v2220 = vunpack.c.l.b16 %v2188
        %v2221 = vunpack.c.l.b16 %v2189
        %v2222 = vunpack.c.l.b16 %v2190
        %v2223 = vunpack.c.l.b16 %v2191
        %v2224 = vunpack.c.l.b16 %v2192
        %v2225 = vunpack.c.l.b16 %v2193
        %v2226 = vunpack.c.l.b16 %v2194
        %v2227 = vunpack.c.l.b16 %v2195
        %v2228 = vunpack.c.l.b16 %v2196
        %v2229 = vunpack.c.l.b16 %v2197
        %v2230 = vunpack.c.l.b16 %v2198
        %v2231 = vunpack.c.l.b16 %v2199
        %v2232 = vunpack.c.l.b16 %v2200
        %v2233 = vunpack.c.l.b16 %v2201
        %v2234 = vunpack.c.l.b16 %v2202
        %v2235 = vunpack.c.l.b16 %v2203
        %v2236 = vpack.c.b16 %v2221, %v2220
        %v2237 = vpack.c.b16 %v2223, %v2222
        %v2238 = vpack.c.b16 %v2225, %v2224
        %v2239 = vpack.c.b16 %v2227, %v2226
        %v2240 = vpack.c.b16 %v2229, %v2228
        %v2241 = vpack.c.b16 %v2231, %v2230
        %v2242 = vpack.c.b16 %v2233, %v2232
        %v2243 = vpack.c.b16 %v2235, %v2234
        %2252 = vmatprep.subr.bf16.mxu0 0
        %2253 = vmatpush1.bf16.msra.mxu0 %v2236
        %2254 = vmatprep.subr.bf16.mxu0 0
        %2255 = vmatpush1.bf16.msra.mxu0 %v2237
        %2256 = vmatprep.subr.bf16.mxu0 0
        %2257 = vmatpush1.bf16.msra.mxu0 %v2238
        %2258 = vmatprep.subr.bf16.mxu0 0
        %2259 = vmatpush1.bf16.msra.mxu0 %v2239
        %2260 = vmatprep.subr.bf16.mxu0 0
        %2261 = vmatpush1.bf16.msra.mxu0 %v2240
        %2262 = vmatprep.subr.bf16.mxu0 0
        %2263 = vmatpush1.bf16.msra.mxu0 %v2241
        %2264 = vmatprep.subr.bf16.mxu0 0
        %2265 = vmatpush1.bf16.msra.mxu0 %v2242
        %2266 = vmatprep.subr.bf16.mxu0 0
        %2267 = vmatpush1.bf16.msra.mxu0 %v2243
        %2268 = vmatprep.subr.bf16.mxu0 0
        %2269 = vmatpush1.bf16.msra.mxu0 0
        %2270 = vmatprep.subr.bf16.mxu0 0
        %2271 = vmatpush1.bf16.msra.mxu0 0
        %2272 = vmatprep.subr.bf16.mxu0 0
        %2273 = vmatpush1.bf16.msra.mxu0 0
        %2274 = vmatprep.subr.bf16.mxu0 0
        %2275 = vmatpush1.bf16.msra.mxu0 0
        %2276 = vmatprep.subr.bf16.mxu0 0
        %2277 = vmatpush1.bf16.msra.mxu0 0
        %2278 = vmatprep.subr.bf16.mxu0 0
        %2279 = vmatpush1.bf16.msra.mxu0 0
        %2280 = vmatprep.subr.bf16.mxu0 0
        %2281 = vmatpush1.bf16.msra.mxu0 0
        %2282 = vmatprep.subr.bf16.mxu0 0
        %2283 = vmatpush1.bf16.msra.mxu0 0
        %2284 = vmatprep.mubr.bf16.mxu0 0
        %2285 = vmatmul.mubr.bf16.gmra.mrb[0].mxu0 %v2185
        %v2286 = vpop.f32.mrb[0].mxu0
        %v2287 = vadd.f32 0.0, %v2286
        %v2288 = vpop.f32.mrb[0].mxu0
        %v2289 = vpop.f32.mrb[0].mxu0
        %v2290 = vadd.f32 0.0, %v2289
        %v2291 = vpop.f32.mrb[0].mxu0
        %2292 = vmatprep.mubr.bf16.mxu0 0
        %2293 = vmatmul.mubr.bf16.gmra.mrb[0].mxu0 %v2186
        %v2294 = vpop.f32.mrb[0].mxu0
        %v2295 = vadd.f32 0.0, %v2294
        %v2296 = vpop.f32.mrb[0].mxu0
        %v2297 = vpop.f32.mrb[0].mxu0
        %v2298 = vadd.f32 0.0, %v2297
        %v2299 = vpop.f32.mrb[0].mxu0
        %2300 = vdwg.mxu0
        %v2317 = vunpack.c.l.b16 %v2067
        %v2318 = vunpack.c.l.b16 %v2068
        %v2319 = vunpack.c.l.b16 %v2069
        %v2320 = vunpack.c.l.b16 %v2070
        %v2321 = vunpack.c.l.b16 %v2071
        %v2322 = vunpack.c.l.b16 %v2072
        %v2323 = vunpack.c.l.b16 %v2073
        %v2324 = vunpack.c.l.b16 %v2074
        %v2325 = vunpack.c.l.b16 %v2075
        %v2326 = vunpack.c.l.b16 %v2076
        %v2327 = vunpack.c.l.b16 %v2077
        %v2328 = vunpack.c.l.b16 %v2078
        %v2329 = vunpack.c.l.b16 %v2079
        %v2330 = vunpack.c.l.b16 %v2080
        %v2331 = vunpack.c.l.b16 %v2081
        %v2332 = vunpack.c.l.b16 %v2082
        %v2333 = vpack.c.b16 %v2318, %v2317
        %v2334 = vpack.c.b16 %v2320, %v2319
        %v2335 = vpack.c.b16 %v2322, %v2321
        %v2336 = vpack.c.b16 %v2324, %v2323
        %v2337 = vpack.c.b16 %v2326, %v2325
        %v2338 = vpack.c.b16 %v2328, %v2327
        %v2339 = vpack.c.b16 %v2330, %v2329
        %v2340 = vpack.c.b16 %v2332, %v2331
        %2349 = vmatprep.subr.bf16.mxu0 0
        %2350 = vmatpush1.bf16.msra.mxu0 %v2333
        %2351 = vmatprep.subr.bf16.mxu0 0
        %2352 = vmatpush1.bf16.msra.mxu0 %v2334
        %2353 = vmatprep.subr.bf16.mxu0 0
        %2354 = vmatpush1.bf16.msra.mxu0 %v2335
        %2355 = vmatprep.subr.bf16.mxu0 0
        %2356 = vmatpush1.bf16.msra.mxu0 %v2336
        %2357 = vmatprep.subr.bf16.mxu0 0
        %2358 = vmatpush1.bf16.msra.mxu0 %v2337
        %2359 = vmatprep.subr.bf16.mxu0 0
        %2360 = vmatpush1.bf16.msra.mxu0 %v2338
        %2361 = vmatprep.subr.bf16.mxu0 0
        %2362 = vmatpush1.bf16.msra.mxu0 %v2339
        %2363 = vmatprep.subr.bf16.mxu0 0
        %2364 = vmatpush1.bf16.msra.mxu0 %v2340
        %2365 = vmatprep.subr.bf16.mxu0 0
        %2366 = vmatpush1.bf16.msra.mxu0 0
        %2367 = vmatprep.subr.bf16.mxu0 0
        %2368 = vmatpush1.bf16.msra.mxu0 0
        %2369 = vmatprep.subr.bf16.mxu0 0
        %2370 = vmatpush1.bf16.msra.mxu0 0
        %2371 = vmatprep.subr.bf16.mxu0 0
        %2372 = vmatpush1.bf16.msra.mxu0 0
        %2373 = vmatprep.subr.bf16.mxu0 0
        %2374 = vmatpush1.bf16.msra.mxu0 0
        %2375 = vmatprep.subr.bf16.mxu0 0
        %2376 = vmatpush1.bf16.msra.mxu0 0
        %2377 = vmatprep.subr.bf16.mxu0 0
        %2378 = vmatpush1.bf16.msra.mxu0 0
        %2379 = vmatprep.subr.bf16.mxu0 0
        %2380 = vmatpush1.bf16.msra.mxu0 0
        %2381 = vmatprep.mubr.bf16.mxu0 0
        %2382 = vmatmul.mubr.bf16.gmra.mrb[0].mxu0 %v2065
        %v2383 = vpop.f32.mrb[0].mxu0
        %v2384 = vadd.f32 %v2287, %v2383
        %v2385 = vpop.f32.mrb[0].mxu0
        %v2386 = vpop.f32.mrb[0].mxu0
        %v2387 = vadd.f32 %v2290, %v2386
        %v2388 = vpop.f32.mrb[0].mxu0
        %2389 = vmatprep.mubr.bf16.mxu0 0
        %2390 = vmatmul.mubr.bf16.gmra.mrb[0].mxu0 %v2066
        %v2391 = vpop.f32.mrb[0].mxu0
        %v2392 = vadd.f32 %v2295, %v2391
        %v2393 = vpop.f32.mrb[0].mxu0
        %v2394 = vpop.f32.mrb[0].mxu0
        %v2395 = vadd.f32 %v2298, %v2394
        %v2396 = vpop.f32.mrb[0].mxu0
        %2397 = vdwg.mxu0
        %s2398 = scalar_lea.vmem [#allocation7], 64
        %v2399 = vld [vmem:[%s2398] sm:$0xff]
        %v2400 = vld [vmem:[%s2398 + $0x8] sm:$0xff]
        %v2401 = vld [vmem:[%s2398 + $0x10] sm:$0xff]
        %v2402 = vld [vmem:[%s2398 + $0x18] sm:$0xff]
        %v2404 = vsel %vm1967, %v2399, 0
        %v2407 = vsel %vm1967, %v2400, 0
        %v2410 = vsel %vm1967, %v2401, 0
        %v2413 = vsel %vm1967, %v2402, 0
        %2415 = vmatprep.subr.mxu0 0.0
        %2416 = vmatpush1.msra.mxu0 %v1955
        %2417 = vmatprep.subr.mxu0 0.0
        %2418 = vmatpush1.msra.mxu0 %v1960
        %2419 = vmatprep.subr.mxu0 0.0
        %2420 = vmatpush1.msra.mxu0 0.0
        %2421 = vmatprep.subr.mxu0 0.0
        %2422 = vmatpush1.msra.mxu0 0.0
        %2423 = vmatprep.subr.mxu0 0.0
        %2424 = vmatpush1.msra.mxu0 0.0
        %2425 = vmatprep.subr.mxu0 0.0
        %2426 = vmatpush1.msra.mxu0 0.0
        %2427 = vmatprep.subr.mxu0 0.0
        %2428 = vmatpush1.msra.mxu0 0.0
        %2429 = vmatprep.subr.mxu0 0.0
        %2430 = vmatpush1.msra.mxu0 0.0
        %2431 = vmatprep.subr.mxu0 0.0
        %2432 = vmatpush1.msra.mxu0 0.0
        %2433 = vmatprep.subr.mxu0 0.0
        %2434 = vmatpush1.msra.mxu0 0.0
        %2435 = vmatprep.subr.mxu0 0.0
        %2436 = vmatpush1.msra.mxu0 0.0
        %2437 = vmatprep.subr.mxu0 0.0
        %2438 = vmatpush1.msra.mxu0 0.0
        %2439 = vmatprep.subr.mxu0 0.0
        %2440 = vmatpush1.msra.mxu0 0.0
        %2441 = vmatprep.subr.mxu0 0.0
        %2442 = vmatpush1.msra.mxu0 0.0
        %2443 = vmatprep.subr.mxu0 0.0
        %2444 = vmatpush1.msra.mxu0 0.0
        %2445 = vmatprep.subr.mxu0 0.0
        %2446 = vmatpush1.msra.mxu0 0.0
        %2447 = vmatprep.subr.mxu0 0.0
        %2448 = vmatpush1.msra.mxu0 0.0
        %2449 = vmatprep.subr.mxu0 0.0
        %2450 = vmatpush1.msra.mxu0 0.0
        %2451 = vmatprep.subr.mxu0 0.0
        %2452 = vmatpush1.msra.mxu0 0.0
        %2453 = vmatprep.subr.mxu0 0.0
        %2454 = vmatpush1.msra.mxu0 0.0
        %2455 = vmatprep.subr.mxu0 0.0
        %2456 = vmatpush1.msra.mxu0 0.0
        %2457 = vmatprep.subr.mxu0 0.0
        %2458 = vmatpush1.msra.mxu0 0.0
        %2459 = vmatprep.subr.mxu0 0.0
        %2460 = vmatpush1.msra.mxu0 0.0
        %2461 = vmatprep.subr.mxu0 0.0
        %2462 = vmatpush1.msra.mxu0 0.0
        %2463 = vmatprep.subr.mxu0 0.0
        %2464 = vmatpush1.msra.mxu0 0.0
        %2465 = vmatprep.subr.mxu0 0.0
        %2466 = vmatpush1.msra.mxu0 0.0
        %2467 = vmatprep.subr.mxu0 0.0
        %2468 = vmatpush1.msra.mxu0 0.0
        %2469 = vmatprep.subr.mxu0 0.0
        %2470 = vmatpush1.msra.mxu0 0.0
        %2471 = vmatprep.subr.mxu0 0.0
        %2472 = vmatpush1.msra.mxu0 0.0
        %2473 = vmatprep.subr.mxu0 0.0
        %2474 = vmatpush1.msra.mxu0 0.0
        %2475 = vmatprep.subr.mxu0 0.0
        %2476 = vmatpush1.msra.mxu0 0.0
        %2477 = vmatprep.subr.mxu0 0.0
        %2478 = vmatpush1.msra.mxu0 0.0
        %2479 = vmatprep.mubr.f32.mxu0 0.0
        %2480 = vmatmul.mubr.f32.gmra.mrb[0].mxu0 %v2404
        %v2481 = vpop.f32.mrb[0].mxu0
        %v2482 = vadd.f32 0.0, %v2481
        %v2483 = vpop.f32.mrb[0].mxu0
        %2484 = vmatprep.mubr.f32.mxu0 0.0
        %2485 = vmatmul.mubr.f32.gmra.mrb[0].mxu0 %v2407
        %v2486 = vpop.f32.mrb[0].mxu0
        %v2487 = vadd.f32 0.0, %v2486
        %v2488 = vpop.f32.mrb[0].mxu0
        %2489 = vmatprep.mubr.f32.mxu0 0.0
        %2490 = vmatmul.mubr.f32.gmra.mrb[0].mxu0 %v2410
        %v2491 = vpop.f32.mrb[0].mxu0
        %v2492 = vadd.f32 0.0, %v2491
        %v2493 = vpop.f32.mrb[0].mxu0
        %2494 = vmatprep.mubr.f32.mxu0 0.0
        %2495 = vmatmul.mubr.f32.gmra.mrb[0].mxu0 %v2413
        %v2496 = vpop.f32.mrb[0].mxu0
        %v2497 = vadd.f32 0.0, %v2496
        %v2498 = vpop.f32.mrb[0].mxu0
        %2499 = vdwg.mxu0
        %v2500 = vpack.c.bf16 %v2487, %v2482
        %v2501 = vpack.c.bf16 %v2497, %v2492
        %s2502 = scalar_lea.vmem %s8, 128
        %v2503 = vld [vmem:[%s2502] sm:$0xf]
        %v2504 = vld [vmem:[%s2502 + $0x4] sm:$0xf]
        %v2505 = vld [vmem:[%s2502 + $0x8] sm:$0xf]
        %v2506 = vld [vmem:[%s2502 + $0xc] sm:$0xf]
        %v2507 = vld [vmem:[%s2502 + $0x10] sm:$0xf]
        %v2508 = vld [vmem:[%s2502 + $0x14] sm:$0xf]
        %v2509 = vld [vmem:[%s2502 + $0x18] sm:$0xf]
        %v2510 = vld [vmem:[%s2502 + $0x1c] sm:$0xf]
        %v2511 = vld [vmem:[%s2502 + $0x20] sm:$0xf]
        %v2512 = vld [vmem:[%s2502 + $0x24] sm:$0xf]
        %v2513 = vld [vmem:[%s2502 + $0x28] sm:$0xf]
        %v2514 = vld [vmem:[%s2502 + $0x2c] sm:$0xf]
        %v2515 = vld [vmem:[%s2502 + $0x30] sm:$0xf]
        %v2516 = vld [vmem:[%s2502 + $0x34] sm:$0xf]
        %v2517 = vld [vmem:[%s2502 + $0x38] sm:$0xf]
        %v2518 = vld [vmem:[%s2502 + $0x3c] sm:$0xf]
        %v2535 = vunpack.c.l.b16 %v2503
        %v2536 = vunpack.c.l.b16 %v2504
        %v2537 = vunpack.c.l.b16 %v2505
        %v2538 = vunpack.c.l.b16 %v2506
        %v2539 = vunpack.c.l.b16 %v2507
        %v2540 = vunpack.c.l.b16 %v2508
        %v2541 = vunpack.c.l.b16 %v2509
        %v2542 = vunpack.c.l.b16 %v2510
        %v2543 = vunpack.c.l.b16 %v2511
        %v2544 = vunpack.c.l.b16 %v2512
        %v2545 = vunpack.c.l.b16 %v2513
        %v2546 = vunpack.c.l.b16 %v2514
        %v2547 = vunpack.c.l.b16 %v2515
        %v2548 = vunpack.c.l.b16 %v2516
        %v2549 = vunpack.c.l.b16 %v2517
        %v2550 = vunpack.c.l.b16 %v2518
        %v2551 = vpack.c.b16 %v2536, %v2535
        %v2552 = vpack.c.b16 %v2538, %v2537
        %v2553 = vpack.c.b16 %v2540, %v2539
        %v2554 = vpack.c.b16 %v2542, %v2541
        %v2555 = vpack.c.b16 %v2544, %v2543
        %v2556 = vpack.c.b16 %v2546, %v2545
        %v2557 = vpack.c.b16 %v2548, %v2547
        %v2558 = vpack.c.b16 %v2550, %v2549
        %2567 = vmatprep.subr.bf16.mxu0 0
        %2568 = vmatpush1.bf16.msra.mxu0 %v2551
        %2569 = vmatprep.subr.bf16.mxu0 0
        %2570 = vmatpush1.bf16.msra.mxu0 %v2552
        %2571 = vmatprep.subr.bf16.mxu0 0
        %2572 = vmatpush1.bf16.msra.mxu0 %v2553
        %2573 = vmatprep.subr.bf16.mxu0 0
        %2574 = vmatpush1.bf16.msra.mxu0 %v2554
        %2575 = vmatprep.subr.bf16.mxu0 0
        %2576 = vmatpush1.bf16.msra.mxu0 %v2555
        %2577 = vmatprep.subr.bf16.mxu0 0
        %2578 = vmatpush1.bf16.msra.mxu0 %v2556
        %2579 = vmatprep.subr.bf16.mxu0 0
        %2580 = vmatpush1.bf16.msra.mxu0 %v2557
        %2581 = vmatprep.subr.bf16.mxu0 0
        %2582 = vmatpush1.bf16.msra.mxu0 %v2558
        %2583 = vmatprep.subr.bf16.mxu0 0
        %2584 = vmatpush1.bf16.msra.mxu0 0
        %2585 = vmatprep.subr.bf16.mxu0 0
        %2586 = vmatpush1.bf16.msra.mxu0 0
        %2587 = vmatprep.subr.bf16.mxu0 0
        %2588 = vmatpush1.bf16.msra.mxu0 0
        %2589 = vmatprep.subr.bf16.mxu0 0
        %2590 = vmatpush1.bf16.msra.mxu0 0
        %2591 = vmatprep.subr.bf16.mxu0 0
        %2592 = vmatpush1.bf16.msra.mxu0 0
        %2593 = vmatprep.subr.bf16.mxu0 0
        %2594 = vmatpush1.bf16.msra.mxu0 0
        %2595 = vmatprep.subr.bf16.mxu0 0
        %2596 = vmatpush1.bf16.msra.mxu0 0
        %2597 = vmatprep.subr.bf16.mxu0 0
        %2598 = vmatpush1.bf16.msra.mxu0 0
        %2599 = vmatprep.mubr.bf16.mxu0 0
        %2600 = vmatmul.mubr.bf16.gmra.mrb[0].mxu0 %v2500
        %v2601 = vpop.f32.mrb[0].mxu0
        %v2602 = vadd.f32 0.0, %v2601
        %v2603 = vpop.f32.mrb[0].mxu0
        %v2604 = vpop.f32.mrb[0].mxu0
        %v2605 = vadd.f32 0.0, %v2604
        %v2606 = vpop.f32.mrb[0].mxu0
        %2607 = vmatprep.mubr.bf16.mxu0 0
        %2608 = vmatmul.mubr.bf16.gmra.mrb[0].mxu0 %v2501
        %v2609 = vpop.f32.mrb[0].mxu0
        %v2610 = vadd.f32 0.0, %v2609
        %v2611 = vpop.f32.mrb[0].mxu0
        %v2612 = vpop.f32.mrb[0].mxu0
        %v2613 = vadd.f32 0.0, %v2612
        %v2614 = vpop.f32.mrb[0].mxu0
        %2615 = vdwg.mxu0
        %v2616 = vadd.f32 %v2384, %v2602
        %v2617 = vadd.f32 %v2387, %v2605
        %v2618 = vadd.f32 %v2392, %v2610
        %v2619 = vadd.f32 %v2395, %v2613
        %v2620 = vld [vmem:[%s9] sm:$0x1]
        %v2622 = vlaneseq
        %v2623 = vshrl.u32 %v2622, 7
        %v2624 = vsub.s32 0, %v2623
        %v2625 = vrot.slane %v2620, %v2624
        %v2627 = vadd.f32 %v2616, %v2625
        %v2628 = vadd.f32 %v2617, %v2625
        %v2629 = vadd.f32 %v2618, %v2625
        %v2630 = vadd.f32 %v2619, %v2625
        %v2631 = vxor.u32 %v2627, 2147483648
        %v2632 = vxor.u32 %v2628, 2147483648
        %v2633 = vxor.u32 %v2629, 2147483648
        %v2634 = vxor.u32 %v2630, 2147483648
        %v2635 = vmul.f32 %v2631, 1.442695
        %v2636 = vpow.pop %v2635
        %v2637 = vmul.f32 %v2632, 1.442695
        %v2638 = vpow.pop %v2637
        %v2639 = vmul.f32 %v2633, 1.442695
        %v2640 = vpow.pop %v2639
        %v2641 = vmul.f32 %v2634, 1.442695
        %v2642 = vpow.pop %v2641
        %v2643 = vadd.f32 %v2636, 1.0
        %v2644 = vadd.f32 %v2638, 1.0
        %v2645 = vadd.f32 %v2640, 1.0
        %v2646 = vadd.f32 %v2642, 1.0
        %v2647 = vrcp.pop %v2643
        %v2648 = vmul.f32 1.0, %v2647
        %v2649 = vrcp.pop %v2644
        %v2650 = vmul.f32 1.0, %v2649
        %v2651 = vrcp.pop %v2645
        %v2652 = vmul.f32 1.0, %v2651
        %v2653 = vrcp.pop %v2646
        %v2654 = vmul.f32 1.0, %v2653
        %v2655 = vmul.f32 %v2627, %v2648
        %v2656 = vmul.f32 %v2628, %v2650
        %v2657 = vmul.f32 %v2629, %v2652
        %v2658 = vmul.f32 %v2630, %v2654
        %v2659 = vld [vmem:[#allocation13] sm:$0xff]
        %v2660 = vld [vmem:[#allocation13 + $0x8] sm:$0xff]
        %v2661 = vld [vmem:[#allocation13 + $0x10] sm:$0xff]
        %v2662 = vld [vmem:[#allocation13 + $0x18] sm:$0xff]
        %v2663 = vld [vmem:[#allocation13 + $0x20] sm:$0xff]
        %v2664 = vld [vmem:[#allocation13 + $0x28] sm:$0xff]
        %v2665 = vld [vmem:[#allocation13 + $0x30] sm:$0xff]
        %v2666 = vld [vmem:[#allocation13 + $0x38] sm:$0xff]
        %v2668 = vsel %vm1204, %v2655, 0
        %v2671 = vsel %vm1204, %v2656, 0
        %v2674 = vsel %vm1204, %v2657, 0
        %v2677 = vsel %vm1204, %v2658, 0
        %2679 = vmatprep.subr.mxu0 0.0
        %2680 = vmatpush1.msra.mxu0 %v2659
        %2681 = vmatprep.subr.mxu0 0.0
        %2682 = vmatpush1.msra.mxu0 %v2660
        %2683 = vmatprep.subr.mxu0 0.0
        %2684 = vmatpush1.msra.mxu0 %v2661
        %2685 = vmatprep.subr.mxu0 0.0
        %2686 = vmatpush1.msra.mxu0 %v2662
        %2687 = vmatprep.subr.mxu0 0.0
        %2688 = vmatpush1.msra.mxu0 %v2663
        %2689 = vmatprep.subr.mxu0 0.0
        %2690 = vmatpush1.msra.mxu0 %v2664
        %2691 = vmatprep.subr.mxu0 0.0
        %2692 = vmatpush1.msra.mxu0 %v2665
        %2693 = vmatprep.subr.mxu0 0.0
        %2694 = vmatpush1.msra.mxu0 %v2666
        %2695 = vmatprep.subr.mxu0 0.0
        %2696 = vmatpush1.msra.mxu0 0.0
        %2697 = vmatprep.subr.mxu0 0.0
        %2698 = vmatpush1.msra.mxu0 0.0
        %2699 = vmatprep.subr.mxu0 0.0
        %2700 = vmatpush1.msra.mxu0 0.0
        %2701 = vmatprep.subr.mxu0 0.0
        %2702 = vmatpush1.msra.mxu0 0.0
        %2703 = vmatprep.subr.mxu0 0.0
        %2704 = vmatpush1.msra.mxu0 0.0
        %2705 = vmatprep.subr.mxu0 0.0
        %2706 = vmatpush1.msra.mxu0 0.0
        %2707 = vmatprep.subr.mxu0 0.0
        %2708 = vmatpush1.msra.mxu0 0.0
        %2709 = vmatprep.subr.mxu0 0.0
        %2710 = vmatpush1.msra.mxu0 0.0
        %2711 = vmatprep.subr.mxu0 0.0
        %2712 = vmatpush1.msra.mxu0 0.0
        %2713 = vmatprep.subr.mxu0 0.0
        %2714 = vmatpush1.msra.mxu0 0.0
        %2715 = vmatprep.subr.mxu0 0.0
        %2716 = vmatpush1.msra.mxu0 0.0
        %2717 = vmatprep.subr.mxu0 0.0
        %2718 = vmatpush1.msra.mxu0 0.0
        %2719 = vmatprep.subr.mxu0 0.0
        %2720 = vmatpush1.msra.mxu0 0.0
        %2721 = vmatprep.subr.mxu0 0.0
        %2722 = vmatpush1.msra.mxu0 0.0
        %2723 = vmatprep.subr.mxu0 0.0
        %2724 = vmatpush1.msra.mxu0 0.0
        %2725 = vmatprep.subr.mxu0 0.0
        %2726 = vmatpush1.msra.mxu0 0.0
        %2727 = vmatprep.subr.mxu0 0.0
        %2728 = vmatpush1.msra.mxu0 0.0
        %2729 = vmatprep.subr.mxu0 0.0
        %2730 = vmatpush1.msra.mxu0 0.0
        %2731 = vmatprep.subr.mxu0 0.0
        %2732 = vmatpush1.msra.mxu0 0.0
        %2733 = vmatprep.subr.mxu0 0.0
        %2734 = vmatpush1.msra.mxu0 0.0
        %2735 = vmatprep.subr.mxu0 0.0
        %2736 = vmatpush1.msra.mxu0 0.0
        %2737 = vmatprep.subr.mxu0 0.0
        %2738 = vmatpush1.msra.mxu0 0.0
        %2739 = vmatprep.subr.mxu0 0.0
        %2740 = vmatpush1.msra.mxu0 0.0
        %2741 = vmatprep.subr.mxu0 0.0
        %2742 = vmatpush1.msra.mxu0 0.0
        %2743 = vmatprep.mubr.f32.mxu0 0.0
        %2744 = vmatmul.mubr.f32.gmra.mrb[0].mxu0 %v2668
        %v2745 = vpop.f32.mrb[0].mxu0
        %v2746 = vadd.f32 0.0, %v2745
        %v2747 = vpop.f32.mrb[0].mxu0
        %2748 = vmatprep.mubr.f32.mxu0 0.0
        %2749 = vmatmul.mubr.f32.gmra.mrb[0].mxu0 %v2671
        %v2750 = vpop.f32.mrb[0].mxu0
        %v2751 = vadd.f32 0.0, %v2750
        %v2752 = vpop.f32.mrb[0].mxu0
        %2753 = vmatprep.mubr.f32.mxu0 0.0
        %2754 = vmatmul.mubr.f32.gmra.mrb[0].mxu0 %v2674
        %v2755 = vpop.f32.mrb[0].mxu0
        %v2756 = vadd.f32 0.0, %v2755
        %v2757 = vpop.f32.mrb[0].mxu0
        %2758 = vmatprep.mubr.f32.mxu0 0.0
        %2759 = vmatmul.mubr.f32.gmra.mrb[0].mxu0 %v2677
        %v2760 = vpop.f32.mrb[0].mxu0
        %v2761 = vadd.f32 0.0, %v2760
        %v2762 = vpop.f32.mrb[0].mxu0
        %2763 = vdwg.mxu0
        %v2764 = vld [vmem:[#allocation9] sm:$0xff]
        %v2765 = vld [vmem:[#allocation9 + $0x8] sm:$0xff]
        %v2766 = vld [vmem:[#allocation9 + $0x10] sm:$0xff]
        %v2767 = vld [vmem:[#allocation9 + $0x18] sm:$0xff]
        %v2768 = vld [vmem:[#allocation9 + $0x20] sm:$0xff]
        %v2769 = vld [vmem:[#allocation9 + $0x28] sm:$0xff]
        %v2770 = vld [vmem:[#allocation9 + $0x30] sm:$0xff]
        %v2771 = vld [vmem:[#allocation9 + $0x38] sm:$0xff]
        %vm2772 = vcmask 261120
        %v2774 = vsel %vm2772, %v2764, 0
        %v2777 = vsel %vm2772, %v2765, 0
        %v2780 = vsel %vm2772, %v2766, 0
        %v2783 = vsel %vm2772, %v2767, 0
        %v2786 = vsel %vm2772, %v2768, 0
        %v2789 = vsel %vm2772, %v2769, 0
        %v2792 = vsel %vm2772, %v2770, 0
        %v2795 = vsel %vm2772, %v2771, 0
        %2797 = vmatprep.subr.mxu0 0.0
        %2798 = vmatpush1.msra.mxu0 %v2746
        %2799 = vmatprep.subr.mxu0 0.0
        %2800 = vmatpush1.msra.mxu0 %v2751
        %2801 = vmatprep.subr.mxu0 0.0
        %2802 = vmatpush1.msra.mxu0 %v2756
        %2803 = vmatprep.subr.mxu0 0.0
        %2804 = vmatpush1.msra.mxu0 %v2761
        %2805 = vmatprep.subr.mxu0 0.0
        %2806 = vmatpush1.msra.mxu0 0.0
        %2807 = vmatprep.subr.mxu0 0.0
        %2808 = vmatpush1.msra.mxu0 0.0
        %2809 = vmatprep.subr.mxu0 0.0
        %2810 = vmatpush1.msra.mxu0 0.0
        %2811 = vmatprep.subr.mxu0 0.0
        %2812 = vmatpush1.msra.mxu0 0.0
        %2813 = vmatprep.subr.mxu0 0.0
        %2814 = vmatpush1.msra.mxu0 0.0
        %2815 = vmatprep.subr.mxu0 0.0
        %2816 = vmatpush1.msra.mxu0 0.0
        %2817 = vmatprep.subr.mxu0 0.0
        %2818 = vmatpush1.msra.mxu0 0.0
        %2819 = vmatprep.subr.mxu0 0.0
        %2820 = vmatpush1.msra.mxu0 0.0
        %2821 = vmatprep.subr.mxu0 0.0
        %2822 = vmatpush1.msra.mxu0 0.0
        %2823 = vmatprep.subr.mxu0 0.0
        %2824 = vmatpush1.msra.mxu0 0.0
        %2825 = vmatprep.subr.mxu0 0.0
        %2826 = vmatpush1.msra.mxu0 0.0
        %2827 = vmatprep.subr.mxu0 0.0
        %2828 = vmatpush1.msra.mxu0 0.0
        %2829 = vmatprep.subr.mxu0 0.0
        %2830 = vmatpush1.msra.mxu0 0.0
        %2831 = vmatprep.subr.mxu0 0.0
        %2832 = vmatpush1.msra.mxu0 0.0
        %2833 = vmatprep.subr.mxu0 0.0
        %2834 = vmatpush1.msra.mxu0 0.0
        %2835 = vmatprep.subr.mxu0 0.0
        %2836 = vmatpush1.msra.mxu0 0.0
        %2837 = vmatprep.subr.mxu0 0.0
        %2838 = vmatpush1.msra.mxu0 0.0
        %2839 = vmatprep.subr.mxu0 0.0
        %2840 = vmatpush1.msra.mxu0 0.0
        %2841 = vmatprep.subr.mxu0 0.0
        %2842 = vmatpush1.msra.mxu0 0.0
        %2843 = vmatprep.subr.mxu0 0.0
        %2844 = vmatpush1.msra.mxu0 0.0
        %2845 = vmatprep.subr.mxu0 0.0
        %2846 = vmatpush1.msra.mxu0 0.0
        %2847 = vmatprep.subr.mxu0 0.0
        %2848 = vmatpush1.msra.mxu0 0.0
        %2849 = vmatprep.subr.mxu0 0.0
        %2850 = vmatpush1.msra.mxu0 0.0
        %2851 = vmatprep.subr.mxu0 0.0
        %2852 = vmatpush1.msra.mxu0 0.0
        %2853 = vmatprep.subr.mxu0 0.0
        %2854 = vmatpush1.msra.mxu0 0.0
        %2855 = vmatprep.subr.mxu0 0.0
        %2856 = vmatpush1.msra.mxu0 0.0
        %2857 = vmatprep.subr.mxu0 0.0
        %2858 = vmatpush1.msra.mxu0 0.0
        %2859 = vmatprep.subr.mxu0 0.0
        %2860 = vmatpush1.msra.mxu0 0.0
        %2861 = vmatprep.mubr.f32.mxu0 0.0
        %2862 = vmatmul.mubr.f32.gmra.mrb[0].mxu0 %v2774
        %v2863 = vpop.f32.mrb[0].mxu0
        %v2864 = vadd.f32 0.0, %v2863
        %v2865 = vpop.f32.mrb[0].mxu0
        %2866 = vmatprep.mubr.f32.mxu0 0.0
        %2867 = vmatmul.mubr.f32.gmra.mrb[0].mxu0 %v2777
        %v2868 = vpop.f32.mrb[0].mxu0
        %v2869 = vadd.f32 0.0, %v2868
        %v2870 = vpop.f32.mrb[0].mxu0
        %2871 = vmatprep.mubr.f32.mxu0 0.0
        %2872 = vmatmul.mubr.f32.gmra.mrb[0].mxu0 %v2780
        %v2873 = vpop.f32.mrb[0].mxu0
        %v2874 = vadd.f32 0.0, %v2873
        %v2875 = vpop.f32.mrb[0].mxu0
        %2876 = vmatprep.mubr.f32.mxu0 0.0
        %2877 = vmatmul.mubr.f32.gmra.mrb[0].mxu0 %v2783
        %v2878 = vpop.f32.mrb[0].mxu0
        %v2879 = vadd.f32 0.0, %v2878
        %v2880 = vpop.f32.mrb[0].mxu0
        %2881 = vmatprep.mubr.f32.mxu0 0.0
        %2882 = vmatmul.mubr.f32.gmra.mrb[0].mxu0 %v2786
        %v2883 = vpop.f32.mrb[0].mxu0
        %v2884 = vadd.f32 0.0, %v2883
        %v2885 = vpop.f32.mrb[0].mxu0
        %2886 = vmatprep.mubr.f32.mxu0 0.0
        %2887 = vmatmul.mubr.f32.gmra.mrb[0].mxu0 %v2789
        %v2888 = vpop.f32.mrb[0].mxu0
        %v2889 = vadd.f32 0.0, %v2888
        %v2890 = vpop.f32.mrb[0].mxu0
        %2891 = vmatprep.mubr.f32.mxu0 0.0
        %2892 = vmatmul.mubr.f32.gmra.mrb[0].mxu0 %v2792
        %v2893 = vpop.f32.mrb[0].mxu0
        %v2894 = vadd.f32 0.0, %v2893
        %v2895 = vpop.f32.mrb[0].mxu0
        %2896 = vmatprep.mubr.f32.mxu0 0.0
        %2897 = vmatmul.mubr.f32.gmra.mrb[0].mxu0 %v2795
        %v2898 = vpop.f32.mrb[0].mxu0
        %v2899 = vadd.f32 0.0, %v2898
        %v2900 = vpop.f32.mrb[0].mxu0
        %2901 = vdwg.mxu0
        %v2902 = vpack.c.bf16 %v2869, %v2864
        %v2903 = vpack.c.bf16 %v2879, %v2874
        %v2904 = vpack.c.bf16 %v2889, %v2884
        %v2905 = vpack.c.bf16 %v2899, %v2894
        %v2906 = vld [vmem:[%s11] sm:$0xf]
        %v2907 = vld [vmem:[%s11 + $0x4] sm:$0xf]
        %v2908 = vld [vmem:[%s11 + $0x8] sm:$0xf]
        %v2909 = vld [vmem:[%s11 + $0xc] sm:$0xf]
        %v2910 = vld [vmem:[%s11 + $0x10] sm:$0xf]
        %v2911 = vld [vmem:[%s11 + $0x14] sm:$0xf]
        %v2912 = vld [vmem:[%s11 + $0x18] sm:$0xf]
        %v2913 = vld [vmem:[%s11 + $0x1c] sm:$0xf]
        %v2914 = vld [vmem:[%s11 + $0x20] sm:$0xf]
        %v2915 = vld [vmem:[%s11 + $0x24] sm:$0xf]
        %v2916 = vld [vmem:[%s11 + $0x28] sm:$0xf]
        %v2917 = vld [vmem:[%s11 + $0x2c] sm:$0xf]
        %v2918 = vld [vmem:[%s11 + $0x30] sm:$0xf]
        %v2919 = vld [vmem:[%s11 + $0x34] sm:$0xf]
        %v2920 = vld [vmem:[%s11 + $0x38] sm:$0xf]
        %v2921 = vld [vmem:[%s11 + $0x3c] sm:$0xf]
        %s2922 = scalar_lea.vmem [#allocation9], 64
        %v2923 = vld [vmem:[%s2922] sm:$0xff]
        %v2924 = vld [vmem:[%s2922 + $0x8] sm:$0xff]
        %v2925 = vld [vmem:[%s2922 + $0x10] sm:$0xff]
        %v2926 = vld [vmem:[%s2922 + $0x18] sm:$0xff]
        %v2927 = vld [vmem:[%s2922 + $0x20] sm:$0xff]
        %v2928 = vld [vmem:[%s2922 + $0x28] sm:$0xff]
        %v2929 = vld [vmem:[%s2922 + $0x30] sm:$0xff]
        %v2930 = vld [vmem:[%s2922 + $0x38] sm:$0xff]
        %v2932 = vsel %vm2772, %v2923, 0
        %v2935 = vsel %vm2772, %v2924, 0
        %v2938 = vsel %vm2772, %v2925, 0
        %v2941 = vsel %vm2772, %v2926, 0
        %v2944 = vsel %vm2772, %v2927, 0
        %v2947 = vsel %vm2772, %v2928, 0
        %v2950 = vsel %vm2772, %v2929, 0
        %v2953 = vsel %vm2772, %v2930, 0
        %2955 = vmatprep.subr.mxu0 0.0
        %2956 = vmatpush1.msra.mxu0 %v2746
        %2957 = vmatprep.subr.mxu0 0.0
        %2958 = vmatpush1.msra.mxu0 %v2751
        %2959 = vmatprep.subr.mxu0 0.0
        %2960 = vmatpush1.msra.mxu0 %v2756
        %2961 = vmatprep.subr.mxu0 0.0
        %2962 = vmatpush1.msra.mxu0 %v2761
        %2963 = vmatprep.subr.mxu0 0.0
        %2964 = vmatpush1.msra.mxu0 0.0
        %2965 = vmatprep.subr.mxu0 0.0
        %2966 = vmatpush1.msra.mxu0 0.0
        %2967 = vmatprep.subr.mxu0 0.0
        %2968 = vmatpush1.msra.mxu0 0.0
        %2969 = vmatprep.subr.mxu0 0.0
        %2970 = vmatpush1.msra.mxu0 0.0
        %2971 = vmatprep.subr.mxu0 0.0
        %2972 = vmatpush1.msra.mxu0 0.0
        %2973 = vmatprep.subr.mxu0 0.0
        %2974 = vmatpush1.msra.mxu0 0.0
        %2975 = vmatprep.subr.mxu0 0.0
        %2976 = vmatpush1.msra.mxu0 0.0
        %2977 = vmatprep.subr.mxu0 0.0
        %2978 = vmatpush1.msra.mxu0 0.0
        %2979 = vmatprep.subr.mxu0 0.0
        %2980 = vmatpush1.msra.mxu0 0.0
        %2981 = vmatprep.subr.mxu0 0.0
        %2982 = vmatpush1.msra.mxu0 0.0
        %2983 = vmatprep.subr.mxu0 0.0
        %2984 = vmatpush1.msra.mxu0 0.0
        %2985 = vmatprep.subr.mxu0 0.0
        %2986 = vmatpush1.msra.mxu0 0.0
        %2987 = vmatprep.subr.mxu0 0.0
        %2988 = vmatpush1.msra.mxu0 0.0
        %2989 = vmatprep.subr.mxu0 0.0
        %2990 = vmatpush1.msra.mxu0 0.0
        %2991 = vmatprep.subr.mxu0 0.0
        %2992 = vmatpush1.msra.mxu0 0.0
        %2993 = vmatprep.subr.mxu0 0.0
        %2994 = vmatpush1.msra.mxu0 0.0
        %2995 = vmatprep.subr.mxu0 0.0
        %2996 = vmatpush1.msra.mxu0 0.0
        %2997 = vmatprep.subr.mxu0 0.0
        %2998 = vmatpush1.msra.mxu0 0.0
        %2999 = vmatprep.subr.mxu0 0.0
        %3000 = vmatpush1.msra.mxu0 0.0
        %3001 = vmatprep.subr.mxu0 0.0
        %3002 = vmatpush1.msra.mxu0 0.0
        %3003 = vmatprep.subr.mxu0 0.0
        %3004 = vmatpush1.msra.mxu0 0.0
        %3005 = vmatprep.subr.mxu0 0.0
        %3006 = vmatpush1.msra.mxu0 0.0
        %3007 = vmatprep.subr.mxu0 0.0
        %3008 = vmatpush1.msra.mxu0 0.0
        %3009 = vmatprep.subr.mxu0 0.0
        %3010 = vmatpush1.msra.mxu0 0.0
        %3011 = vmatprep.subr.mxu0 0.0
        %3012 = vmatpush1.msra.mxu0 0.0
        %3013 = vmatprep.subr.mxu0 0.0
        %3014 = vmatpush1.msra.mxu0 0.0
        %3015 = vmatprep.subr.mxu0 0.0
        %3016 = vmatpush1.msra.mxu0 0.0
        %3017 = vmatprep.subr.mxu0 0.0
        %3018 = vmatpush1.msra.mxu0 0.0
        %3019 = vmatprep.mubr.f32.mxu0 0.0
        %3020 = vmatmul.mubr.f32.gmra.mrb[0].mxu0 %v2932
        %v3021 = vpop.f32.mrb[0].mxu0
        %v3022 = vadd.f32 0.0, %v3021
        %v3023 = vpop.f32.mrb[0].mxu0
        %3024 = vmatprep.mubr.f32.mxu0 0.0
        %3025 = vmatmul.mubr.f32.gmra.mrb[0].mxu0 %v2935
        %v3026 = vpop.f32.mrb[0].mxu0
        %v3027 = vadd.f32 0.0, %v3026
        %v3028 = vpop.f32.mrb[0].mxu0
        %3029 = vmatprep.mubr.f32.mxu0 0.0
        %3030 = vmatmul.mubr.f32.gmra.mrb[0].mxu0 %v2938
        %v3031 = vpop.f32.mrb[0].mxu0
        %v3032 = vadd.f32 0.0, %v3031
        %v3033 = vpop.f32.mrb[0].mxu0
        %3034 = vmatprep.mubr.f32.mxu0 0.0
        %3035 = vmatmul.mubr.f32.gmra.mrb[0].mxu0 %v2941
        %v3036 = vpop.f32.mrb[0].mxu0
        %v3037 = vadd.f32 0.0, %v3036
        %v3038 = vpop.f32.mrb[0].mxu0
        %3039 = vmatprep.mubr.f32.mxu0 0.0
        %3040 = vmatmul.mubr.f32.gmra.mrb[0].mxu0 %v2944
        %v3041 = vpop.f32.mrb[0].mxu0
        %v3042 = vadd.f32 0.0, %v3041
        %v3043 = vpop.f32.mrb[0].mxu0
        %3044 = vmatprep.mubr.f32.mxu0 0.0
        %3045 = vmatmul.mubr.f32.gmra.mrb[0].mxu0 %v2947
        %v3046 = vpop.f32.mrb[0].mxu0
        %v3047 = vadd.f32 0.0, %v3046
        %v3048 = vpop.f32.mrb[0].mxu0
        %3049 = vmatprep.mubr.f32.mxu0 0.0
        %3050 = vmatmul.mubr.f32.gmra.mrb[0].mxu0 %v2950
        %v3051 = vpop.f32.mrb[0].mxu0
        %v3052 = vadd.f32 0.0, %v3051
        %v3053 = vpop.f32.mrb[0].mxu0
        %3054 = vmatprep.mubr.f32.mxu0 0.0
        %3055 = vmatmul.mubr.f32.gmra.mrb[0].mxu0 %v2953
        %v3056 = vpop.f32.mrb[0].mxu0
        %v3057 = vadd.f32 0.0, %v3056
        %v3058 = vpop.f32.mrb[0].mxu0
        %3059 = vdwg.mxu0
        %v3060 = vpack.c.bf16 %v3027, %v3022
        %v3061 = vpack.c.bf16 %v3037, %v3032
        %v3062 = vpack.c.bf16 %v3047, %v3042
        %v3063 = vpack.c.bf16 %v3057, %v3052
        %s3064 = scalar_lea.vmem %s11, 64
        %v3065 = vld [vmem:[%s3064] sm:$0xf]
        %v3066 = vld [vmem:[%s3064 + $0x4] sm:$0xf]
        %v3067 = vld [vmem:[%s3064 + $0x8] sm:$0xf]
        %v3068 = vld [vmem:[%s3064 + $0xc] sm:$0xf]
        %v3069 = vld [vmem:[%s3064 + $0x10] sm:$0xf]
        %v3070 = vld [vmem:[%s3064 + $0x14] sm:$0xf]
        %v3071 = vld [vmem:[%s3064 + $0x18] sm:$0xf]
        %v3072 = vld [vmem:[%s3064 + $0x1c] sm:$0xf]
        %v3073 = vld [vmem:[%s3064 + $0x20] sm:$0xf]
        %v3074 = vld [vmem:[%s3064 + $0x24] sm:$0xf]
        %v3075 = vld [vmem:[%s3064 + $0x28] sm:$0xf]
        %v3076 = vld [vmem:[%s3064 + $0x2c] sm:$0xf]
        %v3077 = vld [vmem:[%s3064 + $0x30] sm:$0xf]
        %v3078 = vld [vmem:[%s3064 + $0x34] sm:$0xf]
        %v3079 = vld [vmem:[%s3064 + $0x38] sm:$0xf]
        %v3080 = vld [vmem:[%s3064 + $0x3c] sm:$0xf]
        %v3097 = vunpack.c.l.b16 %v3065
        %v3098 = vunpack.c.l.b16 %v3066
        %v3099 = vunpack.c.l.b16 %v3067
        %v3100 = vunpack.c.l.b16 %v3068
        %v3101 = vunpack.c.l.b16 %v3069
        %v3102 = vunpack.c.l.b16 %v3070
        %v3103 = vunpack.c.l.b16 %v3071
        %v3104 = vunpack.c.l.b16 %v3072
        %v3105 = vunpack.c.l.b16 %v3073
        %v3106 = vunpack.c.l.b16 %v3074
        %v3107 = vunpack.c.l.b16 %v3075
        %v3108 = vunpack.c.l.b16 %v3076
        %v3109 = vunpack.c.l.b16 %v3077
        %v3110 = vunpack.c.l.b16 %v3078
        %v3111 = vunpack.c.l.b16 %v3079
        %v3112 = vunpack.c.l.b16 %v3080
        %v3113 = vpack.c.b16 %v3098, %v3097
        %v3114 = vpack.c.b16 %v3100, %v3099
        %v3115 = vpack.c.b16 %v3102, %v3101
        %v3116 = vpack.c.b16 %v3104, %v3103
        %v3117 = vpack.c.b16 %v3106, %v3105
        %v3118 = vpack.c.b16 %v3108, %v3107
        %v3119 = vpack.c.b16 %v3110, %v3109
        %v3120 = vpack.c.b16 %v3112, %v3111
        %3129 = vmatprep.subr.bf16.mxu0 0
        %3130 = vmatpush1.bf16.msra.mxu0 %v3113
        %3131 = vmatprep.subr.bf16.mxu0 0
        %3132 = vmatpush1.bf16.msra.mxu0 %v3114
        %3133 = vmatprep.subr.bf16.mxu0 0
        %3134 = vmatpush1.bf16.msra.mxu0 %v3115
        %3135 = vmatprep.subr.bf16.mxu0 0
        %3136 = vmatpush1.bf16.msra.mxu0 %v3116
        %3137 = vmatprep.subr.bf16.mxu0 0
        %3138 = vmatpush1.bf16.msra.mxu0 %v3117
        %3139 = vmatprep.subr.bf16.mxu0 0
        %3140 = vmatpush1.bf16.msra.mxu0 %v3118
        %3141 = vmatprep.subr.bf16.mxu0 0
        %3142 = vmatpush1.bf16.msra.mxu0 %v3119
        %3143 = vmatprep.subr.bf16.mxu0 0
        %3144 = vmatpush1.bf16.msra.mxu0 %v3120
        %3145 = vmatprep.subr.bf16.mxu0 0
        %3146 = vmatpush1.bf16.msra.mxu0 0
        %3147 = vmatprep.subr.bf16.mxu0 0
        %3148 = vmatpush1.bf16.msra.mxu0 0
        %3149 = vmatprep.subr.bf16.mxu0 0
        %3150 = vmatpush1.bf16.msra.mxu0 0
        %3151 = vmatprep.subr.bf16.mxu0 0
        %3152 = vmatpush1.bf16.msra.mxu0 0
        %3153 = vmatprep.subr.bf16.mxu0 0
        %3154 = vmatpush1.bf16.msra.mxu0 0
        %3155 = vmatprep.subr.bf16.mxu0 0
        %3156 = vmatpush1.bf16.msra.mxu0 0
        %3157 = vmatprep.subr.bf16.mxu0 0
        %3158 = vmatpush1.bf16.msra.mxu0 0
        %3159 = vmatprep.subr.bf16.mxu0 0
        %3160 = vmatpush1.bf16.msra.mxu0 0
        %3161 = vmatprep.mubr.bf16.mxu0 0
        %3162 = vmatmul.mubr.bf16.gmra.mrb[0].mxu0 %v3060
        %v3163 = vpop.f32.mrb[0].mxu0
        %v3164 = vadd.f32 0.0, %v3163
        %v3165 = vpop.f32.mrb[0].mxu0
        %v3166 = vpop.f32.mrb[0].mxu0
        %v3167 = vadd.f32 0.0, %v3166
        %v3168 = vpop.f32.mrb[0].mxu0
        %3169 = vmatprep.mubr.bf16.mxu0 0
        %3170 = vmatmul.mubr.bf16.gmra.mrb[0].mxu0 %v3061
        %v3171 = vpop.f32.mrb[0].mxu0
        %v3172 = vadd.f32 0.0, %v3171
        %v3173 = vpop.f32.mrb[0].mxu0
        %v3174 = vpop.f32.mrb[0].mxu0
        %v3175 = vadd.f32 0.0, %v3174
        %v3176 = vpop.f32.mrb[0].mxu0
        %3177 = vmatprep.mubr.bf16.mxu0 0
        %3178 = vmatmul.mubr.bf16.gmra.mrb[0].mxu0 %v3062
        %v3179 = vpop.f32.mrb[0].mxu0
        %v3180 = vadd.f32 0.0, %v3179
        %v3181 = vpop.f32.mrb[0].mxu0
        %v3182 = vpop.f32.mrb[0].mxu0
        %v3183 = vadd.f32 0.0, %v3182
        %v3184 = vpop.f32.mrb[0].mxu0
        %3185 = vmatprep.mubr.bf16.mxu0 0
        %3186 = vmatmul.mubr.bf16.gmra.mrb[0].mxu0 %v3063
        %v3187 = vpop.f32.mrb[0].mxu0
        %v3188 = vadd.f32 0.0, %v3187
        %v3189 = vpop.f32.mrb[0].mxu0
        %v3190 = vpop.f32.mrb[0].mxu0
        %v3191 = vadd.f32 0.0, %v3190
        %v3192 = vpop.f32.mrb[0].mxu0
        %3193 = vdwg.mxu0
        %v3210 = vunpack.c.l.b16 %v2906
        %v3211 = vunpack.c.l.b16 %v2907
        %v3212 = vunpack.c.l.b16 %v2908
        %v3213 = vunpack.c.l.b16 %v2909
        %v3214 = vunpack.c.l.b16 %v2910
        %v3215 = vunpack.c.l.b16 %v2911
        %v3216 = vunpack.c.l.b16 %v2912
        %v3217 = vunpack.c.l.b16 %v2913
        %v3218 = vunpack.c.l.b16 %v2914
        %v3219 = vunpack.c.l.b16 %v2915
        %v3220 = vunpack.c.l.b16 %v2916
        %v3221 = vunpack.c.l.b16 %v2917
        %v3222 = vunpack.c.l.b16 %v2918
        %v3223 = vunpack.c.l.b16 %v2919
        %v3224 = vunpack.c.l.b16 %v2920
        %v3225 = vunpack.c.l.b16 %v2921
        %v3226 = vpack.c.b16 %v3211, %v3210
        %v3227 = vpack.c.b16 %v3213, %v3212
        %v3228 = vpack.c.b16 %v3215, %v3214
        %v3229 = vpack.c.b16 %v3217, %v3216
        %v3230 = vpack.c.b16 %v3219, %v3218
        %v3231 = vpack.c.b16 %v3221, %v3220
        %v3232 = vpack.c.b16 %v3223, %v3222
        %v3233 = vpack.c.b16 %v3225, %v3224
        %3242 = vmatprep.subr.bf16.mxu0 0
        %3243 = vmatpush1.bf16.msra.mxu0 %v3226
        %3244 = vmatprep.subr.bf16.mxu0 0
        %3245 = vmatpush1.bf16.msra.mxu0 %v3227
        %3246 = vmatprep.subr.bf16.mxu0 0
        %3247 = vmatpush1.bf16.msra.mxu0 %v3228
        %3248 = vmatprep.subr.bf16.mxu0 0
        %3249 = vmatpush1.bf16.msra.mxu0 %v3229
        %3250 = vmatprep.subr.bf16.mxu0 0
        %3251 = vmatpush1.bf16.msra.mxu0 %v3230
        %3252 = vmatprep.subr.bf16.mxu0 0
        %3253 = vmatpush1.bf16.msra.mxu0 %v3231
        %3254 = vmatprep.subr.bf16.mxu0 0
        %3255 = vmatpush1.bf16.msra.mxu0 %v3232
        %3256 = vmatprep.subr.bf16.mxu0 0
        %3257 = vmatpush1.bf16.msra.mxu0 %v3233
        %3258 = vmatprep.subr.bf16.mxu0 0
        %3259 = vmatpush1.bf16.msra.mxu0 0
        %3260 = vmatprep.subr.bf16.mxu0 0
        %3261 = vmatpush1.bf16.msra.mxu0 0
        %3262 = vmatprep.subr.bf16.mxu0 0
        %3263 = vmatpush1.bf16.msra.mxu0 0
        %3264 = vmatprep.subr.bf16.mxu0 0
        %3265 = vmatpush1.bf16.msra.mxu0 0
        %3266 = vmatprep.subr.bf16.mxu0 0
        %3267 = vmatpush1.bf16.msra.mxu0 0
        %3268 = vmatprep.subr.bf16.mxu0 0
        %3269 = vmatpush1.bf16.msra.mxu0 0
        %3270 = vmatprep.subr.bf16.mxu0 0
        %3271 = vmatpush1.bf16.msra.mxu0 0
        %3272 = vmatprep.subr.bf16.mxu0 0
        %3273 = vmatpush1.bf16.msra.mxu0 0
        %3274 = vmatprep.mubr.bf16.mxu0 0
        %3275 = vmatmul.mubr.bf16.gmra.mrb[0].mxu0 %v2902
        %v3276 = vpop.f32.mrb[0].mxu0
        %v3277 = vadd.f32 %v3164, %v3276
        %v3278 = vpop.f32.mrb[0].mxu0
        %v3279 = vpop.f32.mrb[0].mxu0
        %v3280 = vadd.f32 %v3167, %v3279
        %v3281 = vpop.f32.mrb[0].mxu0
        %3282 = vmatprep.mubr.bf16.mxu0 0
        %3283 = vmatmul.mubr.bf16.gmra.mrb[0].mxu0 %v2903
        %v3284 = vpop.f32.mrb[0].mxu0
        %v3285 = vadd.f32 %v3172, %v3284
        %v3286 = vpop.f32.mrb[0].mxu0
        %v3287 = vpop.f32.mrb[0].mxu0
        %v3288 = vadd.f32 %v3175, %v3287
        %v3289 = vpop.f32.mrb[0].mxu0
        %3290 = vmatprep.mubr.bf16.mxu0 0
        %3291 = vmatmul.mubr.bf16.gmra.mrb[0].mxu0 %v2904
        %v3292 = vpop.f32.mrb[0].mxu0
        %v3293 = vadd.f32 %v3180, %v3292
        %v3294 = vpop.f32.mrb[0].mxu0
        %v3295 = vpop.f32.mrb[0].mxu0
        %v3296 = vadd.f32 %v3183, %v3295
        %v3297 = vpop.f32.mrb[0].mxu0
        %3298 = vmatprep.mubr.bf16.mxu0 0
        %3299 = vmatmul.mubr.bf16.gmra.mrb[0].mxu0 %v2905
        %v3300 = vpop.f32.mrb[0].mxu0
        %v3301 = vadd.f32 %v3188, %v3300
        %v3302 = vpop.f32.mrb[0].mxu0
        %v3303 = vpop.f32.mrb[0].mxu0
        %v3304 = vadd.f32 %v3191, %v3303
        %v3305 = vpop.f32.mrb[0].mxu0
        %3306 = vdwg.mxu0
        %s3307 = scalar_lea.vmem [#allocation9], 128
        %v3308 = vld [vmem:[%s3307] sm:$0xff]
        %v3309 = vld [vmem:[%s3307 + $0x8] sm:$0xff]
        %v3310 = vld [vmem:[%s3307 + $0x10] sm:$0xff]
        %v3311 = vld [vmem:[%s3307 + $0x18] sm:$0xff]
        %v3312 = vld [vmem:[%s3307 + $0x20] sm:$0xff]
        %v3313 = vld [vmem:[%s3307 + $0x28] sm:$0xff]
        %v3314 = vld [vmem:[%s3307 + $0x30] sm:$0xff]
        %v3315 = vld [vmem:[%s3307 + $0x38] sm:$0xff]
        %v3317 = vsel %vm2772, %v3308, 0
        %v3320 = vsel %vm2772, %v3309, 0
        %v3323 = vsel %vm2772, %v3310, 0
        %v3326 = vsel %vm2772, %v3311, 0
        %v3329 = vsel %vm2772, %v3312, 0
        %v3332 = vsel %vm2772, %v3313, 0
        %v3335 = vsel %vm2772, %v3314, 0
        %v3338 = vsel %vm2772, %v3315, 0
        %3340 = vmatprep.subr.mxu0 0.0
        %3341 = vmatpush1.msra.mxu0 %v2746
        %3342 = vmatprep.subr.mxu0 0.0
        %3343 = vmatpush1.msra.mxu0 %v2751
        %3344 = vmatprep.subr.mxu0 0.0
        %3345 = vmatpush1.msra.mxu0 %v2756
        %3346 = vmatprep.subr.mxu0 0.0
        %3347 = vmatpush1.msra.mxu0 %v2761
        %3348 = vmatprep.subr.mxu0 0.0
        %3349 = vmatpush1.msra.mxu0 0.0
        %3350 = vmatprep.subr.mxu0 0.0
        %3351 = vmatpush1.msra.mxu0 0.0
        %3352 = vmatprep.subr.mxu0 0.0
        %3353 = vmatpush1.msra.mxu0 0.0
        %3354 = vmatprep.subr.mxu0 0.0
        %3355 = vmatpush1.msra.mxu0 0.0
        %3356 = vmatprep.subr.mxu0 0.0
        %3357 = vmatpush1.msra.mxu0 0.0
        %3358 = vmatprep.subr.mxu0 0.0
        %3359 = vmatpush1.msra.mxu0 0.0
        %3360 = vmatprep.subr.mxu0 0.0
        %3361 = vmatpush1.msra.mxu0 0.0
        %3362 = vmatprep.subr.mxu0 0.0
        %3363 = vmatpush1.msra.mxu0 0.0
        %3364 = vmatprep.subr.mxu0 0.0
        %3365 = vmatpush1.msra.mxu0 0.0
        %3366 = vmatprep.subr.mxu0 0.0
        %3367 = vmatpush1.msra.mxu0 0.0
        %3368 = vmatprep.subr.mxu0 0.0
        %3369 = vmatpush1.msra.mxu0 0.0
        %3370 = vmatprep.subr.mxu0 0.0
        %3371 = vmatpush1.msra.mxu0 0.0
        %3372 = vmatprep.subr.mxu0 0.0
        %3373 = vmatpush1.msra.mxu0 0.0
        %3374 = vmatprep.subr.mxu0 0.0
        %3375 = vmatpush1.msra.mxu0 0.0
        %3376 = vmatprep.subr.mxu0 0.0
        %3377 = vmatpush1.msra.mxu0 0.0
        %3378 = vmatprep.subr.mxu0 0.0
        %3379 = vmatpush1.msra.mxu0 0.0
        %3380 = vmatprep.subr.mxu0 0.0
        %3381 = vmatpush1.msra.mxu0 0.0
        %3382 = vmatprep.subr.mxu0 0.0
        %3383 = vmatpush1.msra.mxu0 0.0
        %3384 = vmatprep.subr.mxu0 0.0
        %3385 = vmatpush1.msra.mxu0 0.0
        %3386 = vmatprep.subr.mxu0 0.0
        %3387 = vmatpush1.msra.mxu0 0.0
        %3388 = vmatprep.subr.mxu0 0.0
        %3389 = vmatpush1.msra.mxu0 0.0
        %3390 = vmatprep.subr.mxu0 0.0
        %3391 = vmatpush1.msra.mxu0 0.0
        %3392 = vmatprep.subr.mxu0 0.0
        %3393 = vmatpush1.msra.mxu0 0.0
        %3394 = vmatprep.subr.mxu0 0.0
        %3395 = vmatpush1.msra.mxu0 0.0
        %3396 = vmatprep.subr.mxu0 0.0
        %3397 = vmatpush1.msra.mxu0 0.0
        %3398 = vmatprep.subr.mxu0 0.0
        %3399 = vmatpush1.msra.mxu0 0.0
        %3400 = vmatprep.subr.mxu0 0.0
        %3401 = vmatpush1.msra.mxu0 0.0
        %3402 = vmatprep.subr.mxu0 0.0
        %3403 = vmatpush1.msra.mxu0 0.0
        %3404 = vmatprep.mubr.f32.mxu0 0.0
        %3405 = vmatmul.mubr.f32.gmra.mrb[0].mxu0 %v3317
        %v3406 = vpop.f32.mrb[0].mxu0
        %v3407 = vadd.f32 0.0, %v3406
        %v3408 = vpop.f32.mrb[0].mxu0
        %3409 = vmatprep.mubr.f32.mxu0 0.0
        %3410 = vmatmul.mubr.f32.gmra.mrb[0].mxu0 %v3320
        %v3411 = vpop.f32.mrb[0].mxu0
        %v3412 = vadd.f32 0.0, %v3411
        %v3413 = vpop.f32.mrb[0].mxu0
        %3414 = vmatprep.mubr.f32.mxu0 0.0
        %3415 = vmatmul.mubr.f32.gmra.mrb[0].mxu0 %v3323
        %v3416 = vpop.f32.mrb[0].mxu0
        %v3417 = vadd.f32 0.0, %v3416
        %v3418 = vpop.f32.mrb[0].mxu0
        %3419 = vmatprep.mubr.f32.mxu0 0.0
        %3420 = vmatmul.mubr.f32.gmra.mrb[0].mxu0 %v3326
        %v3421 = vpop.f32.mrb[0].mxu0
        %v3422 = vadd.f32 0.0, %v3421
        %v3423 = vpop.f32.mrb[0].mxu0
        %3424 = vmatprep.mubr.f32.mxu0 0.0
        %3425 = vmatmul.mubr.f32.gmra.mrb[0].mxu0 %v3329
        %v3426 = vpop.f32.mrb[0].mxu0
        %v3427 = vadd.f32 0.0, %v3426
        %v3428 = vpop.f32.mrb[0].mxu0
        %3429 = vmatprep.mubr.f32.mxu0 0.0
        %3430 = vmatmul.mubr.f32.gmra.mrb[0].mxu0 %v3332
        %v3431 = vpop.f32.mrb[0].mxu0
        %v3432 = vadd.f32 0.0, %v3431
        %v3433 = vpop.f32.mrb[0].mxu0
        %3434 = vmatprep.mubr.f32.mxu0 0.0
        %3435 = vmatmul.mubr.f32.gmra.mrb[0].mxu0 %v3335
        %v3436 = vpop.f32.mrb[0].mxu0
        %v3437 = vadd.f32 0.0, %v3436
        %v3438 = vpop.f32.mrb[0].mxu0
        %3439 = vmatprep.mubr.f32.mxu0 0.0
        %3440 = vmatmul.mubr.f32.gmra.mrb[0].mxu0 %v3338
        %v3441 = vpop.f32.mrb[0].mxu0
        %v3442 = vadd.f32 0.0, %v3441
        %v3443 = vpop.f32.mrb[0].mxu0
        %3444 = vdwg.mxu0
        %v3445 = vpack.c.bf16 %v3412, %v3407
        %v3446 = vpack.c.bf16 %v3422, %v3417
        %v3447 = vpack.c.bf16 %v3432, %v3427
        %v3448 = vpack.c.bf16 %v3442, %v3437
        %s3449 = scalar_lea.vmem %s11, 128
        %v3450 = vld [vmem:[%s3449] sm:$0xf]
        %v3451 = vld [vmem:[%s3449 + $0x4] sm:$0xf]
        %v3452 = vld [vmem:[%s3449 + $0x8] sm:$0xf]
        %v3453 = vld [vmem:[%s3449 + $0xc] sm:$0xf]
        %v3454 = vld [vmem:[%s3449 + $0x10] sm:$0xf]
        %v3455 = vld [vmem:[%s3449 + $0x14] sm:$0xf]
        %v3456 = vld [vmem:[%s3449 + $0x18] sm:$0xf]
        %v3457 = vld [vmem:[%s3449 + $0x1c] sm:$0xf]
        %v3458 = vld [vmem:[%s3449 + $0x20] sm:$0xf]
        %v3459 = vld [vmem:[%s3449 + $0x24] sm:$0xf]
        %v3460 = vld [vmem:[%s3449 + $0x28] sm:$0xf]
        %v3461 = vld [vmem:[%s3449 + $0x2c] sm:$0xf]
        %v3462 = vld [vmem:[%s3449 + $0x30] sm:$0xf]
        %v3463 = vld [vmem:[%s3449 + $0x34] sm:$0xf]
        %v3464 = vld [vmem:[%s3449 + $0x38] sm:$0xf]
        %v3465 = vld [vmem:[%s3449 + $0x3c] sm:$0xf]
        %v3482 = vunpack.c.l.b16 %v3450
        %v3483 = vunpack.c.l.b16 %v3451
        %v3484 = vunpack.c.l.b16 %v3452
        %v3485 = vunpack.c.l.b16 %v3453
        %v3486 = vunpack.c.l.b16 %v3454
        %v3487 = vunpack.c.l.b16 %v3455
        %v3488 = vunpack.c.l.b16 %v3456
        %v3489 = vunpack.c.l.b16 %v3457
        %v3490 = vunpack.c.l.b16 %v3458
        %v3491 = vunpack.c.l.b16 %v3459
        %v3492 = vunpack.c.l.b16 %v3460
        %v3493 = vunpack.c.l.b16 %v3461
        %v3494 = vunpack.c.l.b16 %v3462
        %v3495 = vunpack.c.l.b16 %v3463
        %v3496 = vunpack.c.l.b16 %v3464
        %v3497 = vunpack.c.l.b16 %v3465
        %v3498 = vpack.c.b16 %v3483, %v3482
        %v3499 = vpack.c.b16 %v3485, %v3484
        %v3500 = vpack.c.b16 %v3487, %v3486
        %v3501 = vpack.c.b16 %v3489, %v3488
        %v3502 = vpack.c.b16 %v3491, %v3490
        %v3503 = vpack.c.b16 %v3493, %v3492
        %v3504 = vpack.c.b16 %v3495, %v3494
        %v3505 = vpack.c.b16 %v3497, %v3496
        %3514 = vmatprep.subr.bf16.mxu0 0
        %3515 = vmatpush1.bf16.msra.mxu0 %v3498
        %3516 = vmatprep.subr.bf16.mxu0 0
        %3517 = vmatpush1.bf16.msra.mxu0 %v3499
        %3518 = vmatprep.subr.bf16.mxu0 0
        %3519 = vmatpush1.bf16.msra.mxu0 %v3500
        %3520 = vmatprep.subr.bf16.mxu0 0
        %3521 = vmatpush1.bf16.msra.mxu0 %v3501
        %3522 = vmatprep.subr.bf16.mxu0 0
        %3523 = vmatpush1.bf16.msra.mxu0 %v3502
        %3524 = vmatprep.subr.bf16.mxu0 0
        %3525 = vmatpush1.bf16.msra.mxu0 %v3503
        %3526 = vmatprep.subr.bf16.mxu0 0
        %3527 = vmatpush1.bf16.msra.mxu0 %v3504
        %3528 = vmatprep.subr.bf16.mxu0 0
        %3529 = vmatpush1.bf16.msra.mxu0 %v3505
        %3530 = vmatprep.subr.bf16.mxu0 0
        %3531 = vmatpush1.bf16.msra.mxu0 0
        %3532 = vmatprep.subr.bf16.mxu0 0
        %3533 = vmatpush1.bf16.msra.mxu0 0
        %3534 = vmatprep.subr.bf16.mxu0 0
        %3535 = vmatpush1.bf16.msra.mxu0 0
        %3536 = vmatprep.subr.bf16.mxu0 0
        %3537 = vmatpush1.bf16.msra.mxu0 0
        %3538 = vmatprep.subr.bf16.mxu0 0
        %3539 = vmatpush1.bf16.msra.mxu0 0
        %3540 = vmatprep.subr.bf16.mxu0 0
        %3541 = vmatpush1.bf16.msra.mxu0 0
        %3542 = vmatprep.subr.bf16.mxu0 0
        %3543 = vmatpush1.bf16.msra.mxu0 0
        %3544 = vmatprep.subr.bf16.mxu0 0
        %3545 = vmatpush1.bf16.msra.mxu0 0
        %3546 = vmatprep.mubr.bf16.mxu0 0
        %3547 = vmatmul.mubr.bf16.gmra.mrb[0].mxu0 %v3445
        %v3548 = vpop.f32.mrb[0].mxu0
        %v3549 = vadd.f32 0.0, %v3548
        %v3550 = vpop.f32.mrb[0].mxu0
        %v3551 = vpop.f32.mrb[0].mxu0
        %v3552 = vadd.f32 0.0, %v3551
        %v3553 = vpop.f32.mrb[0].mxu0
        %3554 = vmatprep.mubr.bf16.mxu0 0
        %3555 = vmatmul.mubr.bf16.gmra.mrb[0].mxu0 %v3446
        %v3556 = vpop.f32.mrb[0].mxu0
        %v3557 = vadd.f32 0.0, %v3556
        %v3558 = vpop.f32.mrb[0].mxu0
        %v3559 = vpop.f32.mrb[0].mxu0
        %v3560 = vadd.f32 0.0, %v3559
        %v3561 = vpop.f32.mrb[0].mxu0
        %3562 = vmatprep.mubr.bf16.mxu0 0
        %3563 = vmatmul.mubr.bf16.gmra.mrb[0].mxu0 %v3447
        %v3564 = vpop.f32.mrb[0].mxu0
        %v3565 = vadd.f32 0.0, %v3564
        %v3566 = vpop.f32.mrb[0].mxu0
        %v3567 = vpop.f32.mrb[0].mxu0
        %v3568 = vadd.f32 0.0, %v3567
        %v3569 = vpop.f32.mrb[0].mxu0
        %3570 = vmatprep.mubr.bf16.mxu0 0
        %3571 = vmatmul.mubr.bf16.gmra.mrb[0].mxu0 %v3448
        %v3572 = vpop.f32.mrb[0].mxu0
        %v3573 = vadd.f32 0.0, %v3572
        %v3574 = vpop.f32.mrb[0].mxu0
        %v3575 = vpop.f32.mrb[0].mxu0
        %v3576 = vadd.f32 0.0, %v3575
        %v3577 = vpop.f32.mrb[0].mxu0
        %3578 = vdwg.mxu0
        %v3579 = vadd.f32 %v3277, %v3549
        %v3580 = vadd.f32 %v3280, %v3552
        %v3581 = vadd.f32 %v3285, %v3557
        %v3582 = vadd.f32 %v3288, %v3560
        %v3583 = vadd.f32 %v3293, %v3565
        %v3584 = vadd.f32 %v3296, %v3568
        %v3585 = vadd.f32 %v3301, %v3573
        %v3586 = vadd.f32 %v3304, %v3576
        %v3587 = vld [vmem:[%s12] sm:$0x1]
        %v3589 = vlaneseq
        %v3590 = vshrl.u32 %v3589, 7
        %v3591 = vsub.s32 0, %v3590
        %v3592 = vrot.slane %v3587, %v3591
        %v3594 = vadd.f32 %v3579, %v3592
        %v3595 = vadd.f32 %v3580, %v3592
        %v3596 = vadd.f32 %v3581, %v3592
        %v3597 = vadd.f32 %v3582, %v3592
        %v3598 = vadd.f32 %v3583, %v3592
        %v3599 = vadd.f32 %v3584, %v3592
        %v3600 = vadd.f32 %v3585, %v3592
        %v3601 = vadd.f32 %v3586, %v3592
        %v3602 = vxor.u32 %v3594, 2147483648
        %v3603 = vxor.u32 %v3595, 2147483648
        %v3604 = vxor.u32 %v3596, 2147483648
        %v3605 = vxor.u32 %v3597, 2147483648
        %v3606 = vxor.u32 %v3598, 2147483648
        %v3607 = vxor.u32 %v3599, 2147483648
        %v3608 = vxor.u32 %v3600, 2147483648
        %v3609 = vxor.u32 %v3601, 2147483648
        %v3610 = vmul.f32 %v3602, 1.442695
        %v3611 = vpow.pop %v3610
        %v3612 = vmul.f32 %v3603, 1.442695
        %v3613 = vpow.pop %v3612
        %v3614 = vmul.f32 %v3604, 1.442695
        %v3615 = vpow.pop %v3614
        %v3616 = vmul.f32 %v3605, 1.442695
        %v3617 = vpow.pop %v3616
        %v3618 = vmul.f32 %v3606, 1.442695
        %v3619 = vpow.pop %v3618
        %v3620 = vmul.f32 %v3607, 1.442695
        %v3621 = vpow.pop %v3620
        %v3622 = vmul.f32 %v3608, 1.442695
        %v3623 = vpow.pop %v3622
        %v3624 = vmul.f32 %v3609, 1.442695
        %v3625 = vpow.pop %v3624
        %v3626 = vadd.f32 %v3611, 1.0
        %v3627 = vadd.f32 %v3613, 1.0
        %v3628 = vadd.f32 %v3615, 1.0
        %v3629 = vadd.f32 %v3617, 1.0
        %v3630 = vadd.f32 %v3619, 1.0
        %v3631 = vadd.f32 %v3621, 1.0
        %v3632 = vadd.f32 %v3623, 1.0
        %v3633 = vadd.f32 %v3625, 1.0
        %v3634 = vrcp.pop %v3626
        %v3635 = vmul.f32 1.0, %v3634
        %v3636 = vrcp.pop %v3627
        %v3637 = vmul.f32 1.0, %v3636
        %v3638 = vrcp.pop %v3628
        %v3639 = vmul.f32 1.0, %v3638
        %v3640 = vrcp.pop %v3629
        %v3641 = vmul.f32 1.0, %v3640
        %v3642 = vrcp.pop %v3630
        %v3643 = vmul.f32 1.0, %v3642
        %v3644 = vrcp.pop %v3631
        %v3645 = vmul.f32 1.0, %v3644
        %v3646 = vrcp.pop %v3632
        %v3647 = vmul.f32 1.0, %v3646
        %v3648 = vrcp.pop %v3633
        %v3649 = vmul.f32 1.0, %v3648
        %v3650 = vmul.f32 %v3594, %v3635
        %v3651 = vmul.f32 %v3595, %v3637
        %v3652 = vmul.f32 %v3596, %v3639
        %v3653 = vmul.f32 %v3597, %v3641
        %v3654 = vmul.f32 %v3598, %v3643
        %v3655 = vmul.f32 %v3599, %v3645
        %v3656 = vmul.f32 %v3600, %v3647
        %v3657 = vmul.f32 %v3601, %v3649
        %3658 = vst [vmem:[%s635] sm:$0xff] %v3650
        %3659 = vst [vmem:[%s635 + $0x8] sm:$0xff] %v3651
        %3660 = vst [vmem:[%s635 + $0x10] sm:$0xff] %v3652
        %3661 = vst [vmem:[%s635 + $0x18] sm:$0xff] %v3653
        %3662 = vst [vmem:[%s635 + $0x20] sm:$0xff] %v3654
        %3663 = vst [vmem:[%s635 + $0x28] sm:$0xff] %v3655
        %3664 = vst [vmem:[%s635 + $0x30] sm:$0xff] %v3656
        %3665 = vst [vmem:[%s635 + $0x38] sm:$0xff] %v3657
        %p3666 = scmp.lt.s32.totalorder %s32, 1
        %s3667 = scalar_select %p3666, %s32, 1
        %s3668 = smul.addr %s3667, 8
        %s3669 = smul.addr %s3668, 8
        %s3670 = scalar_lea.vmem %s16, %s3669
        // Predicated region
        $region117: #{segmentation_head_forward.1} parent=83 // pred_check
          %p3671 = pneg %p391
        $region118: #{segmentation_head_forward.1} parent=83 // pred_check_branch
          %3673 = sbr.rel (%p3671) target = $region120
        $region119: #{segmentation_head_forward.1} parent=83 // pred_region
          _
        $region120: #{segmentation_head_forward.1} parent=83 // pred_fallthru
          _
      $region84: #{segmentation_head_forward.1} parent=5 // pred_fallthru
        _
      %p3674 = scmp.le.s32.totalorder 2, %s27
      // Predicated region
      $region121: #{segmentation_head_forward.1} parent=5 // pred_check
        %p3675 = pneg %p3674
      $region122: #{segmentation_head_forward.1} parent=5 // pred_check_branch
        %3677 = sbr.rel (%p3675) target = $region124
      $region123: #{segmentation_head_forward.1} parent=5 // pred_region
        %s3678 = ssub.s32 %s27, 2
        // Predicated region
        $region125: #{segmentation_head_forward.1} parent=123 // pred_check
          %p3679 = pneg %p397
        $region126: #{segmentation_head_forward.1} parent=123 // pred_check_branch
          %3681 = sbr.rel (%p3679) target = $region128
        $region127: #{segmentation_head_forward.1} parent=123 // pred_region
          %p3682 = scmp.lt.s32.totalorder %s33, 1
          %s3683 = scalar_select %p3682, %s33, 1
          %s3684 = smul.addr %s3683, 8
          %s3685 = smul.addr %s3684, 8
          %s3686 = scalar_lea.vmem %s16, %s3685
        $region128: #{segmentation_head_forward.1} parent=123 // pred_fallthru
          _
      $region124: #{segmentation_head_forward.1} parent=5 // pred_fallthru
        _
    $region6: #{segmentation_head_forward.1} parent=1 // loop_footer
      %s31 = sadd.s32 1, %s27
    $region7: #{segmentation_head_forward.1} parent=1 // loop_footer_branch
      %26 = sbr.rel target = $region3
    $region8: #{segmentation_head_forward.1} parent=1 // loop_exit
      _
    %3687 = vsyncpa [#allocation3], 1
    %s3688 = scalar_lea.sflag [#allocation3], 1
    %3689 = vsyncpa %s3688, 1
    %3690 = vsyncpa [#allocation5], 1
    %3691 = vsyncpa [#allocation8], 1
    %3692 = vsyncpa [#allocation11], 1
    %3693 = vsyncpa [#allocation14], 1

</llo_original>
